<compile_context>
chip_gen: v7x
topology: tpu7x:2x2x1
jax: 0.10.0
libtpu: 0.0.40
codegen_flags: <defaults>
</compile_context>

<pallas_src>
import functools

import jax
import jax.numpy as jnp
from jax.experimental import pallas as pl
from jax.experimental.pallas import tpu as pltpu

_VMEM_LIMIT = 32 * 1024 * 1024  # conservative: fits v7x (64 MiB phys) and raises v5e default
_ROW_CP = pltpu.CompilerParams(dimension_semantics=("parallel",),
                               vmem_limit_bytes=_VMEM_LIMIT)


def _round_up(x, m):
    return (x + m - 1) // m * m


def _gelu(x):
    # TODO(synk): PyTorch nn.GELU uses exact erf; tanh approximation used here
    # for Mosaic-safe lowering.
    c = 0.7978845608028654  # sqrt(2/pi)
    return 0.5 * x * (1.0 + jnp.tanh(c * (x + 0.044715 * x * x * x)))


# --------------------------- generic row-tiled launcher ----------------------

def _rows_call(kernel, rows, resident, n_out, *, cost_estimate=None, max_tm=512):
    """Launch `kernel` over row-blocks.  `rows` are (M, Ki) arrays tiled over rows,
    `resident` are small 2-D arrays kept fully resident in VMEM."""
    M = rows[0].shape[0]
    TM = min(max_tm, _round_up(max(M, 8), 8))
    Mp = _round_up(M, TM)
    if Mp != M:
        rows = [jnp.pad(r, ((0, Mp - M), (0, 0))) for r in rows]
    in_specs = ([pl.BlockSpec((TM, r.shape[1]), lambda i: (i, 0)) for r in rows]
                + [pl.BlockSpec(a.shape, lambda i: (0, 0)) for a in resident])
    kwargs = {}
    if cost_estimate is not None:
        kwargs["cost_estimate"] = cost_estimate
    out = pl.pallas_call(
        kernel,
        grid=(Mp // TM,),
        in_specs=in_specs,
        out_specs=pl.BlockSpec((TM, n_out), lambda i: (i, 0)),
        out_shape=jax.ShapeDtypeStruct((Mp, n_out), jnp.float32),
        compiler_params=_ROW_CP,
        **kwargs,
    )(*rows, *resident)
    return out[:M] if Mp != M else out


# --------------------------- Pallas kernels ---------------------------------

def _matmul_bias_kernel(x_ref, w_ref, b_ref, o_ref, *, act):
    acc = jnp.dot(x_ref[...], w_ref[...], preferred_element_type=jnp.float32)
    acc = acc + b_ref[...]
    if act == "relu":
        acc = jnp.maximum(acc, 0.0)
    elif act == "gelu":
        acc = _gelu(acc)
    o_ref[...] = acc


def _layernorm_kernel(x_ref, g_ref, b_ref, o_ref, *, eps):
    x = x_ref[...]
    mu = jnp.mean(x, axis=-1, keepdims=True)
    xc = x - mu
    var = jnp.mean(xc * xc, axis=-1, keepdims=True)
    o_ref[...] = xc * jax.lax.rsqrt(var + eps) * g_ref[...] + b_ref[...]


def _wgen_kernel(x_ref, w1_ref, b1_ref, w2_ref, b2_ref, o_ref):
    # involution: conv1 (1x1, folded BN) + ReLU + conv2 (1x1), fused in VMEM.
    t = jnp.dot(x_ref[...], w1_ref[...], preferred_element_type=jnp.float32)
    t = jnp.maximum(t + b1_ref[...], 0.0)
    o_ref[...] = jnp.dot(t.astype(jnp.bfloat16), w2_ref[...],
                         preferred_element_type=jnp.float32) + b2_ref[...]


def _block_tail_kernel(x_ref, res_ref, g1_ref, be1_ref, w1_ref, b1_ref,
                       w2_ref, b2_ref, g2_ref, be2_ref, o_ref, *, eps):
    # LayerNorm + pwconv1 + GELU + pwconv2 + residual + post-block LayerNorm.
    x = x_ref[...]
    mu = jnp.mean(x, axis=-1, keepdims=True)
    xc = x - mu
    var = jnp.mean(xc * xc, axis=-1, keepdims=True)
    xn = xc * jax.lax.rsqrt(var + eps) * g1_ref[...] + be1_ref[...]
    h = jnp.dot(xn.astype(jnp.bfloat16), w1_ref[...],
                preferred_element_type=jnp.float32) + b1_ref[...]
    h = _gelu(h)
    y = jnp.dot(h.astype(jnp.bfloat16), w2_ref[...],
                preferred_element_type=jnp.float32) + b2_ref[...]
    z = y + res_ref[...]
    mu2 = jnp.mean(z, axis=-1, keepdims=True)
    zc = z - mu2
    var2 = jnp.mean(zc * zc, axis=-1, keepdims=True)
    o_ref[...] = zc * jax.lax.rsqrt(var2 + eps) * g2_ref[...] + be2_ref[...]


def _inv_mix_kernel(xp_ref, wk_ref, o_ref):
    # xp: (1, GC, H+2p, W+2p) padded group slab; wk: (1, K*K, H, W); out: (1, GC, H, W).
    # The K*K neighbourhood is built in-kernel with static shifted slices, so the
    # unfolded tensor is never materialised in HBM.
    _, GC, H, W = o_ref.shape
    KK = wk_ref.shape[1]
    K = int(round(KK ** 0.5))
    xp = xp_ref[...]
    wk = wk_ref[...]
    acc = jnp.zeros(o_ref.shape, jnp.float32)
    for k in range(KK):
        kh, kw = k // K, k % K
        acc = acc + xp[:, :, kh:kh + H, kw:kw + W] * wk[:, k:k + 1, :, :]
    o_ref[...] = acc


# --------------------------- kernel wrappers ---------------------------------

def matmul_bias(x, w, b, act="none"):
    """out = act(x @ w + b); rows tiled, bf16 MXU operands, f32 accumulation."""
    M, K = x.shape
    N = w.shape[1]
    ce = pl.CostEstimate(flops=int(2 * M * K * N), transcendentals=0,
                         bytes_accessed=int(2 * M * K + 2 * K * N + 4 * M * N + 4 * N))
    return _rows_call(
        functools.partial(_matmul_bias_kernel, act=act),
        [x.astype(jnp.bfloat16)],
        [w.astype(jnp.bfloat16), b.reshape(1, N).astype(jnp.float32)],
        N, cost_estimate=ce)


def layernorm_rows(x2d, gamma, beta, eps=1e-6):
    C = x2d.shape[1]
    return _rows_call(
        functools.partial(_layernorm_kernel, eps=eps),
        [x2d.astype(jnp.float32)],
        [gamma.reshape(1, C).astype(jnp.float32),
         beta.reshape(1, C).astype(jnp.float32)],
        C)


def involution_wgen(x_rows, p):
    C = x_rows.shape[1]
    red = p["conv1_w"].shape[0]
    w1 = p["conv1_w"].reshape(red, C).T.astype(jnp.bfloat16)          # (C, red)
    w2 = p["conv2_w"].reshape(p["conv2_w"].shape[0], red).T.astype(jnp.bfloat16)
    n_out = w2.shape[1]
    M = x_rows.shape[0]
    ce = pl.CostEstimate(flops=int(2 * M * C * red + 2 * M * red * n_out),
                         transcendentals=0,
                         bytes_accessed=int(2 * M * C + 4 * M * n_out
                                            + 2 * C * red + 2 * red * n_out))
    return _rows_call(
        _wgen_kernel,
        [x_rows.astype(jnp.bfloat16)],
        [w1, p["conv1_b"].reshape(1, red).astype(jnp.float32),
         w2, p["conv2_b"].reshape(1, n_out).astype(jnp.float32)],
        n_out, cost_estimate=ce)


def block_tail(x_mix_rows, res_rows, p, eps=1e-6):
    C = res_rows.shape[1]
    H4 = p["pw1_w"].shape[0]
    M = res_rows.shape[0]
    resident = [p["norm_w"].reshape(1, C).astype(jnp.float32),
                p["norm_b"].reshape(1, C).astype(jnp.float32),
                p["pw1_w"].T.astype(jnp.bfloat16),
                p["pw1_b"].reshape(1, H4).astype(jnp.float32),
                p["pw2_w"].T.astype(jnp.bfloat16),
                p["pw2_b"].reshape(1, C).astype(jnp.float32),
                p["post_ln_w"].reshape(1, C).astype(jnp.float32),
                p["post_ln_b"].reshape(1, C).astype(jnp.float32)]
    ce = pl.CostEstimate(flops=int(4 * M * C * H4), transcendentals=int(M * H4),
                         bytes_accessed=int(12 * M * C + 4 * C * H4))
    return _rows_call(
        functools.partial(_block_tail_kernel, eps=eps),
        [x_mix_rows.astype(jnp.float32), res_rows.astype(jnp.float32)],
        resident, C, cost_estimate=ce)


def inv_mix(xpad, wk):
    BG, GC, Hp, Wp = xpad.shape
    KK, H, W = wk.shape[1], wk.shape[2], wk.shape[3]
    return pl.pallas_call(
        _inv_mix_kernel,
        grid=(BG,),
        in_specs=[pl.BlockSpec((1, GC, Hp, Wp), lambda i: (i, 0, 0, 0)),
                  pl.BlockSpec((1, KK, H, W), lambda i: (i, 0, 0, 0))],
        out_specs=pl.BlockSpec((1, GC, H, W), lambda i: (i, 0, 0, 0)),
        out_shape=jax.ShapeDtypeStruct((BG, GC, H, W), jnp.float32),
        compiler_params=pltpu.CompilerParams(dimension_semantics=("parallel",),
                                             vmem_limit_bytes=_VMEM_LIMIT),
    )(xpad.astype(jnp.float32), wk.astype(jnp.float32))


# --------------------------- JAX glue (NHWC layout / im2col / pooling) -------

def im2col_nhwc(x, kh, kw, stride):
    # patch flattening order (kh, kw, C); weights are permuted to match.
    B, H, W, C = x.shape
    Ho = (H - kh) // stride + 1
    Wo = (W - kw) // stride + 1
    cols = []
    for i in range(kh):
        for j in range(kw):
            cols.append(x[:, i:i + stride * Ho:stride, j:j + stride * Wo:stride, :])
    cols = jnp.stack(cols, axis=3)                      # (B, Ho, Wo, kh*kw, C)
    return cols.reshape(B * Ho * Wo, kh * kw * C), Ho, Wo


def conv2d_nhwc(x, w, b, stride):
    # TODO(synk): im2col keeps a (kh*kw)x read blow-up for the tiny stem/downsample
    # convs; a (kh,kw)-reduction grid would remove it for large inputs.
    B, H, W, C = x.shape
    O, _, kh, kw = w.shape
    cols, Ho, Wo = im2col_nhwc(x, kh, kw, stride)
    w2 = jnp.transpose(w, (2, 3, 1, 0)).reshape(kh * kw * C, O)
    bb = b if b is not None else jnp.zeros((O,), jnp.float32)
    y = matmul_bias(cols, w2, bb)
    return y.reshape(B, Ho, Wo, O)


def maxpool2_nhwc(x):
    B, H, W, C = x.shape
    Ho, Wo = H // 2, W // 2
    x = x[:, :Ho * 2, :Wo * 2, :]
    return x.reshape(B, Ho, 2, Wo, 2, C).max(axis=(2, 4))


# --------------------------- Model blocks (NHWC trunk) -----------------------

def block_fwd(x, p, kernel_size):
    """Block (involution + LN + MLP + residual) followed by the inter-block
    channels-first LayerNorm (fused into the tail kernel).  x is NHWC."""
    B, H, W, C = x.shape
    GC = 16
    groups = C // GC
    K = kernel_size
    pad = (K - 1) // 2

    x_rows = x.reshape(-1, C)
    wk_rows = involution_wgen(x_rows, p["inv"])                      # (M, groups*K*K)

    # per-(batch, group) channels-first slabs for the mixing kernel
    xg = x.reshape(B, H, W, groups, GC).transpose(0, 3, 4, 1, 2)     # (B, G, GC, H, W)
    xg = xg.reshape(B * groups, GC, H, W)
    xg = jnp.pad(xg, ((0, 0), (0, 0), (pad, pad), (pad, pad)))
    wkg = wk_rows.reshape(B, H, W, groups, K * K).transpose(0, 3, 4, 1, 2)
    wkg = wkg.reshape(B * groups, K * K, H, W)

    mix = inv_mix(xg, wkg)                                           # (B*G, GC, H, W)
    mix_rows = mix.reshape(B, groups, GC, H, W).transpose(0, 3, 4, 1, 2).reshape(-1, C)

    out_rows = block_tail(mix_rows, x_rows, p)                       # fused LN+MLP+res+LN
    return out_rows.reshape(B, H, W, C)


def invnet_forward(x_nchw, params, *, dims, num_per_layers, inv_kernel):
    x = jnp.transpose(x_nchw, (0, 2, 3, 1))                          # NHWC once, up front
    x = conv2d_nhwc(x, params["stem_w"], params["stem_b"], stride=2)
    x = maxpool2_nhwc(x)
    B, H, W, C = x.shape
    x = layernorm_rows(x.reshape(-1, C), params["ln0_w"], params["ln0_b"]).reshape(B, H, W, C)
    for i, dim in enumerate(dims):
        for j in range(num_per_layers[i]):
            bp = params["stages"][i]["blocks"][j]
            x = block_fwd(x, bp, inv_kernel)        # includes the following LayerNorm
        if i == len(dims) - 1:
            break
        dp = params["stages"][i]["down"]
        x = conv2d_nhwc(x, dp["w"], None, stride=2)
        B, H, W, C = x.shape
        x = layernorm_rows(x.reshape(-1, C), dp["ln_w"], dp["ln_b"]).reshape(B, H, W, C)
    x = jnp.mean(x, axis=(1, 2))                                      # AdaptiveAvgPool2d((1,1))
    return matmul_bias(x, params["head_w"].T, params["head_b"])


# --------------------------- Deterministic parameter init -------------------

def _keygen(key):
    while True:
        key, sub = jax.random.split(key)
        yield sub


def init_params(key, in_channel, dims, num_per_layers, inv_kernel):
    ks = _keygen(key)

    def rnd(shape, scale=0.05):
        return scale * jax.random.normal(next(ks), shape, dtype=jnp.float32)

    p = {
        "stem_w": rnd((dims[0], in_channel, 7, 7)),
        "stem_b": rnd((dims[0],)),
        "ln0_w": jnp.ones((dims[0],), jnp.float32),
        "ln0_b": jnp.zeros((dims[0],), jnp.float32),
        "stages": [],
    }
    for i, dim in enumerate(dims):
        stage = {"blocks": []}
        red = dim // 4
        groups = dim // 16
        for _ in range(num_per_layers[i]):
            # fold eval-mode BatchNorm (gamma=1, beta=0, mean=0, var=1) into conv1
            # TODO(synk): loading trained weights requires folding real running stats.
            w1, b1 = rnd((red, dim, 1, 1)), rnd((red,))
            scale = jnp.ones((red,), jnp.float32) / jnp.sqrt(1.0 + 1e-5)
            blk = {
                "inv": {
                    "conv1_w": w1 * scale[:, None, None, None],
                    "conv1_b": b1 * scale,
                    "conv2_w": rnd((inv_kernel ** 2 * groups, red, 1, 1)),
                    "conv2_b": rnd((inv_kernel ** 2 * groups,)),
                },
                "norm_w": jnp.ones((dim,), jnp.float32),
                "norm_b": jnp.zeros((dim,), jnp.float32),
                "pw1_w": rnd((4 * dim, dim)), "pw1_b": rnd((4 * dim,)),
                "pw2_w": rnd((dim, 4 * dim)), "pw2_b": rnd((dim,)),
                "post_ln_w": jnp.ones((dim,), jnp.float32),
                "post_ln_b": jnp.zeros((dim,), jnp.float32),
            }
            stage["blocks"].append(blk)
        if i < len(dims) - 1:
            stage["down"] = {
                "w": rnd((dims[i + 1], dim, 3, 3)),
                "ln_w": jnp.ones((dims[i + 1],), jnp.float32),
                "ln_b": jnp.zeros((dims[i + 1],), jnp.float32),
            }
        p["stages"].append(stage)
    p["head_w"] = rnd((2, dims[-1]))
    p["head_b"] = rnd((2,))
    return p


# --------------------------- Main --------------------------------------------

if __name__ == "__main__":
    dims = (32, 64)            # small, multiples of group_channels=16
    num_per_layers = (1, 1)
    inv_kernel = 3
    in_channel = 3

    params = init_params(jax.random.PRNGKey(1), in_channel, dims,
                         num_per_layers, inv_kernel)
    x = jax.random.normal(jax.random.PRNGKey(0), (2, 3, 32, 32), dtype=jnp.float32)

    fwd = jax.jit(functools.partial(invnet_forward, dims=dims,
                                    num_per_layers=num_per_layers,
                                    inv_kernel=inv_kernel))
    out = fwd(x, params)
    jax.block_until_ready(out)
    assert out.shape == (2, 2) and out.dtype == jnp.float32
    print("KERNEL_OK")
</pallas_src>

<mosaic_0001>
module attributes {stable_mosaic.version = 11 : i64} {
  func.func @_matmul_bias_kernel(%arg0: i32, %arg1: memref<344x147xbf16, #tpu.memory_space<vmem>>, %arg2: memref<147x32xbf16, #tpu.memory_space<vmem>>, %arg3: memref<1x32xf32, #tpu.memory_space<vmem>>, %arg4: memref<344x32xf32, #tpu.memory_space<vmem>>) attributes {dimension_semantics = [#tpu.dimension_semantics<parallel>], iteration_bounds = array<i64: 1>, scalar_prefetch = 0 : i64, scratch_operands = 0 : i64, tpu.core_type = #tpu.core_type<tc>, window_params = [{transform_indices = @transform_0, window_bounds = array<i64: 344, 147>}, {pipeline_mode = #tpu.pipeline_mode<synchronous>, transform_indices = @transform_1, window_bounds = array<i64: 147, 32>}, {pipeline_mode = #tpu.pipeline_mode<synchronous>, transform_indices = @transform_2, window_bounds = array<i64: 1, 32>}, {transform_indices = @transform_3, window_bounds = array<i64: 344, 32>}]} {
    %c0 = arith.constant 0 : index
    %c0_0 = arith.constant 0 : index
    %0 = vector.load %arg1[%c0, %c0_0] : memref<344x147xbf16, #tpu.memory_space<vmem>>, vector<344x147xbf16>
    %c0_1 = arith.constant 0 : index
    %c0_2 = arith.constant 0 : index
    %1 = vector.load %arg2[%c0_1, %c0_2] : memref<147x32xbf16, #tpu.memory_space<vmem>>, vector<147x32xbf16>
    %cst = arith.constant dense<0.000000e+00> : vector<344x32xf32>
    %2 = tpu.matmul %0, %1, %cst {dimension_numbers = #tpu.dot_dimension_numbers<[1], [0], [0], [1], [0, 0, 1, 1], [], []>} : vector<344x147xbf16>, vector<147x32xbf16>, vector<344x32xf32> -> vector<344x32xf32>
    %c0_3 = arith.constant 0 : index
    %c0_4 = arith.constant 0 : index
    %3 = vector.load %arg3[%c0_3, %c0_4] : memref<1x32xf32, #tpu.memory_space<vmem>>, vector<1x32xf32>
    %4 = vector.broadcast %3 : vector<1x32xf32> to vector<344x32xf32>
    %5 = arith.addf %2, %4 : vector<344x32xf32>
    %c0_5 = arith.constant 0 : index
    %c0_6 = arith.constant 0 : index
    %6 = vector.load %arg4[%c0_5, %c0_6] : memref<344x32xf32, #tpu.memory_space<vmem>>, vector<344x32xf32>
    tpu.vector_store %arg4[%c0_5, %c0_6], %5 {strides = array<i32>} : memref<344x32xf32, #tpu.memory_space<vmem>>, vector<344x32xf32>,
    return
  }
  func.func @transform_0(%arg0: i32) -> (i32, i32) {
    %c0_i32 = arith.constant 0 : i32
    %c0_i32_0 = arith.constant 0 : i32
    return %arg0, %c0_i32 : i32, i32
  }
  func.func @transform_1(%arg0: i32) -> (i32, i32) {
    %c0_i32 = arith.constant 0 : i32
    %c0_i32_0 = arith.constant 0 : i32
    %c0_i32_1 = arith.constant 0 : i32
    return %c0_i32, %c0_i32_0 : i32, i32
  }
  func.func @transform_2(%arg0: i32) -> (i32, i32) {
    %c0_i32 = arith.constant 0 : i32
    %c0_i32_0 = arith.constant 0 : i32
    %c0_i32_1 = arith.constant 0 : i32
    return %c0_i32, %c0_i32_0 : i32, i32
  }
  func.func @transform_3(%arg0: i32) -> (i32, i32) {
    %c0_i32 = arith.constant 0 : i32
    %c0_i32_0 = arith.constant 0 : i32
    return %arg0, %c0_i32 : i32, i32
  }
}

module attributes {stable_mosaic.version = 11 : i64} {
  func.func @_layernorm_kernel(%arg0: i32, %arg1: memref<72x32xf32, #tpu.memory_space<vmem>>, %arg2: memref<1x32xf32, #tpu.memory_space<vmem>>, %arg3: memref<1x32xf32, #tpu.memory_space<vmem>>, %arg4: memref<72x32xf32, #tpu.memory_space<vmem>>) attributes {dimension_semantics = [#tpu.dimension_semantics<parallel>], iteration_bounds = array<i64: 1>, scalar_prefetch = 0 : i64, scratch_operands = 0 : i64, tpu.core_type = #tpu.core_type<tc>, window_params = [{transform_indices = @transform_0, window_bounds = array<i64: 72, 32>}, {pipeline_mode = #tpu.pipeline_mode<synchronous>, transform_indices = @transform_1, window_bounds = array<i64: 1, 32>}, {pipeline_mode = #tpu.pipeline_mode<synchronous>, transform_indices = @transform_2, window_bounds = array<i64: 1, 32>}, {transform_indices = @transform_3, window_bounds = array<i64: 72, 32>}]} {
    %c0 = arith.constant 0 : index
    %c0_0 = arith.constant 0 : index
    %0 = vector.load %arg1[%c0, %c0_0] : memref<72x32xf32, #tpu.memory_space<vmem>>, vector<72x32xf32>
    %cst = arith.constant dense<0.000000e+00> : vector<72xf32>
    %1 = vector.multi_reduction <add>, %0, %cst [1] : vector<72x32xf32> to vector<72xf32>
    %2 = vector.shape_cast %1 : vector<72xf32> to vector<72x1xf32>
    %cst_1 = arith.constant 3.200000e+01 : f32
    %3 = vector.broadcast %cst_1 : f32 to vector<72x1xf32>
    %4 = arith.divf %2, %3 : vector<72x1xf32>
    %5 = vector.broadcast %4 : vector<72x1xf32> to vector<72x32xf32>
    %6 = arith.subf %0, %5 : vector<72x32xf32>
    %7 = arith.mulf %6, %6 : vector<72x32xf32>
    %cst_2 = arith.constant dense<0.000000e+00> : vector<72xf32>
    %8 = vector.multi_reduction <add>, %7, %cst_2 [1] : vector<72x32xf32> to vector<72xf32>
    %9 = vector.shape_cast %8 : vector<72xf32> to vector<72x1xf32>
    %cst_3 = arith.constant 3.200000e+01 : f32
    %10 = vector.broadcast %cst_3 : f32 to vector<72x1xf32>
    %11 = arith.divf %9, %10 : vector<72x1xf32>
    %cst_4 = arith.constant 9.99999997E-7 : f32
    %12 = vector.broadcast %cst_4 : f32 to vector<72x1xf32>
    %13 = arith.addf %11, %12 : vector<72x1xf32>
    %14 = math.rsqrt %13 : vector<72x1xf32>
    %15 = vector.broadcast %14 : vector<72x1xf32> to vector<72x32xf32>
    %16 = arith.mulf %6, %15 : vector<72x32xf32>
    %c0_5 = arith.constant 0 : index
    %c0_6 = arith.constant 0 : index
    %17 = vector.load %arg2[%c0_5, %c0_6] : memref<1x32xf32, #tpu.memory_space<vmem>>, vector<1x32xf32>
    %18 = vector.broadcast %17 : vector<1x32xf32> to vector<72x32xf32>
    %19 = arith.mulf %16, %18 : vector<72x32xf32>
    %c0_7 = arith.constant 0 : index
    %c0_8 = arith.constant 0 : index
    %20 = vector.load %arg3[%c0_7, %c0_8] : memref<1x32xf32, #tpu.memory_space<vmem>>, vector<1x32xf32>
    %21 = vector.broadcast %20 : vector<1x32xf32> to vector<72x32xf32>
    %22 = arith.addf %19, %21 : vector<72x32xf32>
    %c0_9 = arith.constant 0 : index
    %c0_10 = arith.constant 0 : index
    %23 = vector.load %arg4[%c0_9, %c0_10] : memref<72x32xf32, #tpu.memory_space<vmem>>, vector<72x32xf32>
    tpu.vector_store %arg4[%c0_9, %c0_10], %22 {strides = array<i32>} : memref<72x32xf32, #tpu.memory_space<vmem>>, vector<72x32xf32>,
    return
  }
  func.func @transform_0(%arg0: i32) -> (i32, i32) {
    %c0_i32 = arith.constant 0 : i32
    %c0_i32_0 = arith.constant 0 : i32
    return %arg0, %c0_i32 : i32, i32
  }
  func.func @transform_1(%arg0: i32) -> (i32, i32) {
    %c0_i32 = arith.constant 0 : i32
    %c0_i32_0 = arith.constant 0 : i32
    %c0_i32_1 = arith.constant 0 : i32
    return %c0_i32, %c0_i32_0 : i32, i32
  }
  func.func @transform_2(%arg0: i32) -> (i32, i32) {
    %c0_i32 = arith.constant 0 : i32
    %c0_i32_0 = arith.constant 0 : i32
    %c0_i32_1 = arith.constant 0 : i32
    return %c0_i32, %c0_i32_0 : i32, i32
  }
  func.func @transform_3(%arg0: i32) -> (i32, i32) {
    %c0_i32 = arith.constant 0 : i32
    %c0_i32_0 = arith.constant 0 : i32
    return %arg0, %c0_i32 : i32, i32
  }
}

module attributes {stable_mosaic.version = 11 : i64} {
  func.func @_wgen_kernel(%arg0: i32, %arg1: memref<72x32xbf16, #tpu.memory_space<vmem>>, %arg2: memref<32x8xbf16, #tpu.memory_space<vmem>>, %arg3: memref<1x8xf32, #tpu.memory_space<vmem>>, %arg4: memref<8x18xbf16, #tpu.memory_space<vmem>>, %arg5: memref<1x18xf32, #tpu.memory_space<vmem>>, %arg6: memref<72x18xf32, #tpu.memory_space<vmem>>) attributes {dimension_semantics = [#tpu.dimension_semantics<parallel>], iteration_bounds = array<i64: 1>, scalar_prefetch = 0 : i64, scratch_operands = 0 : i64, tpu.core_type = #tpu.core_type<tc>, window_params = [{transform_indices = @transform_0, window_bounds = array<i64: 72, 32>}, {pipeline_mode = #tpu.pipeline_mode<synchronous>, transform_indices = @transform_1, window_bounds = array<i64: 32, 8>}, {pipeline_mode = #tpu.pipeline_mode<synchronous>, transform_indices = @transform_2, window_bounds = array<i64: 1, 8>}, {pipeline_mode = #tpu.pipeline_mode<synchronous>, transform_indices = @transform_3, window_bounds = array<i64: 8, 18>}, {pipeline_mode = #tpu.pipeline_mode<synchronous>, transform_indices = @transform_4, window_bounds = array<i64: 1, 18>}, {transform_indices = @transform_5, window_bounds = array<i64: 72, 18>}]} {
    %c0 = arith.constant 0 : index
    %c0_0 = arith.constant 0 : index
    %0 = vector.load %arg1[%c0, %c0_0] : memref<72x32xbf16, #tpu.memory_space<vmem>>, vector<72x32xbf16>
    %c0_1 = arith.constant 0 : index
    %c0_2 = arith.constant 0 : index
    %1 = vector.load %arg2[%c0_1, %c0_2] : memref<32x8xbf16, #tpu.memory_space<vmem>>, vector<32x8xbf16>
    %cst = arith.constant dense<0.000000e+00> : vector<72x8xf32>
    %2 = tpu.matmul %0, %1, %cst {dimension_numbers = #tpu.dot_dimension_numbers<[1], [0], [0], [1], [0, 0, 1, 1], [], []>} : vector<72x32xbf16>, vector<32x8xbf16>, vector<72x8xf32> -> vector<72x8xf32>
    %c0_3 = arith.constant 0 : index
    %c0_4 = arith.constant 0 : index
    %3 = vector.load %arg3[%c0_3, %c0_4] : memref<1x8xf32, #tpu.memory_space<vmem>>, vector<1x8xf32>
    %4 = vector.broadcast %3 : vector<1x8xf32> to vector<72x8xf32>
    %5 = arith.addf %2, %4 : vector<72x8xf32>
    %cst_5 = arith.constant 0.000000e+00 : f32
    %6 = vector.broadcast %cst_5 : f32 to vector<72x8xf32>
    %7 = arith.maximumf %5, %6 : vector<72x8xf32>
    %8 = arith.truncf %7 : vector<72x8xf32> to vector<72x8xbf16>
    %c0_6 = arith.constant 0 : index
    %c0_7 = arith.constant 0 : index
    %9 = vector.load %arg4[%c0_6, %c0_7] : memref<8x18xbf16, #tpu.memory_space<vmem>>, vector<8x18xbf16>
    %cst_8 = arith.constant dense<0.000000e+00> : vector<72x18xf32>
    %10 = tpu.matmul %8, %9, %cst_8 {dimension_numbers = #tpu.dot_dimension_numbers<[1], [0], [0], [1], [0, 0, 1, 1], [], []>} : vector<72x8xbf16>, vector<8x18xbf16>, vector<72x18xf32> -> vector<72x18xf32>
    %c0_9 = arith.constant 0 : index
    %c0_10 = arith.constant 0 : index
    %11 = vector.load %arg5[%c0_9, %c0_10] : memref<1x18xf32, #tpu.memory_space<vmem>>, vector<1x18xf32>
    %12 = vector.broadcast %11 : vector<1x18xf32> to vector<72x18xf32>
    %13 = arith.addf %10, %12 : vector<72x18xf32>
    %c0_11 = arith.constant 0 : index
    %c0_12 = arith.constant 0 : index
    %14 = vector.load %arg6[%c0_11, %c0_12] : memref<72x18xf32, #tpu.memory_space<vmem>>, vector<72x18xf32>
    tpu.vector_store %arg6[%c0_11, %c0_12], %13 {strides = array<i32>} : memref<72x18xf32, #tpu.memory_space<vmem>>, vector<72x18xf32>,
    return
  }
  func.func @transform_0(%arg0: i32) -> (i32, i32) {
    %c0_i32 = arith.constant 0 : i32
    %c0_i32_0 = arith.constant 0 : i32
    return %arg0, %c0_i32 : i32, i32
  }
  func.func @transform_1(%arg0: i32) -> (i32, i32) {
    %c0_i32 = arith.constant 0 : i32
    %c0_i32_0 = arith.constant 0 : i32
    %c0_i32_1 = arith.constant 0 : i32
    return %c0_i32, %c0_i32_0 : i32, i32
  }
  func.func @transform_2(%arg0: i32) -> (i32, i32) {
    %c0_i32 = arith.constant 0 : i32
    %c0_i32_0 = arith.constant 0 : i32
    %c0_i32_1 = arith.constant 0 : i32
    return %c0_i32, %c0_i32_0 : i32, i32
  }
  func.func @transform_3(%arg0: i32) -> (i32, i32) {
    %c0_i32 = arith.constant 0 : i32
    %c0_i32_0 = arith.constant 0 : i32
    %c0_i32_1 = arith.constant 0 : i32
    return %c0_i32, %c0_i32_0 : i32, i32
  }
  func.func @transform_4(%arg0: i32) -> (i32, i32) {
    %c0_i32 = arith.constant 0 : i32
    %c0_i32_0 = arith.constant 0 : i32
    %c0_i32_1 = arith.constant 0 : i32
    return %c0_i32, %c0_i32_0 : i32, i32
  }
  func.func @transform_5(%arg0: i32) -> (i32, i32) {
    %c0_i32 = arith.constant 0 : i32
    %c0_i32_0 = arith.constant 0 : i32
    return %arg0, %c0_i32 : i32, i32
  }
}

module attributes {stable_mosaic.version = 11 : i64} {
  func.func @_inv_mix_kernel(%arg0: i32, %arg1: memref<1x16x8x8xf32, #tpu.memory_space<vmem>>, %arg2: memref<1x9x6x6xf32, #tpu.memory_space<vmem>>, %arg3: memref<1x16x6x6xf32, #tpu.memory_space<vmem>>) attributes {dimension_semantics = [#tpu.dimension_semantics<parallel>], iteration_bounds = array<i64: 4>, scalar_prefetch = 0 : i64, scratch_operands = 0 : i64, tpu.core_type = #tpu.core_type<tc>, window_params = [{transform_indices = @transform_0, window_bounds = array<i64: 1, 16, 8, 8>}, {transform_indices = @transform_1, window_bounds = array<i64: 1, 9, 6, 6>}, {transform_indices = @transform_2, window_bounds = array<i64: 1, 16, 6, 6>}]} {
    %c0 = arith.constant 0 : index
    %c0_0 = arith.constant 0 : index
    %c0_1 = arith.constant 0 : index
    %c0_2 = arith.constant 0 : index
    %0 = vector.load %arg1[%c0, %c0_0, %c0_1, %c0_2] : memref<1x16x8x8xf32, #tpu.memory_space<vmem>>, vector<1x16x8x8xf32>
    %c0_3 = arith.constant 0 : index
    %c0_4 = arith.constant 0 : index
    %c0_5 = arith.constant 0 : index
    %c0_6 = arith.constant 0 : index
    %1 = vector.load %arg2[%c0_3, %c0_4, %c0_5, %c0_6] : memref<1x9x6x6xf32, #tpu.memory_space<vmem>>, vector<1x9x6x6xf32>
    %cst = arith.constant 0.000000e+00 : f32
    %2 = vector.broadcast %cst : f32 to vector<1x16x6x6xf32>
    %3 = vector.extract_strided_slice %0 {offsets = [0, 0, 0, 0], sizes = [1, 16, 6, 6], strides = [1, 1, 1, 1]} : vector<1x16x8x8xf32> to vector<1x16x6x6xf32>
    %4 = vector.extract_strided_slice %1 {offsets = [0, 0, 0, 0], sizes = [1, 1, 6, 6], strides = [1, 1, 1, 1]} : vector<1x9x6x6xf32> to vector<1x1x6x6xf32>
    %5 = vector.broadcast %4 : vector<1x1x6x6xf32> to vector<1x16x6x6xf32>
    %6 = arith.mulf %3, %5 : vector<1x16x6x6xf32>
    %7 = arith.addf %2, %6 : vector<1x16x6x6xf32>
    %8 = vector.extract_strided_slice %0 {offsets = [0, 0, 0, 1], sizes = [1, 16, 6, 6], strides = [1, 1, 1, 1]} : vector<1x16x8x8xf32> to vector<1x16x6x6xf32>
    %9 = vector.extract_strided_slice %1 {offsets = [0, 1, 0, 0], sizes = [1, 1, 6, 6], strides = [1, 1, 1, 1]} : vector<1x9x6x6xf32> to vector<1x1x6x6xf32>
    %10 = vector.broadcast %9 : vector<1x1x6x6xf32> to vector<1x16x6x6xf32>
    %11 = arith.mulf %8, %10 : vector<1x16x6x6xf32>
    %12 = arith.addf %7, %11 : vector<1x16x6x6xf32>
    %13 = vector.extract_strided_slice %0 {offsets = [0, 0, 0, 2], sizes = [1, 16, 6, 6], strides = [1, 1, 1, 1]} : vector<1x16x8x8xf32> to vector<1x16x6x6xf32>
    %14 = vector.extract_strided_slice %1 {offsets = [0, 2, 0, 0], sizes = [1, 1, 6, 6], strides = [1, 1, 1, 1]} : vector<1x9x6x6xf32> to vector<1x1x6x6xf32>
    %15 = vector.broadcast %14 : vector<1x1x6x6xf32> to vector<1x16x6x6xf32>
    %16 = arith.mulf %13, %15 : vector<1x16x6x6xf32>
    %17 = arith.addf %12, %16 : vector<1x16x6x6xf32>
    %18 = vector.extract_strided_slice %0 {offsets = [0, 0, 1, 0], sizes = [1, 16, 6, 6], strides = [1, 1, 1, 1]} : vector<1x16x8x8xf32> to vector<1x16x6x6xf32>
    %19 = vector.extract_strided_slice %1 {offsets = [0, 3, 0, 0], sizes = [1, 1, 6, 6], strides = [1, 1, 1, 1]} : vector<1x9x6x6xf32> to vector<1x1x6x6xf32>
    %20 = vector.broadcast %19 : vector<1x1x6x6xf32> to vector<1x16x6x6xf32>
    %21 = arith.mulf %18, %20 : vector<1x16x6x6xf32>
    %22 = arith.addf %17, %21 : vector<1x16x6x6xf32>
    %23 = vector.extract_strided_slice %0 {offsets = [0, 0, 1, 1], sizes = [1, 16, 6, 6], strides = [1, 1, 1, 1]} : vector<1x16x8x8xf32> to vector<1x16x6x6xf32>
    %24 = vector.extract_strided_slice %1 {offsets = [0, 4, 0, 0], sizes = [1, 1, 6, 6], strides = [1, 1, 1, 1]} : vector<1x9x6x6xf32> to vector<1x1x6x6xf32>
    %25 = vector.broadcast %24 : vector<1x1x6x6xf32> to vector<1x16x6x6xf32>
    %26 = arith.mulf %23, %25 : vector<1x16x6x6xf32>
    %27 = arith.addf %22, %26 : vector<1x16x6x6xf32>
    %28 = vector.extract_strided_slice %0 {offsets = [0, 0, 1, 2], sizes = [1, 16, 6, 6], strides = [1, 1, 1, 1]} : vector<1x16x8x8xf32> to vector<1x16x6x6xf32>
    %29 = vector.extract_strided_slice %1 {offsets = [0, 5, 0, 0], sizes = [1, 1, 6, 6], strides = [1, 1, 1, 1]} : vector<1x9x6x6xf32> to vector<1x1x6x6xf32>
    %30 = vector.broadcast %29 : vector<1x1x6x6xf32> to vector<1x16x6x6xf32>
    %31 = arith.mulf %28, %30 : vector<1x16x6x6xf32>
    %32 = arith.addf %27, %31 : vector<1x16x6x6xf32>
    %33 = vector.extract_strided_slice %0 {offsets = [0, 0, 2, 0], sizes = [1, 16, 6, 6], strides = [1, 1, 1, 1]} : vector<1x16x8x8xf32> to vector<1x16x6x6xf32>
    %34 = vector.extract_strided_slice %1 {offsets = [0, 6, 0, 0], sizes = [1, 1, 6, 6], strides = [1, 1, 1, 1]} : vector<1x9x6x6xf32> to vector<1x1x6x6xf32>
    %35 = vector.broadcast %34 : vector<1x1x6x6xf32> to vector<1x16x6x6xf32>
    %36 = arith.mulf %33, %35 : vector<1x16x6x6xf32>
    %37 = arith.addf %32, %36 : vector<1x16x6x6xf32>
    %38 = vector.extract_strided_slice %0 {offsets = [0, 0, 2, 1], sizes = [1, 16, 6, 6], strides = [1, 1, 1, 1]} : vector<1x16x8x8xf32> to vector<1x16x6x6xf32>
    %39 = vector.extract_strided_slice %1 {offsets = [0, 7, 0, 0], sizes = [1, 1, 6, 6], strides = [1, 1, 1, 1]} : vector<1x9x6x6xf32> to vector<1x1x6x6xf32>
    %40 = vector.broadcast %39 : vector<1x1x6x6xf32> to vector<1x16x6x6xf32>
    %41 = arith.mulf %38, %40 : vector<1x16x6x6xf32>
    %42 = arith.addf %37, %41 : vector<1x16x6x6xf32>
    %43 = vector.extract_strided_slice %0 {offsets = [0, 0, 2, 2], sizes = [1, 16, 6, 6], strides = [1, 1, 1, 1]} : vector<1x16x8x8xf32> to vector<1x16x6x6xf32>
    %44 = vector.extract_strided_slice %1 {offsets = [0, 8, 0, 0], sizes = [1, 1, 6, 6], strides = [1, 1, 1, 1]} : vector<1x9x6x6xf32> to vector<1x1x6x6xf32>
    %45 = vector.broadcast %44 : vector<1x1x6x6xf32> to vector<1x16x6x6xf32>
    %46 = arith.mulf %43, %45 : vector<1x16x6x6xf32>
    %47 = arith.addf %42, %46 : vector<1x16x6x6xf32>
    %c0_7 = arith.constant 0 : index
    %c0_8 = arith.constant 0 : index
    %c0_9 = arith.constant 0 : index
    %c0_10 = arith.constant 0 : index
    %48 = vector.load %arg3[%c0_7, %c0_8, %c0_9, %c0_10] : memref<1x16x6x6xf32, #tpu.memory_space<vmem>>, vector<1x16x6x6xf32>
    tpu.vector_store %arg3[%c0_7, %c0_8, %c0_9, %c0_10], %47 {strides = array<i32>} : memref<1x16x6x6xf32, #tpu.memory_space<vmem>>, vector<1x16x6x6xf32>,
    return
  }
  func.func @transform_0(%arg0: i32) -> (i32, i32, i32, i32) {
    %c0_i32 = arith.constant 0 : i32
    %c0_i32_0 = arith.constant 0 : i32
    %c0_i32_1 = arith.constant 0 : i32
    %c0_i32_2 = arith.constant 0 : i32
    return %arg0, %c0_i32, %c0_i32_0, %c0_i32_1 : i32, i32, i32, i32
  }
  func.func @transform_1(%arg0: i32) -> (i32, i32, i32, i32) {
    %c0_i32 = arith.constant 0 : i32
    %c0_i32_0 = arith.constant 0 : i32
    %c0_i32_1 = arith.constant 0 : i32
    %c0_i32_2 = arith.constant 0 : i32
    return %arg0, %c0_i32, %c0_i32_0, %c0_i32_1 : i32, i32, i32, i32
  }
  func.func @transform_2(%arg0: i32) -> (i32, i32, i32, i32) {
    %c0_i32 = arith.constant 0 : i32
    %c0_i32_0 = arith.constant 0 : i32
    %c0_i32_1 = arith.constant 0 : i32
    %c0_i32_2 = arith.constant 0 : i32
    return %arg0, %c0_i32, %c0_i32_0, %c0_i32_1 : i32, i32, i32, i32
  }
}

module attributes {stable_mosaic.version = 11 : i64} {
  func.func @_block_tail_kernel(%arg0: i32, %arg1: memref<72x32xf32, #tpu.memory_space<vmem>>, %arg2: memref<72x32xf32, #tpu.memory_space<vmem>>, %arg3: memref<1x32xf32, #tpu.memory_space<vmem>>, %arg4: memref<1x32xf32, #tpu.memory_space<vmem>>, %arg5: memref<32x128xbf16, #tpu.memory_space<vmem>>, %arg6: memref<1x128xf32, #tpu.memory_space<vmem>>, %arg7: memref<128x32xbf16, #tpu.memory_space<vmem>>, %arg8: memref<1x32xf32, #tpu.memory_space<vmem>>, %arg9: memref<1x32xf32, #tpu.memory_space<vmem>>, %arg10: memref<1x32xf32, #tpu.memory_space<vmem>>, %arg11: memref<72x32xf32, #tpu.memory_space<vmem>>) attributes {dimension_semantics = [#tpu.dimension_semantics<parallel>], iteration_bounds = array<i64: 1>, scalar_prefetch = 0 : i64, scratch_operands = 0 : i64, tpu.core_type = #tpu.core_type<tc>, window_params = [{transform_indices = @transform_0, window_bounds = array<i64: 72, 32>}, {transform_indices = @transform_1, window_bounds = array<i64: 72, 32>}, {pipeline_mode = #tpu.pipeline_mode<synchronous>, transform_indices = @transform_2, window_bounds = array<i64: 1, 32>}, {pipeline_mode = #tpu.pipeline_mode<synchronous>, transform_indices = @transform_3, window_bounds = array<i64: 1, 32>}, {pipeline_mode = #tpu.pipeline_mode<synchronous>, transform_indices = @transform_4, window_bounds = array<i64: 32, 128>}, {pipeline_mode = #tpu.pipeline_mode<synchronous>, transform_indices = @transform_5, window_bounds = array<i64: 1, 128>}, {pipeline_mode = #tpu.pipeline_mode<synchronous>, transform_indices = @transform_6, window_bounds = array<i64: 128, 32>}, {pipeline_mode = #tpu.pipeline_mode<synchronous>, transform_indices = @transform_7, window_bounds = array<i64: 1, 32>}, {pipeline_mode = #tpu.pipeline_mode<synchronous>, transform_indices = @transform_8, window_bounds = array<i64: 1, 32>}, {pipeline_mode = #tpu.pipeline_mode<synchronous>, transform_indices = @transform_9, window_bounds = array<i64: 1, 32>}, {transform_indices = @transform_10, window_bounds = array<i64: 72, 32>}]} {
    %c0 = arith.constant 0 : index
    %c0_0 = arith.constant 0 : index
    %0 = vector.load %arg1[%c0, %c0_0] : memref<72x32xf32, #tpu.memory_space<vmem>>, vector<72x32xf32>
    %cst = arith.constant dense<0.000000e+00> : vector<72xf32>
    %1 = vector.multi_reduction <add>, %0, %cst [1] : vector<72x32xf32> to vector<72xf32>
    %2 = vector.shape_cast %1 : vector<72xf32> to vector<72x1xf32>
    %cst_1 = arith.constant 3.200000e+01 : f32
    %3 = vector.broadcast %cst_1 : f32 to vector<72x1xf32>
    %4 = arith.divf %2, %3 : vector<72x1xf32>
    %5 = vector.broadcast %4 : vector<72x1xf32> to vector<72x32xf32>
    %6 = arith.subf %0, %5 : vector<72x32xf32>
    %7 = arith.mulf %6, %6 : vector<72x32xf32>
    %cst_2 = arith.constant dense<0.000000e+00> : vector<72xf32>
    %8 = vector.multi_reduction <add>, %7, %cst_2 [1] : vector<72x32xf32> to vector<72xf32>
    %9 = vector.shape_cast %8 : vector<72xf32> to vector<72x1xf32>
    %cst_3 = arith.constant 3.200000e+01 : f32
    %10 = vector.broadcast %cst_3 : f32 to vector<72x1xf32>
    %11 = arith.divf %9, %10 : vector<72x1xf32>
    %cst_4 = arith.constant 9.99999997E-7 : f32
    %12 = vector.broadcast %cst_4 : f32 to vector<72x1xf32>
    %13 = arith.addf %11, %12 : vector<72x1xf32>
    %14 = math.rsqrt %13 : vector<72x1xf32>
    %15 = vector.broadcast %14 : vector<72x1xf32> to vector<72x32xf32>
    %16 = arith.mulf %6, %15 : vector<72x32xf32>
    %c0_5 = arith.constant 0 : index
    %c0_6 = arith.constant 0 : index
    %17 = vector.load %arg3[%c0_5, %c0_6] : memref<1x32xf32, #tpu.memory_space<vmem>>, vector<1x32xf32>
    %18 = vector.broadcast %17 : vector<1x32xf32> to vector<72x32xf32>
    %19 = arith.mulf %16, %18 : vector<72x32xf32>
    %c0_7 = arith.constant 0 : index
    %c0_8 = arith.constant 0 : index
    %20 = vector.load %arg4[%c0_7, %c0_8] : memref<1x32xf32, #tpu.memory_space<vmem>>, vector<1x32xf32>
    %21 = vector.broadcast %20 : vector<1x32xf32> to vector<72x32xf32>
    %22 = arith.addf %19, %21 : vector<72x32xf32>
    %23 = arith.truncf %22 : vector<72x32xf32> to vector<72x32xbf16>
    %c0_9 = arith.constant 0 : index
    %c0_10 = arith.constant 0 : index
    %24 = vector.load %arg5[%c0_9, %c0_10] : memref<32x128xbf16, #tpu.memory_space<vmem>>, vector<32x128xbf16>
    %cst_11 = arith.constant dense<0.000000e+00> : vector<72x128xf32>
    %25 = tpu.matmul %23, %24, %cst_11 {dimension_numbers = #tpu.dot_dimension_numbers<[1], [0], [0], [1], [0, 0, 1, 1], [], []>} : vector<72x32xbf16>, vector<32x128xbf16>, vector<72x128xf32> -> vector<72x128xf32>
    %c0_12 = arith.constant 0 : index
    %c0_13 = arith.constant 0 : index
    %26 = vector.load %arg6[%c0_12, %c0_13] : memref<1x128xf32, #tpu.memory_space<vmem>>, vector<1x128xf32>
    %27 = vector.broadcast %26 : vector<1x128xf32> to vector<72x128xf32>
    %28 = arith.addf %25, %27 : vector<72x128xf32>
    %cst_14 = arith.constant 5.000000e-01 : f32
    %29 = vector.broadcast %cst_14 : f32 to vector<72x128xf32>
    %30 = arith.mulf %29, %28 : vector<72x128xf32>
    %cst_15 = arith.constant 4.471500e-02 : f32
    %31 = vector.broadcast %cst_15 : f32 to vector<72x128xf32>
    %32 = arith.mulf %31, %28 : vector<72x128xf32>
    %33 = arith.mulf %32, %28 : vector<72x128xf32>
    %34 = arith.mulf %33, %28 : vector<72x128xf32>
    %35 = arith.addf %28, %34 : vector<72x128xf32>
    %cst_16 = arith.constant 0.797884583 : f32
    %36 = vector.broadcast %cst_16 : f32 to vector<72x128xf32>
    %37 = arith.mulf %36, %35 : vector<72x128xf32>
    %38 = math.tanh %37 : vector<72x128xf32>
    %cst_17 = arith.constant 1.000000e+00 : f32
    %39 = vector.broadcast %cst_17 : f32 to vector<72x128xf32>
    %40 = arith.addf %39, %38 : vector<72x128xf32>
    %41 = arith.mulf %30, %40 : vector<72x128xf32>
    %42 = arith.truncf %41 : vector<72x128xf32> to vector<72x128xbf16>
    %c0_18 = arith.constant 0 : index
    %c0_19 = arith.constant 0 : index
    %43 = vector.load %arg7[%c0_18, %c0_19] : memref<128x32xbf16, #tpu.memory_space<vmem>>, vector<128x32xbf16>
    %cst_20 = arith.constant dense<0.000000e+00> : vector<72x32xf32>
    %44 = tpu.matmul %42, %43, %cst_20 {dimension_numbers = #tpu.dot_dimension_numbers<[1], [0], [0], [1], [0, 0, 1, 1], [], []>} : vector<72x128xbf16>, vector<128x32xbf16>, vector<72x32xf32> -> vector<72x32xf32>
    %c0_21 = arith.constant 0 : index
    %c0_22 = arith.constant 0 : index
    %45 = vector.load %arg8[%c0_21, %c0_22] : memref<1x32xf32, #tpu.memory_space<vmem>>, vector<1x32xf32>
    %46 = vector.broadcast %45 : vector<1x32xf32> to vector<72x32xf32>
    %47 = arith.addf %44, %46 : vector<72x32xf32>
    %c0_23 = arith.constant 0 : index
    %c0_24 = arith.constant 0 : index
    %48 = vector.load %arg2[%c0_23, %c0_24] : memref<72x32xf32, #tpu.memory_space<vmem>>, vector<72x32xf32>
    %49 = arith.addf %47, %48 : vector<72x32xf32>
    %cst_25 = arith.constant dense<0.000000e+00> : vector<72xf32>
    %50 = vector.multi_reduction <add>, %49, %cst_25 [1] : vector<72x32xf32> to vector<72xf32>
    %51 = vector.shape_cast %50 : vector<72xf32> to vector<72x1xf32>
    %cst_26 = arith.constant 3.200000e+01 : f32
    %52 = vector.broadcast %cst_26 : f32 to vector<72x1xf32>
    %53 = arith.divf %51, %52 : vector<72x1xf32>
    %54 = vector.broadcast %53 : vector<72x1xf32> to vector<72x32xf32>
    %55 = arith.subf %49, %54 : vector<72x32xf32>
    %56 = arith.mulf %55, %55 : vector<72x32xf32>
    %cst_27 = arith.constant dense<0.000000e+00> : vector<72xf32>
    %57 = vector.multi_reduction <add>, %56, %cst_27 [1] : vector<72x32xf32> to vector<72xf32>
    %58 = vector.shape_cast %57 : vector<72xf32> to vector<72x1xf32>
    %cst_28 = arith.constant 3.200000e+01 : f32
    %59 = vector.broadcast %cst_28 : f32 to vector<72x1xf32>
    %60 = arith.divf %58, %59 : vector<72x1xf32>
    %cst_29 = arith.constant 9.99999997E-7 : f32
    %61 = vector.broadcast %cst_29 : f32 to vector<72x1xf32>
    %62 = arith.addf %60, %61 : vector<72x1xf32>
    %63 = math.rsqrt %62 : vector<72x1xf32>
    %64 = vector.broadcast %63 : vector<72x1xf32> to vector<72x32xf32>
    %65 = arith.mulf %55, %64 : vector<72x32xf32>
    %c0_30 = arith.constant 0 : index
    %c0_31 = arith.constant 0 : index
    %66 = vector.load %arg9[%c0_30, %c0_31] : memref<1x32xf32, #tpu.memory_space<vmem>>, vector<1x32xf32>
    %67 = vector.broadcast %66 : vector<1x32xf32> to vector<72x32xf32>
    %68 = arith.mulf %65, %67 : vector<72x32xf32>
    %c0_32 = arith.constant 0 : index
    %c0_33 = arith.constant 0 : index
    %69 = vector.load %arg10[%c0_32, %c0_33] : memref<1x32xf32, #tpu.memory_space<vmem>>, vector<1x32xf32>
    %70 = vector.broadcast %69 : vector<1x32xf32> to vector<72x32xf32>
    %71 = arith.addf %68, %70 : vector<72x32xf32>
    %c0_34 = arith.constant 0 : index
    %c0_35 = arith.constant 0 : index
    %72 = vector.load %arg11[%c0_34, %c0_35] : memref<72x32xf32, #tpu.memory_space<vmem>>, vector<72x32xf32>
    tpu.vector_store %arg11[%c0_34, %c0_35], %71 {strides = array<i32>} : memref<72x32xf32, #tpu.memory_space<vmem>>, vector<72x32xf32>,
    return
  }
  func.func @transform_0(%arg0: i32) -> (i32, i32) {
    %c0_i32 = arith.constant 0 : i32
    %c0_i32_0 = arith.constant 0 : i32
    return %arg0, %c0_i32 : i32, i32
  }
  func.func @transform_1(%arg0: i32) -> (i32, i32) {
    %c0_i32 = arith.constant 0 : i32
    %c0_i32_0 = arith.constant 0 : i32
    return %arg0, %c0_i32 : i32, i32
  }
  func.func @transform_2(%arg0: i32) -> (i32, i32) {
    %c0_i32 = arith.constant 0 : i32
    %c0_i32_0 = arith.constant 0 : i32
    %c0_i32_1 = arith.constant 0 : i32
    return %c0_i32, %c0_i32_0 : i32, i32
  }
  func.func @transform_3(%arg0: i32) -> (i32, i32) {
    %c0_i32 = arith.constant 0 : i32
    %c0_i32_0 = arith.constant 0 : i32
    %c0_i32_1 = arith.constant 0 : i32
    return %c0_i32, %c0_i32_0 : i32, i32
  }
  func.func @transform_4(%arg0: i32) -> (i32, i32) {
    %c0_i32 = arith.constant 0 : i32
    %c0_i32_0 = arith.constant 0 : i32
    %c0_i32_1 = arith.constant 0 : i32
    return %c0_i32, %c0_i32_0 : i32, i32
  }
  func.func @transform_5(%arg0: i32) -> (i32, i32) {
    %c0_i32 = arith.constant 0 : i32
    %c0_i32_0 = arith.constant 0 : i32
    %c0_i32_1 = arith.constant 0 : i32
    return %c0_i32, %c0_i32_0 : i32, i32
  }
  func.func @transform_6(%arg0: i32) -> (i32, i32) {
    %c0_i32 = arith.constant 0 : i32
    %c0_i32_0 = arith.constant 0 : i32
    %c0_i32_1 = arith.constant 0 : i32
    return %c0_i32, %c0_i32_0 : i32, i32
  }
  func.func @transform_7(%arg0: i32) -> (i32, i32) {
    %c0_i32 = arith.constant 0 : i32
    %c0_i32_0 = arith.constant 0 : i32
    %c0_i32_1 = arith.constant 0 : i32
    return %c0_i32, %c0_i32_0 : i32, i32
  }
  func.func @transform_8(%arg0: i32) -> (i32, i32) {
    %c0_i32 = arith.constant 0 : i32
    %c0_i32_0 = arith.constant 0 : i32
    %c0_i32_1 = arith.constant 0 : i32
    return %c0_i32, %c0_i32_0 : i32, i32
  }
  func.func @transform_9(%arg0: i32) -> (i32, i32) {
    %c0_i32 = arith.constant 0 : i32
    %c0_i32_0 = arith.constant 0 : i32
    %c0_i32_1 = arith.constant 0 : i32
    return %c0_i32, %c0_i32_0 : i32, i32
  }
  func.func @transform_10(%arg0: i32) -> (i32, i32) {
    %c0_i32 = arith.constant 0 : i32
    %c0_i32_0 = arith.constant 0 : i32
    return %arg0, %c0_i32 : i32, i32
  }
}

module attributes {stable_mosaic.version = 11 : i64} {
  func.func @_matmul_bias_kernel(%arg0: i32, %arg1: memref<8x288xbf16, #tpu.memory_space<vmem>>, %arg2: memref<288x64xbf16, #tpu.memory_space<vmem>>, %arg3: memref<1x64xf32, #tpu.memory_space<vmem>>, %arg4: memref<8x64xf32, #tpu.memory_space<vmem>>) attributes {dimension_semantics = [#tpu.dimension_semantics<parallel>], iteration_bounds = array<i64: 1>, scalar_prefetch = 0 : i64, scratch_operands = 0 : i64, tpu.core_type = #tpu.core_type<tc>, window_params = [{transform_indices = @transform_0, window_bounds = array<i64: 8, 288>}, {pipeline_mode = #tpu.pipeline_mode<synchronous>, transform_indices = @transform_1, window_bounds = array<i64: 288, 64>}, {pipeline_mode = #tpu.pipeline_mode<synchronous>, transform_indices = @transform_2, window_bounds = array<i64: 1, 64>}, {transform_indices = @transform_3, window_bounds = array<i64: 8, 64>}]} {
    %c0 = arith.constant 0 : index
    %c0_0 = arith.constant 0 : index
    %0 = vector.load %arg1[%c0, %c0_0] : memref<8x288xbf16, #tpu.memory_space<vmem>>, vector<8x288xbf16>
    %c0_1 = arith.constant 0 : index
    %c0_2 = arith.constant 0 : index
    %1 = vector.load %arg2[%c0_1, %c0_2] : memref<288x64xbf16, #tpu.memory_space<vmem>>, vector<288x64xbf16>
    %cst = arith.constant dense<0.000000e+00> : vector<8x64xf32>
    %2 = tpu.matmul %0, %1, %cst {dimension_numbers = #tpu.dot_dimension_numbers<[1], [0], [0], [1], [0, 0, 1, 1], [], []>} : vector<8x288xbf16>, vector<288x64xbf16>, vector<8x64xf32> -> vector<8x64xf32>
    %c0_3 = arith.constant 0 : index
    %c0_4 = arith.constant 0 : index
    %3 = vector.load %arg3[%c0_3, %c0_4] : memref<1x64xf32, #tpu.memory_space<vmem>>, vector<1x64xf32>
    %4 = vector.broadcast %3 : vector<1x64xf32> to vector<8x64xf32>
    %5 = arith.addf %2, %4 : vector<8x64xf32>
    %c0_5 = arith.constant 0 : index
    %c0_6 = arith.constant 0 : index
    %6 = vector.load %arg4[%c0_5, %c0_6] : memref<8x64xf32, #tpu.memory_space<vmem>>, vector<8x64xf32>
    tpu.vector_store %arg4[%c0_5, %c0_6], %5 {strides = array<i32>} : memref<8x64xf32, #tpu.memory_space<vmem>>, vector<8x64xf32>,
    return
  }
  func.func @transform_0(%arg0: i32) -> (i32, i32) {
    %c0_i32 = arith.constant 0 : i32
    %c0_i32_0 = arith.constant 0 : i32
    return %arg0, %c0_i32 : i32, i32
  }
  func.func @transform_1(%arg0: i32) -> (i32, i32) {
    %c0_i32 = arith.constant 0 : i32
    %c0_i32_0 = arith.constant 0 : i32
    %c0_i32_1 = arith.constant 0 : i32
    return %c0_i32, %c0_i32_0 : i32, i32
  }
  func.func @transform_2(%arg0: i32) -> (i32, i32) {
    %c0_i32 = arith.constant 0 : i32
    %c0_i32_0 = arith.constant 0 : i32
    %c0_i32_1 = arith.constant 0 : i32
    return %c0_i32, %c0_i32_0 : i32, i32
  }
  func.func @transform_3(%arg0: i32) -> (i32, i32) {
    %c0_i32 = arith.constant 0 : i32
    %c0_i32_0 = arith.constant 0 : i32
    return %arg0, %c0_i32 : i32, i32
  }
}

module attributes {stable_mosaic.version = 11 : i64} {
  func.func @_layernorm_kernel(%arg0: i32, %arg1: memref<8x64xf32, #tpu.memory_space<vmem>>, %arg2: memref<1x64xf32, #tpu.memory_space<vmem>>, %arg3: memref<1x64xf32, #tpu.memory_space<vmem>>, %arg4: memref<8x64xf32, #tpu.memory_space<vmem>>) attributes {dimension_semantics = [#tpu.dimension_semantics<parallel>], iteration_bounds = array<i64: 1>, scalar_prefetch = 0 : i64, scratch_operands = 0 : i64, tpu.core_type = #tpu.core_type<tc>, window_params = [{transform_indices = @transform_0, window_bounds = array<i64: 8, 64>}, {pipeline_mode = #tpu.pipeline_mode<synchronous>, transform_indices = @transform_1, window_bounds = array<i64: 1, 64>}, {pipeline_mode = #tpu.pipeline_mode<synchronous>, transform_indices = @transform_2, window_bounds = array<i64: 1, 64>}, {transform_indices = @transform_3, window_bounds = array<i64: 8, 64>}]} {
    %c0 = arith.constant 0 : index
    %c0_0 = arith.constant 0 : index
    %0 = vector.load %arg1[%c0, %c0_0] : memref<8x64xf32, #tpu.memory_space<vmem>>, vector<8x64xf32>
    %cst = arith.constant dense<0.000000e+00> : vector<8xf32>
    %1 = vector.multi_reduction <add>, %0, %cst [1] : vector<8x64xf32> to vector<8xf32>
    %2 = vector.shape_cast %1 : vector<8xf32> to vector<8x1xf32>
    %cst_1 = arith.constant 6.400000e+01 : f32
    %3 = vector.broadcast %cst_1 : f32 to vector<8x1xf32>
    %4 = arith.divf %2, %3 : vector<8x1xf32>
    %5 = vector.broadcast %4 : vector<8x1xf32> to vector<8x64xf32>
    %6 = arith.subf %0, %5 : vector<8x64xf32>
    %7 = arith.mulf %6, %6 : vector<8x64xf32>
    %cst_2 = arith.constant dense<0.000000e+00> : vector<8xf32>
    %8 = vector.multi_reduction <add>, %7, %cst_2 [1] : vector<8x64xf32> to vector<8xf32>
    %9 = vector.shape_cast %8 : vector<8xf32> to vector<8x1xf32>
    %cst_3 = arith.constant 6.400000e+01 : f32
    %10 = vector.broadcast %cst_3 : f32 to vector<8x1xf32>
    %11 = arith.divf %9, %10 : vector<8x1xf32>
    %cst_4 = arith.constant 9.99999997E-7 : f32
    %12 = vector.broadcast %cst_4 : f32 to vector<8x1xf32>
    %13 = arith.addf %11, %12 : vector<8x1xf32>
    %14 = math.rsqrt %13 : vector<8x1xf32>
    %15 = vector.broadcast %14 : vector<8x1xf32> to vector<8x64xf32>
    %16 = arith.mulf %6, %15 : vector<8x64xf32>
    %c0_5 = arith.constant 0 : index
    %c0_6 = arith.constant 0 : index
    %17 = vector.load %arg2[%c0_5, %c0_6] : memref<1x64xf32, #tpu.memory_space<vmem>>, vector<1x64xf32>
    %18 = vector.broadcast %17 : vector<1x64xf32> to vector<8x64xf32>
    %19 = arith.mulf %16, %18 : vector<8x64xf32>
    %c0_7 = arith.constant 0 : index
    %c0_8 = arith.constant 0 : index
    %20 = vector.load %arg3[%c0_7, %c0_8] : memref<1x64xf32, #tpu.memory_space<vmem>>, vector<1x64xf32>
    %21 = vector.broadcast %20 : vector<1x64xf32> to vector<8x64xf32>
    %22 = arith.addf %19, %21 : vector<8x64xf32>
    %c0_9 = arith.constant 0 : index
    %c0_10 = arith.constant 0 : index
    %23 = vector.load %arg4[%c0_9, %c0_10] : memref<8x64xf32, #tpu.memory_space<vmem>>, vector<8x64xf32>
    tpu.vector_store %arg4[%c0_9, %c0_10], %22 {strides = array<i32>} : memref<8x64xf32, #tpu.memory_space<vmem>>, vector<8x64xf32>,
    return
  }
  func.func @transform_0(%arg0: i32) -> (i32, i32) {
    %c0_i32 = arith.constant 0 : i32
    %c0_i32_0 = arith.constant 0 : i32
    return %arg0, %c0_i32 : i32, i32
  }
  func.func @transform_1(%arg0: i32) -> (i32, i32) {
    %c0_i32 = arith.constant 0 : i32
    %c0_i32_0 = arith.constant 0 : i32
    %c0_i32_1 = arith.constant 0 : i32
    return %c0_i32, %c0_i32_0 : i32, i32
  }
  func.func @transform_2(%arg0: i32) -> (i32, i32) {
    %c0_i32 = arith.constant 0 : i32
    %c0_i32_0 = arith.constant 0 : i32
    %c0_i32_1 = arith.constant 0 : i32
    return %c0_i32, %c0_i32_0 : i32, i32
  }
  func.func @transform_3(%arg0: i32) -> (i32, i32) {
    %c0_i32 = arith.constant 0 : i32
    %c0_i32_0 = arith.constant 0 : i32
    return %arg0, %c0_i32 : i32, i32
  }
}

module attributes {stable_mosaic.version = 11 : i64} {
  func.func @_wgen_kernel(%arg0: i32, %arg1: memref<8x64xbf16, #tpu.memory_space<vmem>>, %arg2: memref<64x16xbf16, #tpu.memory_space<vmem>>, %arg3: memref<1x16xf32, #tpu.memory_space<vmem>>, %arg4: memref<16x36xbf16, #tpu.memory_space<vmem>>, %arg5: memref<1x36xf32, #tpu.memory_space<vmem>>, %arg6: memref<8x36xf32, #tpu.memory_space<vmem>>) attributes {dimension_semantics = [#tpu.dimension_semantics<parallel>], iteration_bounds = array<i64: 1>, scalar_prefetch = 0 : i64, scratch_operands = 0 : i64, tpu.core_type = #tpu.core_type<tc>, window_params = [{transform_indices = @transform_0, window_bounds = array<i64: 8, 64>}, {pipeline_mode = #tpu.pipeline_mode<synchronous>, transform_indices = @transform_1, window_bounds = array<i64: 64, 16>}, {pipeline_mode = #tpu.pipeline_mode<synchronous>, transform_indices = @transform_2, window_bounds = array<i64: 1, 16>}, {pipeline_mode = #tpu.pipeline_mode<synchronous>, transform_indices = @transform_3, window_bounds = array<i64: 16, 36>}, {pipeline_mode = #tpu.pipeline_mode<synchronous>, transform_indices = @transform_4, window_bounds = array<i64: 1, 36>}, {transform_indices = @transform_5, window_bounds = array<i64: 8, 36>}]} {
    %c0 = arith.constant 0 : index
    %c0_0 = arith.constant 0 : index
    %0 = vector.load %arg1[%c0, %c0_0] : memref<8x64xbf16, #tpu.memory_space<vmem>>, vector<8x64xbf16>
    %c0_1 = arith.constant 0 : index
    %c0_2 = arith.constant 0 : index
    %1 = vector.load %arg2[%c0_1, %c0_2] : memref<64x16xbf16, #tpu.memory_space<vmem>>, vector<64x16xbf16>
    %cst = arith.constant dense<0.000000e+00> : vector<8x16xf32>
    %2 = tpu.matmul %0, %1, %cst {dimension_numbers = #tpu.dot_dimension_numbers<[1], [0], [0], [1], [0, 0, 1, 1], [], []>} : vector<8x64xbf16>, vector<64x16xbf16>, vector<8x16xf32> -> vector<8x16xf32>
    %c0_3 = arith.constant 0 : index
    %c0_4 = arith.constant 0 : index
    %3 = vector.load %arg3[%c0_3, %c0_4] : memref<1x16xf32, #tpu.memory_space<vmem>>, vector<1x16xf32>
    %4 = vector.broadcast %3 : vector<1x16xf32> to vector<8x16xf32>
    %5 = arith.addf %2, %4 : vector<8x16xf32>
    %cst_5 = arith.constant 0.000000e+00 : f32
    %6 = vector.broadcast %cst_5 : f32 to vector<8x16xf32>
    %7 = arith.maximumf %5, %6 : vector<8x16xf32>
    %8 = arith.truncf %7 : vector<8x16xf32> to vector<8x16xbf16>
    %c0_6 = arith.constant 0 : index
    %c0_7 = arith.constant 0 : index
    %9 = vector.load %arg4[%c0_6, %c0_7] : memref<16x36xbf16, #tpu.memory_space<vmem>>, vector<16x36xbf16>
    %cst_8 = arith.constant dense<0.000000e+00> : vector<8x36xf32>
    %10 = tpu.matmul %8, %9, %cst_8 {dimension_numbers = #tpu.dot_dimension_numbers<[1], [0], [0], [1], [0, 0, 1, 1], [], []>} : vector<8x16xbf16>, vector<16x36xbf16>, vector<8x36xf32> -> vector<8x36xf32>
    %c0_9 = arith.constant 0 : index
    %c0_10 = arith.constant 0 : index
    %11 = vector.load %arg5[%c0_9, %c0_10] : memref<1x36xf32, #tpu.memory_space<vmem>>, vector<1x36xf32>
    %12 = vector.broadcast %11 : vector<1x36xf32> to vector<8x36xf32>
    %13 = arith.addf %10, %12 : vector<8x36xf32>
    %c0_11 = arith.constant 0 : index
    %c0_12 = arith.constant 0 : index
    %14 = vector.load %arg6[%c0_11, %c0_12] : memref<8x36xf32, #tpu.memory_space<vmem>>, vector<8x36xf32>
    tpu.vector_store %arg6[%c0_11, %c0_12], %13 {strides = array<i32>} : memref<8x36xf32, #tpu.memory_space<vmem>>, vector<8x36xf32>,
    return
  }
  func.func @transform_0(%arg0: i32) -> (i32, i32) {
    %c0_i32 = arith.constant 0 : i32
    %c0_i32_0 = arith.constant 0 : i32
    return %arg0, %c0_i32 : i32, i32
  }
  func.func @transform_1(%arg0: i32) -> (i32, i32) {
    %c0_i32 = arith.constant 0 : i32
    %c0_i32_0 = arith.constant 0 : i32
    %c0_i32_1 = arith.constant 0 : i32
    return %c0_i32, %c0_i32_0 : i32, i32
  }
  func.func @transform_2(%arg0: i32) -> (i32, i32) {
    %c0_i32 = arith.constant 0 : i32
    %c0_i32_0 = arith.constant 0 : i32
    %c0_i32_1 = arith.constant 0 : i32
    return %c0_i32, %c0_i32_0 : i32, i32
  }
  func.func @transform_3(%arg0: i32) -> (i32, i32) {
    %c0_i32 = arith.constant 0 : i32
    %c0_i32_0 = arith.constant 0 : i32
    %c0_i32_1 = arith.constant 0 : i32
    return %c0_i32, %c0_i32_0 : i32, i32
  }
  func.func @transform_4(%arg0: i32) -> (i32, i32) {
    %c0_i32 = arith.constant 0 : i32
    %c0_i32_0 = arith.constant 0 : i32
    %c0_i32_1 = arith.constant 0 : i32
    return %c0_i32, %c0_i32_0 : i32, i32
  }
  func.func @transform_5(%arg0: i32) -> (i32, i32) {
    %c0_i32 = arith.constant 0 : i32
    %c0_i32_0 = arith.constant 0 : i32
    return %arg0, %c0_i32 : i32, i32
  }
}

module attributes {stable_mosaic.version = 11 : i64} {
  func.func @_inv_mix_kernel(%arg0: i32, %arg1: memref<1x16x4x4xf32, #tpu.memory_space<vmem>>, %arg2: memref<1x9x2x2xf32, #tpu.memory_space<vmem>>, %arg3: memref<1x16x2x2xf32, #tpu.memory_space<vmem>>) attributes {dimension_semantics = [#tpu.dimension_semantics<parallel>], iteration_bounds = array<i64: 8>, scalar_prefetch = 0 : i64, scratch_operands = 0 : i64, tpu.core_type = #tpu.core_type<tc>, window_params = [{transform_indices = @transform_0, window_bounds = array<i64: 1, 16, 4, 4>}, {transform_indices = @transform_1, window_bounds = array<i64: 1, 9, 2, 2>}, {transform_indices = @transform_2, window_bounds = array<i64: 1, 16, 2, 2>}]} {
    %c0 = arith.constant 0 : index
    %c0_0 = arith.constant 0 : index
    %c0_1 = arith.constant 0 : index
    %c0_2 = arith.constant 0 : index
    %0 = vector.load %arg1[%c0, %c0_0, %c0_1, %c0_2] : memref<1x16x4x4xf32, #tpu.memory_space<vmem>>, vector<1x16x4x4xf32>
    %c0_3 = arith.constant 0 : index
    %c0_4 = arith.constant 0 : index
    %c0_5 = arith.constant 0 : index
    %c0_6 = arith.constant 0 : index
    %1 = vector.load %arg2[%c0_3, %c0_4, %c0_5, %c0_6] : memref<1x9x2x2xf32, #tpu.memory_space<vmem>>, vector<1x9x2x2xf32>
    %cst = arith.constant 0.000000e+00 : f32
    %2 = vector.broadcast %cst : f32 to vector<1x16x2x2xf32>
    %3 = vector.extract_strided_slice %0 {offsets = [0, 0, 0, 0], sizes = [1, 16, 2, 2], strides = [1, 1, 1, 1]} : vector<1x16x4x4xf32> to vector<1x16x2x2xf32>
    %4 = vector.extract_strided_slice %1 {offsets = [0, 0, 0, 0], sizes = [1, 1, 2, 2], strides = [1, 1, 1, 1]} : vector<1x9x2x2xf32> to vector<1x1x2x2xf32>
    %5 = vector.broadcast %4 : vector<1x1x2x2xf32> to vector<1x16x2x2xf32>
    %6 = arith.mulf %3, %5 : vector<1x16x2x2xf32>
    %7 = arith.addf %2, %6 : vector<1x16x2x2xf32>
    %8 = vector.extract_strided_slice %0 {offsets = [0, 0, 0, 1], sizes = [1, 16, 2, 2], strides = [1, 1, 1, 1]} : vector<1x16x4x4xf32> to vector<1x16x2x2xf32>
    %9 = vector.extract_strided_slice %1 {offsets = [0, 1, 0, 0], sizes = [1, 1, 2, 2], strides = [1, 1, 1, 1]} : vector<1x9x2x2xf32> to vector<1x1x2x2xf32>
    %10 = vector.broadcast %9 : vector<1x1x2x2xf32> to vector<1x16x2x2xf32>
    %11 = arith.mulf %8, %10 : vector<1x16x2x2xf32>
    %12 = arith.addf %7, %11 : vector<1x16x2x2xf32>
    %13 = vector.extract_strided_slice %0 {offsets = [0, 0, 0, 2], sizes = [1, 16, 2, 2], strides = [1, 1, 1, 1]} : vector<1x16x4x4xf32> to vector<1x16x2x2xf32>
    %14 = vector.extract_strided_slice %1 {offsets = [0, 2, 0, 0], sizes = [1, 1, 2, 2], strides = [1, 1, 1, 1]} : vector<1x9x2x2xf32> to vector<1x1x2x2xf32>
    %15 = vector.broadcast %14 : vector<1x1x2x2xf32> to vector<1x16x2x2xf32>
    %16 = arith.mulf %13, %15 : vector<1x16x2x2xf32>
    %17 = arith.addf %12, %16 : vector<1x16x2x2xf32>
    %18 = vector.extract_strided_slice %0 {offsets = [0, 0, 1, 0], sizes = [1, 16, 2, 2], strides = [1, 1, 1, 1]} : vector<1x16x4x4xf32> to vector<1x16x2x2xf32>
    %19 = vector.extract_strided_slice %1 {offsets = [0, 3, 0, 0], sizes = [1, 1, 2, 2], strides = [1, 1, 1, 1]} : vector<1x9x2x2xf32> to vector<1x1x2x2xf32>
    %20 = vector.broadcast %19 : vector<1x1x2x2xf32> to vector<1x16x2x2xf32>
    %21 = arith.mulf %18, %20 : vector<1x16x2x2xf32>
    %22 = arith.addf %17, %21 : vector<1x16x2x2xf32>
    %23 = vector.extract_strided_slice %0 {offsets = [0, 0, 1, 1], sizes = [1, 16, 2, 2], strides = [1, 1, 1, 1]} : vector<1x16x4x4xf32> to vector<1x16x2x2xf32>
    %24 = vector.extract_strided_slice %1 {offsets = [0, 4, 0, 0], sizes = [1, 1, 2, 2], strides = [1, 1, 1, 1]} : vector<1x9x2x2xf32> to vector<1x1x2x2xf32>
    %25 = vector.broadcast %24 : vector<1x1x2x2xf32> to vector<1x16x2x2xf32>
    %26 = arith.mulf %23, %25 : vector<1x16x2x2xf32>
    %27 = arith.addf %22, %26 : vector<1x16x2x2xf32>
    %28 = vector.extract_strided_slice %0 {offsets = [0, 0, 1, 2], sizes = [1, 16, 2, 2], strides = [1, 1, 1, 1]} : vector<1x16x4x4xf32> to vector<1x16x2x2xf32>
    %29 = vector.extract_strided_slice %1 {offsets = [0, 5, 0, 0], sizes = [1, 1, 2, 2], strides = [1, 1, 1, 1]} : vector<1x9x2x2xf32> to vector<1x1x2x2xf32>
    %30 = vector.broadcast %29 : vector<1x1x2x2xf32> to vector<1x16x2x2xf32>
    %31 = arith.mulf %28, %30 : vector<1x16x2x2xf32>
    %32 = arith.addf %27, %31 : vector<1x16x2x2xf32>
    %33 = vector.extract_strided_slice %0 {offsets = [0, 0, 2, 0], sizes = [1, 16, 2, 2], strides = [1, 1, 1, 1]} : vector<1x16x4x4xf32> to vector<1x16x2x2xf32>
    %34 = vector.extract_strided_slice %1 {offsets = [0, 6, 0, 0], sizes = [1, 1, 2, 2], strides = [1, 1, 1, 1]} : vector<1x9x2x2xf32> to vector<1x1x2x2xf32>
    %35 = vector.broadcast %34 : vector<1x1x2x2xf32> to vector<1x16x2x2xf32>
    %36 = arith.mulf %33, %35 : vector<1x16x2x2xf32>
    %37 = arith.addf %32, %36 : vector<1x16x2x2xf32>
    %38 = vector.extract_strided_slice %0 {offsets = [0, 0, 2, 1], sizes = [1, 16, 2, 2], strides = [1, 1, 1, 1]} : vector<1x16x4x4xf32> to vector<1x16x2x2xf32>
    %39 = vector.extract_strided_slice %1 {offsets = [0, 7, 0, 0], sizes = [1, 1, 2, 2], strides = [1, 1, 1, 1]} : vector<1x9x2x2xf32> to vector<1x1x2x2xf32>
    %40 = vector.broadcast %39 : vector<1x1x2x2xf32> to vector<1x16x2x2xf32>
    %41 = arith.mulf %38, %40 : vector<1x16x2x2xf32>
    %42 = arith.addf %37, %41 : vector<1x16x2x2xf32>
    %43 = vector.extract_strided_slice %0 {offsets = [0, 0, 2, 2], sizes = [1, 16, 2, 2], strides = [1, 1, 1, 1]} : vector<1x16x4x4xf32> to vector<1x16x2x2xf32>
    %44 = vector.extract_strided_slice %1 {offsets = [0, 8, 0, 0], sizes = [1, 1, 2, 2], strides = [1, 1, 1, 1]} : vector<1x9x2x2xf32> to vector<1x1x2x2xf32>
    %45 = vector.broadcast %44 : vector<1x1x2x2xf32> to vector<1x16x2x2xf32>
    %46 = arith.mulf %43, %45 : vector<1x16x2x2xf32>
    %47 = arith.addf %42, %46 : vector<1x16x2x2xf32>
    %c0_7 = arith.constant 0 : index
    %c0_8 = arith.constant 0 : index
    %c0_9 = arith.constant 0 : index
    %c0_10 = arith.constant 0 : index
    %48 = vector.load %arg3[%c0_7, %c0_8, %c0_9, %c0_10] : memref<1x16x2x2xf32, #tpu.memory_space<vmem>>, vector<1x16x2x2xf32>
    tpu.vector_store %arg3[%c0_7, %c0_8, %c0_9, %c0_10], %47 {strides = array<i32>} : memref<1x16x2x2xf32, #tpu.memory_space<vmem>>, vector<1x16x2x2xf32>,
    return
  }
  func.func @transform_0(%arg0: i32) -> (i32, i32, i32, i32) {
    %c0_i32 = arith.constant 0 : i32
    %c0_i32_0 = arith.constant 0 : i32
    %c0_i32_1 = arith.constant 0 : i32
    %c0_i32_2 = arith.constant 0 : i32
    return %arg0, %c0_i32, %c0_i32_0, %c0_i32_1 : i32, i32, i32, i32
  }
  func.func @transform_1(%arg0: i32) -> (i32, i32, i32, i32) {
    %c0_i32 = arith.constant 0 : i32
    %c0_i32_0 = arith.constant 0 : i32
    %c0_i32_1 = arith.constant 0 : i32
    %c0_i32_2 = arith.constant 0 : i32
    return %arg0, %c0_i32, %c0_i32_0, %c0_i32_1 : i32, i32, i32, i32
  }
  func.func @transform_2(%arg0: i32) -> (i32, i32, i32, i32) {
    %c0_i32 = arith.constant 0 : i32
    %c0_i32_0 = arith.constant 0 : i32
    %c0_i32_1 = arith.constant 0 : i32
    %c0_i32_2 = arith.constant 0 : i32
    return %arg0, %c0_i32, %c0_i32_0, %c0_i32_1 : i32, i32, i32, i32
  }
}

module attributes {stable_mosaic.version = 11 : i64} {
  func.func @_block_tail_kernel(%arg0: i32, %arg1: memref<8x64xf32, #tpu.memory_space<vmem>>, %arg2: memref<8x64xf32, #tpu.memory_space<vmem>>, %arg3: memref<1x64xf32, #tpu.memory_space<vmem>>, %arg4: memref<1x64xf32, #tpu.memory_space<vmem>>, %arg5: memref<64x256xbf16, #tpu.memory_space<vmem>>, %arg6: memref<1x256xf32, #tpu.memory_space<vmem>>, %arg7: memref<256x64xbf16, #tpu.memory_space<vmem>>, %arg8: memref<1x64xf32, #tpu.memory_space<vmem>>, %arg9: memref<1x64xf32, #tpu.memory_space<vmem>>, %arg10: memref<1x64xf32, #tpu.memory_space<vmem>>, %arg11: memref<8x64xf32, #tpu.memory_space<vmem>>) attributes {dimension_semantics = [#tpu.dimension_semantics<parallel>], iteration_bounds = array<i64: 1>, scalar_prefetch = 0 : i64, scratch_operands = 0 : i64, tpu.core_type = #tpu.core_type<tc>, window_params = [{transform_indices = @transform_0, window_bounds = array<i64: 8, 64>}, {transform_indices = @transform_1, window_bounds = array<i64: 8, 64>}, {pipeline_mode = #tpu.pipeline_mode<synchronous>, transform_indices = @transform_2, window_bounds = array<i64: 1, 64>}, {pipeline_mode = #tpu.pipeline_mode<synchronous>, transform_indices = @transform_3, window_bounds = array<i64: 1, 64>}, {pipeline_mode = #tpu.pipeline_mode<synchronous>, transform_indices = @transform_4, window_bounds = array<i64: 64, 256>}, {pipeline_mode = #tpu.pipeline_mode<synchronous>, transform_indices = @transform_5, window_bounds = array<i64: 1, 256>}, {pipeline_mode = #tpu.pipeline_mode<synchronous>, transform_indices = @transform_6, window_bounds = array<i64: 256, 64>}, {pipeline_mode = #tpu.pipeline_mode<synchronous>, transform_indices = @transform_7, window_bounds = array<i64: 1, 64>}, {pipeline_mode = #tpu.pipeline_mode<synchronous>, transform_indices = @transform_8, window_bounds = array<i64: 1, 64>}, {pipeline_mode = #tpu.pipeline_mode<synchronous>, transform_indices = @transform_9, window_bounds = array<i64: 1, 64>}, {transform_indices = @transform_10, window_bounds = array<i64: 8, 64>}]} {
    %c0 = arith.constant 0 : index
    %c0_0 = arith.constant 0 : index
    %0 = vector.load %arg1[%c0, %c0_0] : memref<8x64xf32, #tpu.memory_space<vmem>>, vector<8x64xf32>
    %cst = arith.constant dense<0.000000e+00> : vector<8xf32>
    %1 = vector.multi_reduction <add>, %0, %cst [1] : vector<8x64xf32> to vector<8xf32>
    %2 = vector.shape_cast %1 : vector<8xf32> to vector<8x1xf32>
    %cst_1 = arith.constant 6.400000e+01 : f32
    %3 = vector.broadcast %cst_1 : f32 to vector<8x1xf32>
    %4 = arith.divf %2, %3 : vector<8x1xf32>
    %5 = vector.broadcast %4 : vector<8x1xf32> to vector<8x64xf32>
    %6 = arith.subf %0, %5 : vector<8x64xf32>
    %7 = arith.mulf %6, %6 : vector<8x64xf32>
    %cst_2 = arith.constant dense<0.000000e+00> : vector<8xf32>
    %8 = vector.multi_reduction <add>, %7, %cst_2 [1] : vector<8x64xf32> to vector<8xf32>
    %9 = vector.shape_cast %8 : vector<8xf32> to vector<8x1xf32>
    %cst_3 = arith.constant 6.400000e+01 : f32
    %10 = vector.broadcast %cst_3 : f32 to vector<8x1xf32>
    %11 = arith.divf %9, %10 : vector<8x1xf32>
    %cst_4 = arith.constant 9.99999997E-7 : f32
    %12 = vector.broadcast %cst_4 : f32 to vector<8x1xf32>
    %13 = arith.addf %11, %12 : vector<8x1xf32>
    %14 = math.rsqrt %13 : vector<8x1xf32>
    %15 = vector.broadcast %14 : vector<8x1xf32> to vector<8x64xf32>
    %16 = arith.mulf %6, %15 : vector<8x64xf32>
    %c0_5 = arith.constant 0 : index
    %c0_6 = arith.constant 0 : index
    %17 = vector.load %arg3[%c0_5, %c0_6] : memref<1x64xf32, #tpu.memory_space<vmem>>, vector<1x64xf32>
    %18 = vector.broadcast %17 : vector<1x64xf32> to vector<8x64xf32>
    %19 = arith.mulf %16, %18 : vector<8x64xf32>
    %c0_7 = arith.constant 0 : index
    %c0_8 = arith.constant 0 : index
    %20 = vector.load %arg4[%c0_7, %c0_8] : memref<1x64xf32, #tpu.memory_space<vmem>>, vector<1x64xf32>
    %21 = vector.broadcast %20 : vector<1x64xf32> to vector<8x64xf32>
    %22 = arith.addf %19, %21 : vector<8x64xf32>
    %23 = arith.truncf %22 : vector<8x64xf32> to vector<8x64xbf16>
    %c0_9 = arith.constant 0 : index
    %c0_10 = arith.constant 0 : index
    %24 = vector.load %arg5[%c0_9, %c0_10] : memref<64x256xbf16, #tpu.memory_space<vmem>>, vector<64x256xbf16>
    %cst_11 = arith.constant dense<0.000000e+00> : vector<8x256xf32>
    %25 = tpu.matmul %23, %24, %cst_11 {dimension_numbers = #tpu.dot_dimension_numbers<[1], [0], [0], [1], [0, 0, 1, 1], [], []>} : vector<8x64xbf16>, vector<64x256xbf16>, vector<8x256xf32> -> vector<8x256xf32>
    %c0_12 = arith.constant 0 : index
    %c0_13 = arith.constant 0 : index
    %26 = vector.load %arg6[%c0_12, %c0_13] : memref<1x256xf32, #tpu.memory_space<vmem>>, vector<1x256xf32>
    %27 = vector.broadcast %26 : vector<1x256xf32> to vector<8x256xf32>
    %28 = arith.addf %25, %27 : vector<8x256xf32>
    %cst_14 = arith.constant 5.000000e-01 : f32
    %29 = vector.broadcast %cst_14 : f32 to vector<8x256xf32>
    %30 = arith.mulf %29, %28 : vector<8x256xf32>
    %cst_15 = arith.constant 4.471500e-02 : f32
    %31 = vector.broadcast %cst_15 : f32 to vector<8x256xf32>
    %32 = arith.mulf %31, %28 : vector<8x256xf32>
    %33 = arith.mulf %32, %28 : vector<8x256xf32>
    %34 = arith.mulf %33, %28 : vector<8x256xf32>
    %35 = arith.addf %28, %34 : vector<8x256xf32>
    %cst_16 = arith.constant 0.797884583 : f32
    %36 = vector.broadcast %cst_16 : f32 to vector<8x256xf32>
    %37 = arith.mulf %36, %35 : vector<8x256xf32>
    %38 = math.tanh %37 : vector<8x256xf32>
    %cst_17 = arith.constant 1.000000e+00 : f32
    %39 = vector.broadcast %cst_17 : f32 to vector<8x256xf32>
    %40 = arith.addf %39, %38 : vector<8x256xf32>
    %41 = arith.mulf %30, %40 : vector<8x256xf32>
    %42 = arith.truncf %41 : vector<8x256xf32> to vector<8x256xbf16>
    %c0_18 = arith.constant 0 : index
    %c0_19 = arith.constant 0 : index
    %43 = vector.load %arg7[%c0_18, %c0_19] : memref<256x64xbf16, #tpu.memory_space<vmem>>, vector<256x64xbf16>
    %cst_20 = arith.constant dense<0.000000e+00> : vector<8x64xf32>
    %44 = tpu.matmul %42, %43, %cst_20 {dimension_numbers = #tpu.dot_dimension_numbers<[1], [0], [0], [1], [0, 0, 1, 1], [], []>} : vector<8x256xbf16>, vector<256x64xbf16>, vector<8x64xf32> -> vector<8x64xf32>
    %c0_21 = arith.constant 0 : index
    %c0_22 = arith.constant 0 : index
    %45 = vector.load %arg8[%c0_21, %c0_22] : memref<1x64xf32, #tpu.memory_space<vmem>>, vector<1x64xf32>
    %46 = vector.broadcast %45 : vector<1x64xf32> to vector<8x64xf32>
    %47 = arith.addf %44, %46 : vector<8x64xf32>
    %c0_23 = arith.constant 0 : index
    %c0_24 = arith.constant 0 : index
    %48 = vector.load %arg2[%c0_23, %c0_24] : memref<8x64xf32, #tpu.memory_space<vmem>>, vector<8x64xf32>
    %49 = arith.addf %47, %48 : vector<8x64xf32>
    %cst_25 = arith.constant dense<0.000000e+00> : vector<8xf32>
    %50 = vector.multi_reduction <add>, %49, %cst_25 [1] : vector<8x64xf32> to vector<8xf32>
    %51 = vector.shape_cast %50 : vector<8xf32> to vector<8x1xf32>
    %cst_26 = arith.constant 6.400000e+01 : f32
    %52 = vector.broadcast %cst_26 : f32 to vector<8x1xf32>
    %53 = arith.divf %51, %52 : vector<8x1xf32>
    %54 = vector.broadcast %53 : vector<8x1xf32> to vector<8x64xf32>
    %55 = arith.subf %49, %54 : vector<8x64xf32>
    %56 = arith.mulf %55, %55 : vector<8x64xf32>
    %cst_27 = arith.constant dense<0.000000e+00> : vector<8xf32>
    %57 = vector.multi_reduction <add>, %56, %cst_27 [1] : vector<8x64xf32> to vector<8xf32>
    %58 = vector.shape_cast %57 : vector<8xf32> to vector<8x1xf32>
    %cst_28 = arith.constant 6.400000e+01 : f32
    %59 = vector.broadcast %cst_28 : f32 to vector<8x1xf32>
    %60 = arith.divf %58, %59 : vector<8x1xf32>
    %cst_29 = arith.constant 9.99999997E-7 : f32
    %61 = vector.broadcast %cst_29 : f32 to vector<8x1xf32>
    %62 = arith.addf %60, %61 : vector<8x1xf32>
    %63 = math.rsqrt %62 : vector<8x1xf32>
    %64 = vector.broadcast %63 : vector<8x1xf32> to vector<8x64xf32>
    %65 = arith.mulf %55, %64 : vector<8x64xf32>
    %c0_30 = arith.constant 0 : index
    %c0_31 = arith.constant 0 : index
    %66 = vector.load %arg9[%c0_30, %c0_31] : memref<1x64xf32, #tpu.memory_space<vmem>>, vector<1x64xf32>
    %67 = vector.broadcast %66 : vector<1x64xf32> to vector<8x64xf32>
    %68 = arith.mulf %65, %67 : vector<8x64xf32>
    %c0_32 = arith.constant 0 : index
    %c0_33 = arith.constant 0 : index
    %69 = vector.load %arg10[%c0_32, %c0_33] : memref<1x64xf32, #tpu.memory_space<vmem>>, vector<1x64xf32>
    %70 = vector.broadcast %69 : vector<1x64xf32> to vector<8x64xf32>
    %71 = arith.addf %68, %70 : vector<8x64xf32>
    %c0_34 = arith.constant 0 : index
    %c0_35 = arith.constant 0 : index
    %72 = vector.load %arg11[%c0_34, %c0_35] : memref<8x64xf32, #tpu.memory_space<vmem>>, vector<8x64xf32>
    tpu.vector_store %arg11[%c0_34, %c0_35], %71 {strides = array<i32>} : memref<8x64xf32, #tpu.memory_space<vmem>>, vector<8x64xf32>,
    return
  }
  func.func @transform_0(%arg0: i32) -> (i32, i32) {
    %c0_i32 = arith.constant 0 : i32
    %c0_i32_0 = arith.constant 0 : i32
    return %arg0, %c0_i32 : i32, i32
  }
  func.func @transform_1(%arg0: i32) -> (i32, i32) {
    %c0_i32 = arith.constant 0 : i32
    %c0_i32_0 = arith.constant 0 : i32
    return %arg0, %c0_i32 : i32, i32
  }
  func.func @transform_2(%arg0: i32) -> (i32, i32) {
    %c0_i32 = arith.constant 0 : i32
    %c0_i32_0 = arith.constant 0 : i32
    %c0_i32_1 = arith.constant 0 : i32
    return %c0_i32, %c0_i32_0 : i32, i32
  }
  func.func @transform_3(%arg0: i32) -> (i32, i32) {
    %c0_i32 = arith.constant 0 : i32
    %c0_i32_0 = arith.constant 0 : i32
    %c0_i32_1 = arith.constant 0 : i32
    return %c0_i32, %c0_i32_0 : i32, i32
  }
  func.func @transform_4(%arg0: i32) -> (i32, i32) {
    %c0_i32 = arith.constant 0 : i32
    %c0_i32_0 = arith.constant 0 : i32
    %c0_i32_1 = arith.constant 0 : i32
    return %c0_i32, %c0_i32_0 : i32, i32
  }
  func.func @transform_5(%arg0: i32) -> (i32, i32) {
    %c0_i32 = arith.constant 0 : i32
    %c0_i32_0 = arith.constant 0 : i32
    %c0_i32_1 = arith.constant 0 : i32
    return %c0_i32, %c0_i32_0 : i32, i32
  }
  func.func @transform_6(%arg0: i32) -> (i32, i32) {
    %c0_i32 = arith.constant 0 : i32
    %c0_i32_0 = arith.constant 0 : i32
    %c0_i32_1 = arith.constant 0 : i32
    return %c0_i32, %c0_i32_0 : i32, i32
  }
  func.func @transform_7(%arg0: i32) -> (i32, i32) {
    %c0_i32 = arith.constant 0 : i32
    %c0_i32_0 = arith.constant 0 : i32
    %c0_i32_1 = arith.constant 0 : i32
    return %c0_i32, %c0_i32_0 : i32, i32
  }
  func.func @transform_8(%arg0: i32) -> (i32, i32) {
    %c0_i32 = arith.constant 0 : i32
    %c0_i32_0 = arith.constant 0 : i32
    %c0_i32_1 = arith.constant 0 : i32
    return %c0_i32, %c0_i32_0 : i32, i32
  }
  func.func @transform_9(%arg0: i32) -> (i32, i32) {
    %c0_i32 = arith.constant 0 : i32
    %c0_i32_0 = arith.constant 0 : i32
    %c0_i32_1 = arith.constant 0 : i32
    return %c0_i32, %c0_i32_0 : i32, i32
  }
  func.func @transform_10(%arg0: i32) -> (i32, i32) {
    %c0_i32 = arith.constant 0 : i32
    %c0_i32_0 = arith.constant 0 : i32
    return %arg0, %c0_i32 : i32, i32
  }
}

module attributes {stable_mosaic.version = 11 : i64} {
  func.func @_matmul_bias_kernel(%arg0: i32, %arg1: memref<8x64xbf16, #tpu.memory_space<vmem>>, %arg2: memref<64x2xbf16, #tpu.memory_space<vmem>>, %arg3: memref<1x2xf32, #tpu.memory_space<vmem>>, %arg4: memref<8x2xf32, #tpu.memory_space<vmem>>) attributes {dimension_semantics = [#tpu.dimension_semantics<parallel>], iteration_bounds = array<i64: 1>, scalar_prefetch = 0 : i64, scratch_operands = 0 : i64, tpu.core_type = #tpu.core_type<tc>, window_params = [{transform_indices = @transform_0, window_bounds = array<i64: 8, 64>}, {pipeline_mode = #tpu.pipeline_mode<synchronous>, transform_indices = @transform_1, window_bounds = array<i64: 64, 2>}, {pipeline_mode = #tpu.pipeline_mode<synchronous>, transform_indices = @transform_2, window_bounds = array<i64: 1, 2>}, {transform_indices = @transform_3, window_bounds = array<i64: 8, 2>}]} {
    %c0 = arith.constant 0 : index
    %c0_0 = arith.constant 0 : index
    %0 = vector.load %arg1[%c0, %c0_0] : memref<8x64xbf16, #tpu.memory_space<vmem>>, vector<8x64xbf16>
    %c0_1 = arith.constant 0 : index
    %c0_2 = arith.constant 0 : index
    %1 = vector.load %arg2[%c0_1, %c0_2] : memref<64x2xbf16, #tpu.memory_space<vmem>>, vector<64x2xbf16>
    %cst = arith.constant dense<0.000000e+00> : vector<8x2xf32>
    %2 = tpu.matmul %0, %1, %cst {dimension_numbers = #tpu.dot_dimension_numbers<[1], [0], [0], [1], [0, 0, 1, 1], [], []>} : vector<8x64xbf16>, vector<64x2xbf16>, vector<8x2xf32> -> vector<8x2xf32>
    %c0_3 = arith.constant 0 : index
    %c0_4 = arith.constant 0 : index
    %3 = vector.load %arg3[%c0_3, %c0_4] : memref<1x2xf32, #tpu.memory_space<vmem>>, vector<1x2xf32>
    %4 = vector.broadcast %3 : vector<1x2xf32> to vector<8x2xf32>
    %5 = arith.addf %2, %4 : vector<8x2xf32>
    %c0_5 = arith.constant 0 : index
    %c0_6 = arith.constant 0 : index
    %6 = vector.load %arg4[%c0_5, %c0_6] : memref<8x2xf32, #tpu.memory_space<vmem>>, vector<8x2xf32>
    tpu.vector_store %arg4[%c0_5, %c0_6], %5 {strides = array<i32>} : memref<8x2xf32, #tpu.memory_space<vmem>>, vector<8x2xf32>,
    return
  }
  func.func @transform_0(%arg0: i32) -> (i32, i32) {
    %c0_i32 = arith.constant 0 : i32
    %c0_i32_0 = arith.constant 0 : i32
    return %arg0, %c0_i32 : i32, i32
  }
  func.func @transform_1(%arg0: i32) -> (i32, i32) {
    %c0_i32 = arith.constant 0 : i32
    %c0_i32_0 = arith.constant 0 : i32
    %c0_i32_1 = arith.constant 0 : i32
    return %c0_i32, %c0_i32_0 : i32, i32
  }
  func.func @transform_2(%arg0: i32) -> (i32, i32) {
    %c0_i32 = arith.constant 0 : i32
    %c0_i32_0 = arith.constant 0 : i32
    %c0_i32_1 = arith.constant 0 : i32
    return %c0_i32, %c0_i32_0 : i32, i32
  }
  func.func @transform_3(%arg0: i32) -> (i32, i32) {
    %c0_i32 = arith.constant 0 : i32
    %c0_i32_0 = arith.constant 0 : i32
    return %arg0, %c0_i32 : i32, i32
  }
}

</mosaic_0001>

<llo_original>
// kernel: invnet_forward.11
$region0: #{invnet_forward.11}
  #allocation0 [shape = 'u32[]', space=smem, size = 0x4, offset = 0x4, fixed_abs, tag = 'smem constant byte address 0x4 - core index']
  #allocation1 [shape = 'u32[144,128]{1,0:T(1,128)}', space=vmem, size = 0x12000, scoped, tag = 'internal scratch']
  %s0 = inlined_call_operand.vmem [shape: bf16[344,147], index: 0, kind: input, shape index: {}]
  %s1 = inlined_call_operand.vmem [shape: bf16[147,32], index: 1, kind: input, shape index: {}]
  %s2 = inlined_call_operand.vmem [shape: f32[1,32], index: 2, kind: input, shape index: {}]
  %s3 = inlined_call_operand.vmem [shape: f32[344,32], index: 3, kind: output, shape index: {}]
  %s4 = sld [smem:[#allocation0]]
  $region22: #{invnet_forward.11} parent=0
    _
  %s6 = ssub.s32 1, %s4
  %s7 = scalar_select 0, %s6, %s4
  // Predicated region
  $region2: #{invnet_forward.11} parent=0 // pred_check
    _
  $region3: #{invnet_forward.11} parent=0 // pred_check_branch
    %9 = sbr.rel (0) target = $region5
  $region4: #{invnet_forward.11} parent=0 // pred_region
    _
  $region5: #{invnet_forward.11} parent=0 // pred_fallthru
    _
  // Predicated region
  $region6: #{invnet_forward.11} parent=0 // pred_check
    _
  $region7: #{invnet_forward.11} parent=0 // pred_check_branch
    %11 = sbr.rel (0) target = $region9
  $region8: #{invnet_forward.11} parent=0 // pred_region
    _
  $region9: #{invnet_forward.11} parent=0 // pred_fallthru
    _
  // Predicated region
  $region10: #{invnet_forward.11} parent=0 // pred_check
    _
  $region11: #{invnet_forward.11} parent=0 // pred_check_branch
    %13 = sbr.rel (0) target = $region13
  $region12: #{invnet_forward.11} parent=0 // pred_region
    _
  $region13: #{invnet_forward.11} parent=0 // pred_fallthru
    _
  %v15 = vld [vmem:[%s0] sm:$0xff]
  %v16 = vld [vmem:[%s0 + $0x8] sm:$0xff]
  %v17 = vld [vmem:[%s0 + $0x10] sm:$0xff]
  %v18 = vld [vmem:[%s0 + $0x18] sm:$0xff]
  %v19 = vld [vmem:[%s0 + $0x20] sm:$0xff]
  %v20 = vld [vmem:[%s0 + $0x28] sm:$0xff]
  %v21 = vld [vmem:[%s0 + $0x30] sm:$0xff]
  %v22 = vld [vmem:[%s0 + $0x38] sm:$0xff]
  %v23 = vld [vmem:[%s0 + $0x40] sm:$0xff]
  %v24 = vld [vmem:[%s0 + $0x48] sm:$0xff]
  %v25 = vld [vmem:[%s0 + $0x50] sm:$0xff]
  %v26 = vld [vmem:[%s0 + $0x58] sm:$0xff]
  %v27 = vld [vmem:[%s0 + $0x60] sm:$0xff]
  %v28 = vld [vmem:[%s0 + $0x68] sm:$0xff]
  %v29 = vld [vmem:[%s0 + $0x70] sm:$0xff]
  %v30 = vld [vmem:[%s0 + $0x78] sm:$0xff]
  %v31 = vld [vmem:[%s0 + $0x80] sm:$0xff]
  %v32 = vld [vmem:[%s0 + $0x88] sm:$0xff]
  %v33 = vld [vmem:[%s0 + $0x90] sm:$0xff]
  %v34 = vld [vmem:[%s0 + $0x98] sm:$0xff]
  %v35 = vld [vmem:[%s0 + $0xa0] sm:$0xff]
  %v36 = vld [vmem:[%s0 + $0xa8] sm:$0xff]
  %v37 = vld [vmem:[%s0 + $0xb0] sm:$0xff]
  %v38 = vld [vmem:[%s0 + $0xb8] sm:$0xff]
  %v39 = vld [vmem:[%s0 + $0xc0] sm:$0xff]
  %v40 = vld [vmem:[%s0 + $0xc8] sm:$0xff]
  %v41 = vld [vmem:[%s0 + $0xd0] sm:$0xff]
  %v42 = vld [vmem:[%s0 + $0xd8] sm:$0xff]
  %v43 = vld [vmem:[%s0 + $0xe0] sm:$0xff]
  %v44 = vld [vmem:[%s0 + $0xe8] sm:$0xff]
  %v45 = vld [vmem:[%s0 + $0xf0] sm:$0xff]
  %v46 = vld [vmem:[%s0 + $0xf8] sm:$0xff]
  %v47 = vld [vmem:[%s0 + $0x100] sm:$0xff]
  %v48 = vld [vmem:[%s0 + $0x108] sm:$0xff]
  %v49 = vld [vmem:[%s0 + $0x110] sm:$0xff]
  %v50 = vld [vmem:[%s0 + $0x118] sm:$0xff]
  %v51 = vld [vmem:[%s0 + $0x120] sm:$0xff]
  %v52 = vld [vmem:[%s0 + $0x128] sm:$0xff]
  %v53 = vld [vmem:[%s0 + $0x130] sm:$0xff]
  %v54 = vld [vmem:[%s0 + $0x138] sm:$0xff]
  %v55 = vld [vmem:[%s0 + $0x140] sm:$0xff]
  %v56 = vld [vmem:[%s0 + $0x148] sm:$0xff]
  %v57 = vld [vmem:[%s0 + $0x150] sm:$0xff]
  %v58 = vld [vmem:[%s1] sm:$0xf]
  %v59 = vld [vmem:[%s1 + $0x4] sm:$0xf]
  %v60 = vld [vmem:[%s1 + $0x8] sm:$0xf]
  %v61 = vld [vmem:[%s1 + $0xc] sm:$0xf]
  %v62 = vld [vmem:[%s1 + $0x10] sm:$0xf]
  %v63 = vld [vmem:[%s1 + $0x14] sm:$0xf]
  %v64 = vld [vmem:[%s1 + $0x18] sm:$0xf]
  %v65 = vld [vmem:[%s1 + $0x1c] sm:$0xf]
  %v66 = vld [vmem:[%s1 + $0x20] sm:$0xf]
  %v67 = vld [vmem:[%s1 + $0x24] sm:$0xf]
  %v68 = vld [vmem:[%s1 + $0x28] sm:$0xf]
  %v69 = vld [vmem:[%s1 + $0x2c] sm:$0xf]
  %v70 = vld [vmem:[%s1 + $0x30] sm:$0xf]
  %v71 = vld [vmem:[%s1 + $0x34] sm:$0xf]
  %v72 = vld [vmem:[%s1 + $0x38] sm:$0xf]
  %v73 = vld [vmem:[%s1 + $0x3c] sm:$0xf]
  %v74 = vld [vmem:[%s1 + $0x40] sm:$0xf]
  %v75 = vld [vmem:[%s1 + $0x44] sm:$0xf]
  %v76 = vld [vmem:[%s1 + $0x48] sm:$0x3]
  %v77 = vld [vmem:[%s2] sm:$0x1]
  %v79 = vlaneseq
  %v80 = vshrl.u32 %v79, 7
  %v81 = vsub.s32 0, %v80
  %v82 = vrot.slane %v77, %v81
  %v127 = vunpack.c.l.b16 %v15
  %v128 = vunpack.c.h.b16 %v15
  %v129 = vunpack.c.l.b16 %v16
  %v130 = vunpack.c.h.b16 %v16
  %v131 = vunpack.c.l.b16 %v17
  %v132 = vunpack.c.h.b16 %v17
  %v133 = vunpack.c.l.b16 %v18
  %v134 = vunpack.c.h.b16 %v18
  %v135 = vunpack.c.l.b16 %v19
  %v136 = vunpack.c.h.b16 %v19
  %v137 = vunpack.c.l.b16 %v20
  %v138 = vunpack.c.h.b16 %v20
  %v139 = vunpack.c.l.b16 %v21
  %v140 = vunpack.c.h.b16 %v21
  %v141 = vunpack.c.l.b16 %v22
  %v142 = vunpack.c.h.b16 %v22
  %v143 = vunpack.c.l.b16 %v23
  %v144 = vunpack.c.h.b16 %v23
  %v145 = vunpack.c.l.b16 %v24
  %v146 = vunpack.c.h.b16 %v24
  %v147 = vunpack.c.l.b16 %v25
  %v148 = vunpack.c.h.b16 %v25
  %v149 = vunpack.c.l.b16 %v26
  %v150 = vunpack.c.h.b16 %v26
  %v151 = vunpack.c.l.b16 %v27
  %v152 = vunpack.c.h.b16 %v27
  %v153 = vunpack.c.l.b16 %v28
  %v154 = vunpack.c.h.b16 %v28
  %v155 = vunpack.c.l.b16 %v29
  %v156 = vunpack.c.h.b16 %v29
  %v157 = vunpack.c.l.b16 %v30
  %v158 = vunpack.c.h.b16 %v30
  %v159 = vunpack.c.l.b16 %v31
  %v160 = vunpack.c.h.b16 %v31
  %v161 = vunpack.c.l.b16 %v32
  %v162 = vunpack.c.h.b16 %v32
  %v163 = vunpack.c.l.b16 %v33
  %v164 = vunpack.c.h.b16 %v33
  %v165 = vunpack.c.l.b16 %v34
  %v166 = vunpack.c.h.b16 %v34
  %v167 = vunpack.c.l.b16 %v35
  %v168 = vunpack.c.h.b16 %v35
  %v169 = vunpack.c.l.b16 %v36
  %v170 = vunpack.c.h.b16 %v36
  %v171 = vunpack.c.l.b16 %v37
  %v172 = vunpack.c.h.b16 %v37
  %v173 = vunpack.c.l.b16 %v38
  %v174 = vunpack.c.h.b16 %v38
  %v175 = vunpack.c.l.b16 %v39
  %v176 = vunpack.c.h.b16 %v39
  %v177 = vunpack.c.l.b16 %v40
  %v178 = vunpack.c.h.b16 %v40
  %v179 = vunpack.c.l.b16 %v41
  %v180 = vunpack.c.h.b16 %v41
  %v181 = vunpack.c.l.b16 %v42
  %v182 = vunpack.c.h.b16 %v42
  %v183 = vunpack.c.l.b16 %v43
  %v184 = vunpack.c.h.b16 %v43
  %v185 = vunpack.c.l.b16 %v44
  %v186 = vunpack.c.h.b16 %v44
  %v187 = vunpack.c.l.b16 %v45
  %v188 = vunpack.c.h.b16 %v45
  %v189 = vunpack.c.l.b16 %v46
  %v190 = vunpack.c.h.b16 %v46
  %v191 = vunpack.c.l.b16 %v47
  %v192 = vunpack.c.h.b16 %v47
  %v193 = vunpack.c.l.b16 %v48
  %v194 = vunpack.c.h.b16 %v48
  %v195 = vunpack.c.l.b16 %v49
  %v196 = vunpack.c.h.b16 %v49
  %v197 = vunpack.c.l.b16 %v50
  %v198 = vunpack.c.h.b16 %v50
  %v199 = vunpack.c.l.b16 %v51
  %v200 = vunpack.c.h.b16 %v51
  %v201 = vunpack.c.l.b16 %v52
  %v202 = vunpack.c.h.b16 %v52
  %v203 = vunpack.c.l.b16 %v53
  %v204 = vunpack.c.h.b16 %v53
  %v205 = vunpack.c.l.b16 %v54
  %v206 = vunpack.c.h.b16 %v54
  %v207 = vunpack.c.l.b16 %v55
  %v208 = vunpack.c.h.b16 %v55
  %v209 = vunpack.c.l.b16 %v56
  %v210 = vunpack.c.h.b16 %v56
  %v211 = vunpack.c.l.b16 %v57
  %v212 = vunpack.c.h.b16 %v57
  %v213 = vpack.c.b16 %v129, %v127
  %v214 = vpack.c.b16 %v130, %v128
  %v215 = vpack.c.b16 %v133, %v131
  %v216 = vpack.c.b16 %v134, %v132
  %v217 = vpack.c.b16 %v137, %v135
  %v218 = vpack.c.b16 %v138, %v136
  %v219 = vpack.c.b16 %v141, %v139
  %v220 = vpack.c.b16 %v142, %v140
  %v221 = vpack.c.b16 %v145, %v143
  %v222 = vpack.c.b16 %v146, %v144
  %v223 = vpack.c.b16 %v149, %v147
  %v224 = vpack.c.b16 %v150, %v148
  %v225 = vpack.c.b16 %v153, %v151
  %v226 = vpack.c.b16 %v154, %v152
  %v227 = vpack.c.b16 %v157, %v155
  %v228 = vpack.c.b16 %v158, %v156
  %v229 = vpack.c.b16 %v161, %v159
  %v230 = vpack.c.b16 %v162, %v160
  %v231 = vpack.c.b16 %v165, %v163
  %v232 = vpack.c.b16 %v166, %v164
  %v233 = vpack.c.b16 %v169, %v167
  %v234 = vpack.c.b16 %v170, %v168
  %v235 = vpack.c.b16 %v173, %v171
  %v236 = vpack.c.b16 %v174, %v172
  %v237 = vpack.c.b16 %v177, %v175
  %v238 = vpack.c.b16 %v178, %v176
  %v239 = vpack.c.b16 %v181, %v179
  %v240 = vpack.c.b16 %v182, %v180
  %v241 = vpack.c.b16 %v185, %v183
  %v242 = vpack.c.b16 %v186, %v184
  %v243 = vpack.c.b16 %v189, %v187
  %v244 = vpack.c.b16 %v190, %v188
  %v245 = vpack.c.b16 %v193, %v191
  %v246 = vpack.c.b16 %v194, %v192
  %v247 = vpack.c.b16 %v197, %v195
  %v248 = vpack.c.b16 %v198, %v196
  %v249 = vpack.c.b16 %v201, %v199
  %v250 = vpack.c.b16 %v202, %v200
  %v251 = vpack.c.b16 %v205, %v203
  %v252 = vpack.c.b16 %v206, %v204
  %v253 = vpack.c.b16 %v209, %v207
  %v254 = vpack.c.b16 %v210, %v208
  %v255 = vpack.c.b16 %v211, %v211
  %v256 = vpack.c.b16 %v212, %v212
  %v298 = vunpack.c.l.b16 %v58
  %v299 = vunpack.c.l.b16 %v59
  %v300 = vunpack.c.l.b16 %v60
  %v301 = vunpack.c.l.b16 %v61
  %v302 = vunpack.c.l.b16 %v62
  %v303 = vunpack.c.l.b16 %v63
  %v304 = vunpack.c.l.b16 %v64
  %v305 = vunpack.c.l.b16 %v65
  %v306 = vunpack.c.l.b16 %v66
  %v307 = vunpack.c.l.b16 %v67
  %v308 = vunpack.c.l.b16 %v68
  %v309 = vunpack.c.l.b16 %v69
  %v310 = vunpack.c.l.b16 %v70
  %v311 = vunpack.c.l.b16 %v71
  %v312 = vunpack.c.l.b16 %v72
  %v313 = vunpack.c.l.b16 %v73
  %v314 = vunpack.c.l.b16 %v74
  %v315 = vunpack.c.l.b16 %v75
  %v316 = vunpack.c.l.b16 %v76
  %v317 = vpack.c.b16 %v299, %v298
  %v318 = vpack.c.b16 %v301, %v300
  %v319 = vpack.c.b16 %v303, %v302
  %v320 = vpack.c.b16 %v305, %v304
  %v321 = vpack.c.b16 %v307, %v306
  %v322 = vpack.c.b16 %v309, %v308
  %v323 = vpack.c.b16 %v311, %v310
  %v324 = vpack.c.b16 %v313, %v312
  %v325 = vpack.c.b16 %v315, %v314
  %v326 = vpack.c.b16 %v316, %v316
  %vm336 = vcmask 154624
  %v338 = vsel %vm336, %v214, 0
  %v341 = vsel %vm336, %v216, 0
  %v344 = vsel %vm336, %v218, 0
  %v347 = vsel %vm336, %v220, 0
  %v350 = vsel %vm336, %v222, 0
  %v353 = vsel %vm336, %v224, 0
  %v356 = vsel %vm336, %v226, 0
  %v359 = vsel %vm336, %v228, 0
  %v362 = vsel %vm336, %v230, 0
  %v365 = vsel %vm336, %v232, 0
  %v368 = vsel %vm336, %v234, 0
  %v371 = vsel %vm336, %v236, 0
  %v374 = vsel %vm336, %v238, 0
  %v377 = vsel %vm336, %v240, 0
  %v380 = vsel %vm336, %v242, 0
  %v383 = vsel %vm336, %v244, 0
  %v386 = vsel %vm336, %v246, 0
  %v389 = vsel %vm336, %v248, 0
  %v392 = vsel %vm336, %v250, 0
  %v395 = vsel %vm336, %v252, 0
  %v398 = vsel %vm336, %v254, 0
  %v401 = vsel %vm336, %v256, 0
  %vm403 = vcmask 1040384
  %vm404 = vcmask 1041408
  %v405 = vsel %vm403, 4294967295, 65535
  %v406 = vsel %vm404, %v405, 0
  %v408 = vand.u32 %v326, %v406
  %410 = vmatprep.subr.bf16.mxu0 0
  %411 = vmatpush1.bf16.msra.mxu0 %v317
  %412 = vmatprep.subr.bf16.mxu0 0
  %413 = vmatpush1.bf16.msra.mxu0 %v318
  %414 = vmatprep.subr.bf16.mxu0 0
  %415 = vmatpush1.bf16.msra.mxu0 %v319
  %416 = vmatprep.subr.bf16.mxu0 0
  %417 = vmatpush1.bf16.msra.mxu0 %v320
  %418 = vmatprep.subr.bf16.mxu0 0
  %419 = vmatpush1.bf16.msra.mxu0 %v321
  %420 = vmatprep.subr.bf16.mxu0 0
  %421 = vmatpush1.bf16.msra.mxu0 %v322
  %422 = vmatprep.subr.bf16.mxu0 0
  %423 = vmatpush1.bf16.msra.mxu0 %v323
  %424 = vmatprep.subr.bf16.mxu0 0
  %425 = vmatpush1.bf16.msra.mxu0 %v324
  %426 = vmatprep.subr.bf16.mxu0 0
  %427 = vmatpush1.bf16.msra.mxu0 %v325
  %428 = vmatprep.subr.bf16.mxu0 0
  %429 = vmatpush1.bf16.msra.mxu0 %v408
  %430 = vmatprep.subr.bf16.mxu0 0
  %431 = vmatpush1.bf16.msra.mxu0 0
  %432 = vmatprep.subr.bf16.mxu0 0
  %433 = vmatpush1.bf16.msra.mxu0 0
  %434 = vmatprep.subr.bf16.mxu0 0
  %435 = vmatpush1.bf16.msra.mxu0 0
  %436 = vmatprep.subr.bf16.mxu0 0
  %437 = vmatpush1.bf16.msra.mxu0 0
  %438 = vmatprep.subr.bf16.mxu0 0
  %439 = vmatpush1.bf16.msra.mxu0 0
  %440 = vmatprep.subr.bf16.mxu0 0
  %441 = vmatpush1.bf16.msra.mxu0 0
  %442 = vmatprep.mubr.bf16.mxu0 %v338
  %443 = vmatmul.mubr.bf16.gmra.mrb[0].mxu0 %v213
  %v444 = vpop.f32.mrb[0].mxu0
  %v445 = vadd.f32 %v82, %v444
  %v446 = vpop.f32.mrb[0].mxu0
  %v447 = vpop.f32.mrb[0].mxu0
  %v448 = vadd.f32 %v82, %v447
  %v449 = vpop.f32.mrb[0].mxu0
  %450 = vmatprep.mubr.bf16.mxu0 %v341
  %451 = vmatmul.mubr.bf16.gmra.mrb[0].mxu0 %v215
  %v452 = vpop.f32.mrb[0].mxu0
  %v453 = vadd.f32 %v82, %v452
  %v454 = vpop.f32.mrb[0].mxu0
  %v455 = vpop.f32.mrb[0].mxu0
  %v456 = vadd.f32 %v82, %v455
  %v457 = vpop.f32.mrb[0].mxu0
  %458 = vmatprep.mubr.bf16.mxu0 %v344
  %459 = vmatmul.mubr.bf16.gmra.mrb[0].mxu0 %v217
  %v460 = vpop.f32.mrb[0].mxu0
  %v461 = vadd.f32 %v82, %v460
  %v462 = vpop.f32.mrb[0].mxu0
  %v463 = vpop.f32.mrb[0].mxu0
  %v464 = vadd.f32 %v82, %v463
  %v465 = vpop.f32.mrb[0].mxu0
  %466 = vmatprep.mubr.bf16.mxu0 %v347
  %467 = vmatmul.mubr.bf16.gmra.mrb[0].mxu0 %v219
  %v468 = vpop.f32.mrb[0].mxu0
  %v469 = vadd.f32 %v82, %v468
  %v470 = vpop.f32.mrb[0].mxu0
  %v471 = vpop.f32.mrb[0].mxu0
  %v472 = vadd.f32 %v82, %v471
  %v473 = vpop.f32.mrb[0].mxu0
  %474 = vmatprep.mubr.bf16.mxu0 %v350
  %475 = vmatmul.mubr.bf16.gmra.mrb[0].mxu0 %v221
  %v476 = vpop.f32.mrb[0].mxu0
  %v477 = vadd.f32 %v82, %v476
  %v478 = vpop.f32.mrb[0].mxu0
  %v479 = vpop.f32.mrb[0].mxu0
  %v480 = vadd.f32 %v82, %v479
  %v481 = vpop.f32.mrb[0].mxu0
  %482 = vmatprep.mubr.bf16.mxu0 %v353
  %483 = vmatmul.mubr.bf16.gmra.mrb[0].mxu0 %v223
  %v484 = vpop.f32.mrb[0].mxu0
  %v485 = vadd.f32 %v82, %v484
  %v486 = vpop.f32.mrb[0].mxu0
  %v487 = vpop.f32.mrb[0].mxu0
  %v488 = vadd.f32 %v82, %v487
  %v489 = vpop.f32.mrb[0].mxu0
  %490 = vmatprep.mubr.bf16.mxu0 %v356
  %491 = vmatmul.mubr.bf16.gmra.mrb[0].mxu0 %v225
  %v492 = vpop.f32.mrb[0].mxu0
  %v493 = vadd.f32 %v82, %v492
  %v494 = vpop.f32.mrb[0].mxu0
  %v495 = vpop.f32.mrb[0].mxu0
  %v496 = vadd.f32 %v82, %v495
  %v497 = vpop.f32.mrb[0].mxu0
  %498 = vmatprep.mubr.bf16.mxu0 %v359
  %499 = vmatmul.mubr.bf16.gmra.mrb[0].mxu0 %v227
  %v500 = vpop.f32.mrb[0].mxu0
  %v501 = vadd.f32 %v82, %v500
  %v502 = vpop.f32.mrb[0].mxu0
  %v503 = vpop.f32.mrb[0].mxu0
  %v504 = vadd.f32 %v82, %v503
  %v505 = vpop.f32.mrb[0].mxu0
  %506 = vmatprep.mubr.bf16.mxu0 %v362
  %507 = vmatmul.mubr.bf16.gmra.mrb[0].mxu0 %v229
  %v508 = vpop.f32.mrb[0].mxu0
  %v509 = vadd.f32 %v82, %v508
  %v510 = vpop.f32.mrb[0].mxu0
  %v511 = vpop.f32.mrb[0].mxu0
  %v512 = vadd.f32 %v82, %v511
  %v513 = vpop.f32.mrb[0].mxu0
  %514 = vmatprep.mubr.bf16.mxu0 %v365
  %515 = vmatmul.mubr.bf16.gmra.mrb[0].mxu0 %v231
  %v516 = vpop.f32.mrb[0].mxu0
  %v517 = vadd.f32 %v82, %v516
  %v518 = vpop.f32.mrb[0].mxu0
  %v519 = vpop.f32.mrb[0].mxu0
  %v520 = vadd.f32 %v82, %v519
  %v521 = vpop.f32.mrb[0].mxu0
  %522 = vmatprep.mubr.bf16.mxu0 %v368
  %523 = vmatmul.mubr.bf16.gmra.mrb[0].mxu0 %v233
  %v524 = vpop.f32.mrb[0].mxu0
  %v525 = vadd.f32 %v82, %v524
  %v526 = vpop.f32.mrb[0].mxu0
  %v527 = vpop.f32.mrb[0].mxu0
  %v528 = vadd.f32 %v82, %v527
  %v529 = vpop.f32.mrb[0].mxu0
  %530 = vmatprep.mubr.bf16.mxu0 %v371
  %531 = vmatmul.mubr.bf16.gmra.mrb[0].mxu0 %v235
  %v532 = vpop.f32.mrb[0].mxu0
  %v533 = vadd.f32 %v82, %v532
  %v534 = vpop.f32.mrb[0].mxu0
  %v535 = vpop.f32.mrb[0].mxu0
  %v536 = vadd.f32 %v82, %v535
  %v537 = vpop.f32.mrb[0].mxu0
  %538 = vmatprep.mubr.bf16.mxu0 %v374
  %539 = vmatmul.mubr.bf16.gmra.mrb[0].mxu0 %v237
  %v540 = vpop.f32.mrb[0].mxu0
  %v541 = vadd.f32 %v82, %v540
  %v542 = vpop.f32.mrb[0].mxu0
  %v543 = vpop.f32.mrb[0].mxu0
  %v544 = vadd.f32 %v82, %v543
  %v545 = vpop.f32.mrb[0].mxu0
  %546 = vmatprep.mubr.bf16.mxu0 %v377
  %547 = vmatmul.mubr.bf16.gmra.mrb[0].mxu0 %v239
  %v548 = vpop.f32.mrb[0].mxu0
  %v549 = vadd.f32 %v82, %v548
  %v550 = vpop.f32.mrb[0].mxu0
  %v551 = vpop.f32.mrb[0].mxu0
  %v552 = vadd.f32 %v82, %v551
  %v553 = vpop.f32.mrb[0].mxu0
  %554 = vmatprep.mubr.bf16.mxu0 %v380
  %555 = vmatmul.mubr.bf16.gmra.mrb[0].mxu0 %v241
  %v556 = vpop.f32.mrb[0].mxu0
  %v557 = vadd.f32 %v82, %v556
  %v558 = vpop.f32.mrb[0].mxu0
  %v559 = vpop.f32.mrb[0].mxu0
  %v560 = vadd.f32 %v82, %v559
  %v561 = vpop.f32.mrb[0].mxu0
  %562 = vmatprep.mubr.bf16.mxu0 %v383
  %563 = vmatmul.mubr.bf16.gmra.mrb[0].mxu0 %v243
  %v564 = vpop.f32.mrb[0].mxu0
  %v565 = vadd.f32 %v82, %v564
  %v566 = vpop.f32.mrb[0].mxu0
  %v567 = vpop.f32.mrb[0].mxu0
  %v568 = vadd.f32 %v82, %v567
  %v569 = vpop.f32.mrb[0].mxu0
  %570 = vmatprep.mubr.bf16.mxu0 %v386
  %571 = vmatmul.mubr.bf16.gmra.mrb[0].mxu0 %v245
  %v572 = vpop.f32.mrb[0].mxu0
  %v573 = vadd.f32 %v82, %v572
  %v574 = vpop.f32.mrb[0].mxu0
  %v575 = vpop.f32.mrb[0].mxu0
  %v576 = vadd.f32 %v82, %v575
  %v577 = vpop.f32.mrb[0].mxu0
  %578 = vmatprep.mubr.bf16.mxu0 %v389
  %579 = vmatmul.mubr.bf16.gmra.mrb[0].mxu0 %v247
  %v580 = vpop.f32.mrb[0].mxu0
  %v581 = vadd.f32 %v82, %v580
  %v582 = vpop.f32.mrb[0].mxu0
  %v583 = vpop.f32.mrb[0].mxu0
  %v584 = vadd.f32 %v82, %v583
  %v585 = vpop.f32.mrb[0].mxu0
  %586 = vmatprep.mubr.bf16.mxu0 %v392
  %587 = vmatmul.mubr.bf16.gmra.mrb[0].mxu0 %v249
  %v588 = vpop.f32.mrb[0].mxu0
  %v589 = vadd.f32 %v82, %v588
  %v590 = vpop.f32.mrb[0].mxu0
  %v591 = vpop.f32.mrb[0].mxu0
  %v592 = vadd.f32 %v82, %v591
  %v593 = vpop.f32.mrb[0].mxu0
  %594 = vmatprep.mubr.bf16.mxu0 %v395
  %595 = vmatmul.mubr.bf16.gmra.mrb[0].mxu0 %v251
  %v596 = vpop.f32.mrb[0].mxu0
  %v597 = vadd.f32 %v82, %v596
  %v598 = vpop.f32.mrb[0].mxu0
  %v599 = vpop.f32.mrb[0].mxu0
  %v600 = vadd.f32 %v82, %v599
  %v601 = vpop.f32.mrb[0].mxu0
  %602 = vmatprep.mubr.bf16.mxu0 %v398
  %603 = vmatmul.mubr.bf16.gmra.mrb[0].mxu0 %v253
  %v604 = vpop.f32.mrb[0].mxu0
  %v605 = vadd.f32 %v82, %v604
  %v606 = vpop.f32.mrb[0].mxu0
  %v607 = vpop.f32.mrb[0].mxu0
  %v608 = vadd.f32 %v82, %v607
  %v609 = vpop.f32.mrb[0].mxu0
  %610 = vmatprep.mubr.bf16.mxu0 %v401
  %611 = vmatmul.mubr.bf16.gmra.mrb[0].mxu0 %v255
  %v612 = vpop.f32.mrb[0].mxu0
  %v613 = vadd.f32 %v82, %v612
  %v614 = vpop.f32.mrb[0].mxu0
  %v615 = vpop.f32.mrb[0].mxu0
  %v616 = vpop.f32.mrb[0].mxu0
  %617 = vdwg.mxu0
  %vm618 = vcmask 261120
  %619 = vst.msk [vmem:[%s3] sm:$0xff] %vm618, %v445
  %620 = vst.msk [vmem:[%s3 + $0x8] sm:$0xff] %vm618, %v448
  %621 = vst.msk [vmem:[%s3 + $0x10] sm:$0xff] %vm618, %v453
  %622 = vst.msk [vmem:[%s3 + $0x18] sm:$0xff] %vm618, %v456
  %623 = vst.msk [vmem:[%s3 + $0x20] sm:$0xff] %vm618, %v461
  %624 = vst.msk [vmem:[%s3 + $0x28] sm:$0xff] %vm618, %v464
  %625 = vst.msk [vmem:[%s3 + $0x30] sm:$0xff] %vm618, %v469
  %626 = vst.msk [vmem:[%s3 + $0x38] sm:$0xff] %vm618, %v472
  %627 = vst.msk [vmem:[%s3 + $0x40] sm:$0xff] %vm618, %v477
  %628 = vst.msk [vmem:[%s3 + $0x48] sm:$0xff] %vm618, %v480
  %629 = vst.msk [vmem:[%s3 + $0x50] sm:$0xff] %vm618, %v485
  %630 = vst.msk [vmem:[%s3 + $0x58] sm:$0xff] %vm618, %v488
  %631 = vst.msk [vmem:[%s3 + $0x60] sm:$0xff] %vm618, %v493
  %632 = vst.msk [vmem:[%s3 + $0x68] sm:$0xff] %vm618, %v496
  %633 = vst.msk [vmem:[%s3 + $0x70] sm:$0xff] %vm618, %v501
  %634 = vst.msk [vmem:[%s3 + $0x78] sm:$0xff] %vm618, %v504
  %635 = vst.msk [vmem:[%s3 + $0x80] sm:$0xff] %vm618, %v509
  %636 = vst.msk [vmem:[%s3 + $0x88] sm:$0xff] %vm618, %v512
  %637 = vst.msk [vmem:[%s3 + $0x90] sm:$0xff] %vm618, %v517
  %638 = vst.msk [vmem:[%s3 + $0x98] sm:$0xff] %vm618, %v520
  %639 = vst.msk [vmem:[%s3 + $0xa0] sm:$0xff] %vm618, %v525
  %640 = vst.msk [vmem:[%s3 + $0xa8] sm:$0xff] %vm618, %v528
  %641 = vst.msk [vmem:[%s3 + $0xb0] sm:$0xff] %vm618, %v533
  %642 = vst.msk [vmem:[%s3 + $0xb8] sm:$0xff] %vm618, %v536
  %643 = vst.msk [vmem:[%s3 + $0xc0] sm:$0xff] %vm618, %v541
  %644 = vst.msk [vmem:[%s3 + $0xc8] sm:$0xff] %vm618, %v544
  %645 = vst.msk [vmem:[%s3 + $0xd0] sm:$0xff] %vm618, %v549
  %646 = vst.msk [vmem:[%s3 + $0xd8] sm:$0xff] %vm618, %v552
  %647 = vst.msk [vmem:[%s3 + $0xe0] sm:$0xff] %vm618, %v557
  %648 = vst.msk [vmem:[%s3 + $0xe8] sm:$0xff] %vm618, %v560
  %649 = vst.msk [vmem:[%s3 + $0xf0] sm:$0xff] %vm618, %v565
  %650 = vst.msk [vmem:[%s3 + $0xf8] sm:$0xff] %vm618, %v568
  %651 = vst.msk [vmem:[%s3 + $0x100] sm:$0xff] %vm618, %v573
  %652 = vst.msk [vmem:[%s3 + $0x108] sm:$0xff] %vm618, %v576
  %653 = vst.msk [vmem:[%s3 + $0x110] sm:$0xff] %vm618, %v581
  %654 = vst.msk [vmem:[%s3 + $0x118] sm:$0xff] %vm618, %v584
  %655 = vst.msk [vmem:[%s3 + $0x120] sm:$0xff] %vm618, %v589
  %656 = vst.msk [vmem:[%s3 + $0x128] sm:$0xff] %vm618, %v592
  %657 = vst.msk [vmem:[%s3 + $0x130] sm:$0xff] %vm618, %v597
  %658 = vst.msk [vmem:[%s3 + $0x138] sm:$0xff] %vm618, %v600
  %659 = vst.msk [vmem:[%s3 + $0x140] sm:$0xff] %vm618, %v605
  %660 = vst.msk [vmem:[%s3 + $0x148] sm:$0xff] %vm618, %v608
  %661 = vst.msk [vmem:[%s3 + $0x150] sm:$0xff] %vm618, %v613
  // Predicated region
  $region14: #{invnet_forward.11} parent=0 // pred_check
    _
  $region15: #{invnet_forward.11} parent=0 // pred_check_branch
    %663 = sbr.rel (0) target = $region17
  $region16: #{invnet_forward.11} parent=0 // pred_region
    _
  $region17: #{invnet_forward.11} parent=0 // pred_fallthru
    _
  // Predicated region
  $region18: #{invnet_forward.11} parent=0 // pred_check
    _
  $region19: #{invnet_forward.11} parent=0 // pred_check_branch
    %665 = sbr.rel (0) target = $region21
  $region20: #{invnet_forward.11} parent=0 // pred_region
    _
  $region21: #{invnet_forward.11} parent=0 // pred_fallthru
    _

// kernel: invnet_forward.12
$region0: #{invnet_forward.12}
  #allocation0 [shape = 'u32[]', space=smem, size = 0x4, offset = 0x4, fixed_abs, tag = 'smem constant byte address 0x4 - core index']
  #allocation1 [shape = 'u32[144,128]{1,0:T(1,128)}', space=vmem, size = 0x12000, scoped, tag = 'internal scratch']
  %s0 = inlined_call_operand.vmem [shape: f32[72,32], index: 0, kind: input, shape index: {}]
  %s1 = inlined_call_operand.vmem [shape: f32[1,32], index: 1, kind: input, shape index: {}]
  %s2 = inlined_call_operand.vmem [shape: f32[1,32], index: 2, kind: input, shape index: {}]
  %s3 = inlined_call_operand.vmem [shape: f32[72,32], index: 3, kind: output, shape index: {}]
  %s4 = sld [smem:[#allocation0]]
  $region22: #{invnet_forward.12} parent=0
    _
  %s6 = ssub.s32 1, %s4
  %s7 = scalar_select 0, %s6, %s4
  // Predicated region
  $region2: #{invnet_forward.12} parent=0 // pred_check
    _
  $region3: #{invnet_forward.12} parent=0 // pred_check_branch
    %9 = sbr.rel (0) target = $region5
  $region4: #{invnet_forward.12} parent=0 // pred_region
    _
  $region5: #{invnet_forward.12} parent=0 // pred_fallthru
    _
  // Predicated region
  $region6: #{invnet_forward.12} parent=0 // pred_check
    _
  $region7: #{invnet_forward.12} parent=0 // pred_check_branch
    %11 = sbr.rel (0) target = $region9
  $region8: #{invnet_forward.12} parent=0 // pred_region
    _
  $region9: #{invnet_forward.12} parent=0 // pred_fallthru
    _
  // Predicated region
  $region10: #{invnet_forward.12} parent=0 // pred_check
    _
  $region11: #{invnet_forward.12} parent=0 // pred_check_branch
    %13 = sbr.rel (0) target = $region13
  $region12: #{invnet_forward.12} parent=0 // pred_region
    _
  $region13: #{invnet_forward.12} parent=0 // pred_fallthru
    _
  %v14 = vld [vmem:[%s0] sm:$0xff]
  %v15 = vld [vmem:[%s0 + $0x8] sm:$0xff]
  %v16 = vld [vmem:[%s0 + $0x10] sm:$0xff]
  %v17 = vld [vmem:[%s0 + $0x18] sm:$0xff]
  %v18 = vld [vmem:[%s0 + $0x20] sm:$0xff]
  %v19 = vld [vmem:[%s0 + $0x28] sm:$0xff]
  %v20 = vld [vmem:[%s0 + $0x30] sm:$0xff]
  %v21 = vld [vmem:[%s0 + $0x38] sm:$0xff]
  %v22 = vld [vmem:[%s0 + $0x40] sm:$0xff]
  %vm23 = vcmask 261120
  %v24 = vsel %vm23, %v14, 0.0
  %25 = vadd.xlane.f32.xlu0 %v24
  %v26 = vpop.xlane.xlu0 %25
  %v27 = vsel %vm23, %v15, 0.0
  %28 = vadd.xlane.f32.xlu0 %v27
  %v29 = vpop.xlane.xlu0 %28
  %v30 = vsel %vm23, %v16, 0.0
  %31 = vadd.xlane.f32.xlu0 %v30
  %v32 = vpop.xlane.xlu0 %31
  %v33 = vsel %vm23, %v17, 0.0
  %34 = vadd.xlane.f32.xlu0 %v33
  %v35 = vpop.xlane.xlu0 %34
  %v36 = vsel %vm23, %v18, 0.0
  %37 = vadd.xlane.f32.xlu0 %v36
  %v38 = vpop.xlane.xlu0 %37
  %v39 = vsel %vm23, %v19, 0.0
  %40 = vadd.xlane.f32.xlu0 %v39
  %v41 = vpop.xlane.xlu0 %40
  %v42 = vsel %vm23, %v20, 0.0
  %43 = vadd.xlane.f32.xlu0 %v42
  %v44 = vpop.xlane.xlu0 %43
  %v45 = vsel %vm23, %v21, 0.0
  %46 = vadd.xlane.f32.xlu0 %v45
  %v47 = vpop.xlane.xlu0 %46
  %v48 = vsel %vm23, %v22, 0.0
  %49 = vadd.xlane.f32.xlu0 %v48
  %v50 = vpop.xlane.xlu0 %49
  %v51 = vrcp.pop 32.0
  %v52 = vmul.f32 %v26, %v51
  %v53 = vmul.f32 %v29, %v51
  %v54 = vmul.f32 %v32, %v51
  %v55 = vmul.f32 %v35, %v51
  %v56 = vmul.f32 %v38, %v51
  %v57 = vmul.f32 %v41, %v51
  %v58 = vmul.f32 %v44, %v51
  %v59 = vmul.f32 %v47, %v51
  %v60 = vmul.f32 %v50, %v51
  %v61 = vsub.f32 %v14, %v52
  %v62 = vsub.f32 %v15, %v53
  %v63 = vsub.f32 %v16, %v54
  %v64 = vsub.f32 %v17, %v55
  %v65 = vsub.f32 %v18, %v56
  %v66 = vsub.f32 %v19, %v57
  %v67 = vsub.f32 %v20, %v58
  %v68 = vsub.f32 %v21, %v59
  %v69 = vsub.f32 %v22, %v60
  %v70 = vmul.f32 %v61, %v61
  %v71 = vmul.f32 %v62, %v62
  %v72 = vmul.f32 %v63, %v63
  %v73 = vmul.f32 %v64, %v64
  %v74 = vmul.f32 %v65, %v65
  %v75 = vmul.f32 %v66, %v66
  %v76 = vmul.f32 %v67, %v67
  %v77 = vmul.f32 %v68, %v68
  %v78 = vmul.f32 %v69, %v69
  %v79 = vsel %vm23, %v70, 0.0
  %80 = vadd.xlane.f32.xlu0 %v79
  %v81 = vpop.xlane.xlu0 %80
  %v82 = vsel %vm23, %v71, 0.0
  %83 = vadd.xlane.f32.xlu0 %v82
  %v84 = vpop.xlane.xlu0 %83
  %v85 = vsel %vm23, %v72, 0.0
  %86 = vadd.xlane.f32.xlu0 %v85
  %v87 = vpop.xlane.xlu0 %86
  %v88 = vsel %vm23, %v73, 0.0
  %89 = vadd.xlane.f32.xlu0 %v88
  %v90 = vpop.xlane.xlu0 %89
  %v91 = vsel %vm23, %v74, 0.0
  %92 = vadd.xlane.f32.xlu0 %v91
  %v93 = vpop.xlane.xlu0 %92
  %v94 = vsel %vm23, %v75, 0.0
  %95 = vadd.xlane.f32.xlu0 %v94
  %v96 = vpop.xlane.xlu0 %95
  %v97 = vsel %vm23, %v76, 0.0
  %98 = vadd.xlane.f32.xlu0 %v97
  %v99 = vpop.xlane.xlu0 %98
  %v100 = vsel %vm23, %v77, 0.0
  %101 = vadd.xlane.f32.xlu0 %v100
  %v102 = vpop.xlane.xlu0 %101
  %v103 = vsel %vm23, %v78, 0.0
  %104 = vadd.xlane.f32.xlu0 %v103
  %v105 = vpop.xlane.xlu0 %104
  %v106 = vmul.f32 %v81, %v51
  %v107 = vmul.f32 %v84, %v51
  %v108 = vmul.f32 %v87, %v51
  %v109 = vmul.f32 %v90, %v51
  %v110 = vmul.f32 %v93, %v51
  %v111 = vmul.f32 %v96, %v51
  %v112 = vmul.f32 %v99, %v51
  %v113 = vmul.f32 %v102, %v51
  %v114 = vmul.f32 %v105, %v51
  %v115 = vadd.f32 %v106, 1e-06
  %v116 = vadd.f32 %v107, 1e-06
  %v117 = vadd.f32 %v108, 1e-06
  %v118 = vadd.f32 %v109, 1e-06
  %v119 = vadd.f32 %v110, 1e-06
  %v120 = vadd.f32 %v111, 1e-06
  %v121 = vadd.f32 %v112, 1e-06
  %v122 = vadd.f32 %v113, 1e-06
  %v123 = vadd.f32 %v114, 1e-06
  %v124 = vrsqrt.pop %v115
  %v125 = vrsqrt.pop %v116
  %v126 = vrsqrt.pop %v117
  %v127 = vrsqrt.pop %v118
  %v128 = vrsqrt.pop %v119
  %v129 = vrsqrt.pop %v120
  %v130 = vrsqrt.pop %v121
  %v131 = vrsqrt.pop %v122
  %v132 = vrsqrt.pop %v123
  %v133 = vmul.f32 %v61, %v124
  %v134 = vmul.f32 %v62, %v125
  %v135 = vmul.f32 %v63, %v126
  %v136 = vmul.f32 %v64, %v127
  %v137 = vmul.f32 %v65, %v128
  %v138 = vmul.f32 %v66, %v129
  %v139 = vmul.f32 %v67, %v130
  %v140 = vmul.f32 %v68, %v131
  %v141 = vmul.f32 %v69, %v132
  %v142 = vld [vmem:[%s1] sm:$0x1]
  %v144 = vlaneseq
  %v145 = vshrl.u32 %v144, 7
  %v146 = vsub.s32 0, %v145
  %v147 = vrot.slane %v142, %v146
  %v149 = vmul.f32 %v133, %v147
  %v150 = vmul.f32 %v134, %v147
  %v151 = vmul.f32 %v135, %v147
  %v152 = vmul.f32 %v136, %v147
  %v153 = vmul.f32 %v137, %v147
  %v154 = vmul.f32 %v138, %v147
  %v155 = vmul.f32 %v139, %v147
  %v156 = vmul.f32 %v140, %v147
  %v157 = vmul.f32 %v141, %v147
  %v158 = vld [vmem:[%s2] sm:$0x1]
  %v160 = vlaneseq
  %v161 = vshrl.u32 %v160, 7
  %v162 = vsub.s32 0, %v161
  %v163 = vrot.slane %v158, %v162
  %v165 = vadd.f32 %v149, %v163
  %v166 = vadd.f32 %v150, %v163
  %v167 = vadd.f32 %v151, %v163
  %v168 = vadd.f32 %v152, %v163
  %v169 = vadd.f32 %v153, %v163
  %v170 = vadd.f32 %v154, %v163
  %v171 = vadd.f32 %v155, %v163
  %v172 = vadd.f32 %v156, %v163
  %v173 = vadd.f32 %v157, %v163
  %174 = vst.msk [vmem:[%s3] sm:$0xff] %vm23, %v165
  %175 = vst.msk [vmem:[%s3 + $0x8] sm:$0xff] %vm23, %v166
  %176 = vst.msk [vmem:[%s3 + $0x10] sm:$0xff] %vm23, %v167
  %177 = vst.msk [vmem:[%s3 + $0x18] sm:$0xff] %vm23, %v168
  %178 = vst.msk [vmem:[%s3 + $0x20] sm:$0xff] %vm23, %v169
  %179 = vst.msk [vmem:[%s3 + $0x28] sm:$0xff] %vm23, %v170
  %180 = vst.msk [vmem:[%s3 + $0x30] sm:$0xff] %vm23, %v171
  %181 = vst.msk [vmem:[%s3 + $0x38] sm:$0xff] %vm23, %v172
  %182 = vst.msk [vmem:[%s3 + $0x40] sm:$0xff] %vm23, %v173
  // Predicated region
  $region14: #{invnet_forward.12} parent=0 // pred_check
    _
  $region15: #{invnet_forward.12} parent=0 // pred_check_branch
    %184 = sbr.rel (0) target = $region17
  $region16: #{invnet_forward.12} parent=0 // pred_region
    _
  $region17: #{invnet_forward.12} parent=0 // pred_fallthru
    _
  // Predicated region
  $region18: #{invnet_forward.12} parent=0 // pred_check
    _
  $region19: #{invnet_forward.12} parent=0 // pred_check_branch
    %186 = sbr.rel (0) target = $region21
  $region20: #{invnet_forward.12} parent=0 // pred_region
    _
  $region21: #{invnet_forward.12} parent=0 // pred_fallthru
    _

// kernel: invnet_forward.13
$region0: #{invnet_forward.13}
  #allocation0 [shape = 'u32[]', space=smem, size = 0x4, offset = 0x4, fixed_abs, tag = 'smem constant byte address 0x4 - core index']
  #allocation1 [shape = 'u32[144,128]{1,0:T(1,128)}', space=vmem, size = 0x12000, scoped, tag = 'internal scratch']
  %s0 = inlined_call_operand.vmem [shape: bf16[72,32], index: 0, kind: input, shape index: {}]
  %s1 = inlined_call_operand.vmem [shape: bf16[32,8], index: 1, kind: input, shape index: {}]
  %s2 = inlined_call_operand.vmem [shape: f32[1,8], index: 2, kind: input, shape index: {}]
  %s3 = inlined_call_operand.vmem [shape: bf16[8,18], index: 3, kind: input, shape index: {}]
  %s4 = inlined_call_operand.vmem [shape: f32[1,18], index: 4, kind: input, shape index: {}]
  %s5 = inlined_call_operand.vmem [shape: f32[72,18], index: 5, kind: output, shape index: {}]
  %s6 = sld [smem:[#allocation0]]
  $region30: #{invnet_forward.13} parent=0
    _
  %s8 = ssub.s32 1, %s6
  %s9 = scalar_select 0, %s8, %s6
  // Predicated region
  $region2: #{invnet_forward.13} parent=0 // pred_check
    _
  $region3: #{invnet_forward.13} parent=0 // pred_check_branch
    %11 = sbr.rel (0) target = $region5
  $region4: #{invnet_forward.13} parent=0 // pred_region
    _
  $region5: #{invnet_forward.13} parent=0 // pred_fallthru
    _
  // Predicated region
  $region6: #{invnet_forward.13} parent=0 // pred_check
    _
  $region7: #{invnet_forward.13} parent=0 // pred_check_branch
    %13 = sbr.rel (0) target = $region9
  $region8: #{invnet_forward.13} parent=0 // pred_region
    _
  $region9: #{invnet_forward.13} parent=0 // pred_fallthru
    _
  // Predicated region
  $region10: #{invnet_forward.13} parent=0 // pred_check
    _
  $region11: #{invnet_forward.13} parent=0 // pred_check_branch
    %15 = sbr.rel (0) target = $region13
  $region12: #{invnet_forward.13} parent=0 // pred_region
    _
  $region13: #{invnet_forward.13} parent=0 // pred_fallthru
    _
  // Predicated region
  $region14: #{invnet_forward.13} parent=0 // pred_check
    _
  $region15: #{invnet_forward.13} parent=0 // pred_check_branch
    %17 = sbr.rel (0) target = $region17
  $region16: #{invnet_forward.13} parent=0 // pred_region
    _
  $region17: #{invnet_forward.13} parent=0 // pred_fallthru
    _
  // Predicated region
  $region18: #{invnet_forward.13} parent=0 // pred_check
    _
  $region19: #{invnet_forward.13} parent=0 // pred_check_branch
    %19 = sbr.rel (0) target = $region21
  $region20: #{invnet_forward.13} parent=0 // pred_region
    _
  $region21: #{invnet_forward.13} parent=0 // pred_fallthru
    _
  %v21 = vld [vmem:[%s0] sm:$0xf]
  %v22 = vld [vmem:[%s0 + $0x4] sm:$0xf]
  %v23 = vld [vmem:[%s0 + $0x8] sm:$0xf]
  %v24 = vld [vmem:[%s0 + $0xc] sm:$0xf]
  %v25 = vld [vmem:[%s0 + $0x10] sm:$0xf]
  %v26 = vld [vmem:[%s0 + $0x14] sm:$0xf]
  %v27 = vld [vmem:[%s0 + $0x18] sm:$0xf]
  %v28 = vld [vmem:[%s0 + $0x1c] sm:$0xf]
  %v29 = vld [vmem:[%s0 + $0x20] sm:$0xf]
  %v30 = vld [vmem:[%s1] sm:$0xf]
  %v31 = vld [vmem:[%s1 + $0x4] sm:$0xf]
  %v32 = vld [vmem:[%s1 + $0x8] sm:$0xf]
  %v33 = vld [vmem:[%s1 + $0xc] sm:$0xf]
  %v34 = vld [vmem:[%s2] sm:$0x1]
  %v36 = vlaneseq
  %v37 = vshrl.u32 %v36, 7
  %v38 = vsub.s32 0, %v37
  %v39 = vrot.slane %v34, %v38
  %v50 = vunpack.c.l.b16 %v21
  %v51 = vunpack.c.l.b16 %v22
  %v52 = vunpack.c.l.b16 %v23
  %v53 = vunpack.c.l.b16 %v24
  %v54 = vunpack.c.l.b16 %v25
  %v55 = vunpack.c.l.b16 %v26
  %v56 = vunpack.c.l.b16 %v27
  %v57 = vunpack.c.l.b16 %v28
  %v58 = vunpack.c.l.b16 %v29
  %v59 = vpack.c.b16 %v51, %v50
  %v60 = vpack.c.b16 %v53, %v52
  %v61 = vpack.c.b16 %v55, %v54
  %v62 = vpack.c.b16 %v57, %v56
  %v63 = vpack.c.b16 %v58, %v58
  %v68 = vunpack.c.l.b16 %v30
  %v69 = vunpack.c.l.b16 %v31
  %v70 = vunpack.c.l.b16 %v32
  %v71 = vunpack.c.l.b16 %v33
  %v72 = vpack.c.b16 %v69, %v68
  %v73 = vpack.c.b16 %v71, %v70
  %vm76 = vcmask 261120
  %v78 = vsel %vm76, %v59, 0
  %v81 = vsel %vm76, %v60, 0
  %v84 = vsel %vm76, %v61, 0
  %v87 = vsel %vm76, %v62, 0
  %v90 = vsel %vm76, %v63, 0
  %92 = vmatprep.subr.bf16.mxu0 0
  %93 = vmatpush1.bf16.msra.mxu0 %v72
  %94 = vmatprep.subr.bf16.mxu0 0
  %95 = vmatpush1.bf16.msra.mxu0 %v73
  %96 = vmatprep.subr.bf16.mxu0 0
  %97 = vmatpush1.bf16.msra.mxu0 0
  %98 = vmatprep.subr.bf16.mxu0 0
  %99 = vmatpush1.bf16.msra.mxu0 0
  %100 = vmatprep.subr.bf16.mxu0 0
  %101 = vmatpush1.bf16.msra.mxu0 0
  %102 = vmatprep.subr.bf16.mxu0 0
  %103 = vmatpush1.bf16.msra.mxu0 0
  %104 = vmatprep.subr.bf16.mxu0 0
  %105 = vmatpush1.bf16.msra.mxu0 0
  %106 = vmatprep.subr.bf16.mxu0 0
  %107 = vmatpush1.bf16.msra.mxu0 0
  %108 = vmatprep.subr.bf16.mxu0 0
  %109 = vmatpush1.bf16.msra.mxu0 0
  %110 = vmatprep.subr.bf16.mxu0 0
  %111 = vmatpush1.bf16.msra.mxu0 0
  %112 = vmatprep.subr.bf16.mxu0 0
  %113 = vmatpush1.bf16.msra.mxu0 0
  %114 = vmatprep.subr.bf16.mxu0 0
  %115 = vmatpush1.bf16.msra.mxu0 0
  %116 = vmatprep.subr.bf16.mxu0 0
  %117 = vmatpush1.bf16.msra.mxu0 0
  %118 = vmatprep.subr.bf16.mxu0 0
  %119 = vmatpush1.bf16.msra.mxu0 0
  %120 = vmatprep.subr.bf16.mxu0 0
  %121 = vmatpush1.bf16.msra.mxu0 0
  %122 = vmatprep.subr.bf16.mxu0 0
  %123 = vmatpush1.bf16.msra.mxu0 0
  %124 = vmatprep.mubr.bf16.mxu0 0
  %125 = vmatmul.mubr.bf16.gmra.mrb[0].mxu0 %v78
  %v126 = vpop.f32.mrb[0].mxu0
  %v127 = vadd.f32 %v39, %v126
  %v128 = vpop.f32.mrb[0].mxu0
  %v129 = vpop.f32.mrb[0].mxu0
  %v130 = vadd.f32 %v39, %v129
  %v131 = vpop.f32.mrb[0].mxu0
  %132 = vmatprep.mubr.bf16.mxu0 0
  %133 = vmatmul.mubr.bf16.gmra.mrb[0].mxu0 %v81
  %v134 = vpop.f32.mrb[0].mxu0
  %v135 = vadd.f32 %v39, %v134
  %v136 = vpop.f32.mrb[0].mxu0
  %v137 = vpop.f32.mrb[0].mxu0
  %v138 = vadd.f32 %v39, %v137
  %v139 = vpop.f32.mrb[0].mxu0
  %140 = vmatprep.mubr.bf16.mxu0 0
  %141 = vmatmul.mubr.bf16.gmra.mrb[0].mxu0 %v84
  %v142 = vpop.f32.mrb[0].mxu0
  %v143 = vadd.f32 %v39, %v142
  %v144 = vpop.f32.mrb[0].mxu0
  %v145 = vpop.f32.mrb[0].mxu0
  %v146 = vadd.f32 %v39, %v145
  %v147 = vpop.f32.mrb[0].mxu0
  %148 = vmatprep.mubr.bf16.mxu0 0
  %149 = vmatmul.mubr.bf16.gmra.mrb[0].mxu0 %v87
  %v150 = vpop.f32.mrb[0].mxu0
  %v151 = vadd.f32 %v39, %v150
  %v152 = vpop.f32.mrb[0].mxu0
  %v153 = vpop.f32.mrb[0].mxu0
  %v154 = vadd.f32 %v39, %v153
  %v155 = vpop.f32.mrb[0].mxu0
  %156 = vmatprep.mubr.bf16.mxu0 0
  %157 = vmatmul.mubr.bf16.gmra.mrb[0].mxu0 %v90
  %v158 = vpop.f32.mrb[0].mxu0
  %v159 = vadd.f32 %v39, %v158
  %v160 = vpop.f32.mrb[0].mxu0
  %v161 = vpop.f32.mrb[0].mxu0
  %v162 = vpop.f32.mrb[0].mxu0
  %163 = vdwg.mxu0
  %v164 = vmax.f32 %v127, 0.0
  %v165 = vmax.f32 %v130, 0.0
  %v166 = vmax.f32 %v135, 0.0
  %v167 = vmax.f32 %v138, 0.0
  %v168 = vmax.f32 %v143, 0.0
  %v169 = vmax.f32 %v146, 0.0
  %v170 = vmax.f32 %v151, 0.0
  %v171 = vmax.f32 %v154, 0.0
  %v172 = vmax.f32 %v159, 0.0
  %v173 = vpack.c.bf16 %v165, %v164
  %v174 = vpack.c.bf16 %v167, %v166
  %v175 = vpack.c.bf16 %v169, %v168
  %v176 = vpack.c.bf16 %v171, %v170
  %v177 = vpack.c.bf16 %v172, %v172
  %v178 = vld [vmem:[%s3] sm:$0xf]
  %v179 = vld [vmem:[%s4] sm:$0x1]
  %v181 = vlaneseq
  %v182 = vshrl.u32 %v181, 7
  %v183 = vsub.s32 0, %v182
  %v184 = vrot.slane %v179, %v183
  %vm186 = vcmask 64512
  %v188 = vsel %vm186, %v173, 0
  %v191 = vsel %vm186, %v174, 0
  %v194 = vsel %vm186, %v175, 0
  %v197 = vsel %vm186, %v176, 0
  %v200 = vsel %vm186, %v177, 0
  %vm202 = vcmask 1043456
  %v204 = vsel %vm202, %v178, 0
  %206 = vmatprep.subr.bf16.mxu0 0
  %207 = vmatpush1.bf16.msra.mxu0 %v204
  %208 = vmatprep.subr.bf16.mxu0 0
  %209 = vmatpush1.bf16.msra.mxu0 0
  %210 = vmatprep.subr.bf16.mxu0 0
  %211 = vmatpush1.bf16.msra.mxu0 0
  %212 = vmatprep.subr.bf16.mxu0 0
  %213 = vmatpush1.bf16.msra.mxu0 0
  %214 = vmatprep.subr.bf16.mxu0 0
  %215 = vmatpush1.bf16.msra.mxu0 0
  %216 = vmatprep.subr.bf16.mxu0 0
  %217 = vmatpush1.bf16.msra.mxu0 0
  %218 = vmatprep.subr.bf16.mxu0 0
  %219 = vmatpush1.bf16.msra.mxu0 0
  %220 = vmatprep.subr.bf16.mxu0 0
  %221 = vmatpush1.bf16.msra.mxu0 0
  %222 = vmatprep.subr.bf16.mxu0 0
  %223 = vmatpush1.bf16.msra.mxu0 0
  %224 = vmatprep.subr.bf16.mxu0 0
  %225 = vmatpush1.bf16.msra.mxu0 0
  %226 = vmatprep.subr.bf16.mxu0 0
  %227 = vmatpush1.bf16.msra.mxu0 0
  %228 = vmatprep.subr.bf16.mxu0 0
  %229 = vmatpush1.bf16.msra.mxu0 0
  %230 = vmatprep.subr.bf16.mxu0 0
  %231 = vmatpush1.bf16.msra.mxu0 0
  %232 = vmatprep.subr.bf16.mxu0 0
  %233 = vmatpush1.bf16.msra.mxu0 0
  %234 = vmatprep.subr.bf16.mxu0 0
  %235 = vmatpush1.bf16.msra.mxu0 0
  %236 = vmatprep.subr.bf16.mxu0 0
  %237 = vmatpush1.bf16.msra.mxu0 0
  %238 = vmatprep.mubr.bf16.mxu0 0
  %239 = vmatmul.mubr.bf16.gmra.mrb[0].mxu0 %v188
  %v240 = vpop.f32.mrb[0].mxu0
  %v241 = vadd.f32 %v184, %v240
  %v242 = vpop.f32.mrb[0].mxu0
  %v243 = vpop.f32.mrb[0].mxu0
  %v244 = vadd.f32 %v184, %v243
  %v245 = vpop.f32.mrb[0].mxu0
  %246 = vmatprep.mubr.bf16.mxu0 0
  %247 = vmatmul.mubr.bf16.gmra.mrb[0].mxu0 %v191
  %v248 = vpop.f32.mrb[0].mxu0
  %v249 = vadd.f32 %v184, %v248
  %v250 = vpop.f32.mrb[0].mxu0
  %v251 = vpop.f32.mrb[0].mxu0
  %v252 = vadd.f32 %v184, %v251
  %v253 = vpop.f32.mrb[0].mxu0
  %254 = vmatprep.mubr.bf16.mxu0 0
  %255 = vmatmul.mubr.bf16.gmra.mrb[0].mxu0 %v194
  %v256 = vpop.f32.mrb[0].mxu0
  %v257 = vadd.f32 %v184, %v256
  %v258 = vpop.f32.mrb[0].mxu0
  %v259 = vpop.f32.mrb[0].mxu0
  %v260 = vadd.f32 %v184, %v259
  %v261 = vpop.f32.mrb[0].mxu0
  %262 = vmatprep.mubr.bf16.mxu0 0
  %263 = vmatmul.mubr.bf16.gmra.mrb[0].mxu0 %v197
  %v264 = vpop.f32.mrb[0].mxu0
  %v265 = vadd.f32 %v184, %v264
  %v266 = vpop.f32.mrb[0].mxu0
  %v267 = vpop.f32.mrb[0].mxu0
  %v268 = vadd.f32 %v184, %v267
  %v269 = vpop.f32.mrb[0].mxu0
  %270 = vmatprep.mubr.bf16.mxu0 0
  %271 = vmatmul.mubr.bf16.gmra.mrb[0].mxu0 %v200
  %v272 = vpop.f32.mrb[0].mxu0
  %v273 = vadd.f32 %v184, %v272
  %v274 = vpop.f32.mrb[0].mxu0
  %v275 = vpop.f32.mrb[0].mxu0
  %v276 = vpop.f32.mrb[0].mxu0
  %277 = vdwg.mxu0
  %vm278 = vcmask 146432
  %279 = vst.msk [vmem:[%s5] sm:$0xff] %vm278, %v241
  %280 = vst.msk [vmem:[%s5 + $0x8] sm:$0xff] %vm278, %v244
  %281 = vst.msk [vmem:[%s5 + $0x10] sm:$0xff] %vm278, %v249
  %282 = vst.msk [vmem:[%s5 + $0x18] sm:$0xff] %vm278, %v252
  %283 = vst.msk [vmem:[%s5 + $0x20] sm:$0xff] %vm278, %v257
  %284 = vst.msk [vmem:[%s5 + $0x28] sm:$0xff] %vm278, %v260
  %285 = vst.msk [vmem:[%s5 + $0x30] sm:$0xff] %vm278, %v265
  %286 = vst.msk [vmem:[%s5 + $0x38] sm:$0xff] %vm278, %v268
  %287 = vst.msk [vmem:[%s5 + $0x40] sm:$0xff] %vm278, %v273
  // Predicated region
  $region22: #{invnet_forward.13} parent=0 // pred_check
    _
  $region23: #{invnet_forward.13} parent=0 // pred_check_branch
    %289 = sbr.rel (0) target = $region25
  $region24: #{invnet_forward.13} parent=0 // pred_region
    _
  $region25: #{invnet_forward.13} parent=0 // pred_fallthru
    _
  // Predicated region
  $region26: #{invnet_forward.13} parent=0 // pred_check
    _
  $region27: #{invnet_forward.13} parent=0 // pred_check_branch
    %291 = sbr.rel (0) target = $region29
  $region28: #{invnet_forward.13} parent=0 // pred_region
    _
  $region29: #{invnet_forward.13} parent=0 // pred_fallthru
    _

// kernel: invnet_forward.14
$region0: #{invnet_forward.14}
  #allocation0 [shape = 'u32[]', space=smem, size = 0x4, offset = 0x4, fixed_abs, tag = 'smem constant byte address 0x4 - core index']
  #allocation1 [shape = 'u32[144,128]{1,0:T(1,128)}', space=vmem, size = 0x12000, scoped, tag = 'internal scratch']
  %s0 = inlined_call_operand.vmem [shape: f32[4,16,8,8], index: 0, kind: input, shape index: {}]
  %s1 = inlined_call_operand.vmem [shape: f32[4,9,6,6], index: 1, kind: input, shape index: {}]
  %s2 = inlined_call_operand.vmem [shape: f32[4,16,6,6], index: 2, kind: output, shape index: {}]
  %s3 = sld [smem:[#allocation0]]
  $region41: #{invnet_forward.14} parent=0
    _
  %s5 = ssub.s32 1, %s3
  %s6 = scalar_select 0, %s5, %s3
  loop: start=0, step=1, limit=6
  $region2: #{invnet_forward.14} parent=0 // loop_pre_header
    _
  $region3: #{invnet_forward.14} parent=0 // loop_header
    %s8 = sphi 0, %s12
    %p9 = scmp.ge.s32.totalorder %s8, 6
    %s18 = sphi 0, %s20
    %s21 = sphi 0, %s18
    %s22 = sphi 0, %s21
    %s38 = sphi 0, %s22
    %s44 = sphi 0, %s46
    %s47 = sphi 0, %s44
    %s48 = sphi 0, %s47
    %s64 = sphi 0, %s48
    %s70 = sphi 0, %s72
    %s73 = sphi 0, %s70
    %s74 = sphi 0, %s73
    %s90 = sphi 0, %s74
  $region4: #{invnet_forward.14} parent=0 // loop_header_branch
    %11 = sbr.rel (%p9) target = $region8
  $region5: #{invnet_forward.14} parent=0 // loop_body
    %s13 = ssub.s32 %s8, 1
    %s14 = ssub.s32 %s8, 2
    %s15 = sadd.s32 %s8, 1
    %s16 = ssub.s32 %s8, %s15
    %p17 = scmp.eq.s32.totalorder %s16, 0
    %s19 = sadd.s32 %s18, 1
    %s20 = scalar_select %p17, %s18, %s19
    %p23 = pneg %p17
    %p24 = scmp.eq.s32.totalorder %s8, 3
    %p25 = por %p23, %p24
    %p26 = scmp.ne.s32.totalorder %s18, %s21
    %p27 = scmp.eq.s32.totalorder %s8, 0
    %p28 = por %p26, %p27
    %p29 = scmp.ne.s32.totalorder %s18, %s21
    %p30 = scmp.eq.s32.totalorder %s13, 3
    %p31 = por %p29, %p30
    %p32 = scmp.ne.s32.totalorder %s21, %s22
    %p33 = scmp.eq.s32.totalorder %s13, 0
    %p34 = por %p32, %p33
    %p35 = scmp.ne.s32.totalorder %s21, %s22
    %p36 = scmp.eq.s32.totalorder %s14, 3
    %p37 = por %p35, %p36
    %p39 = scmp.ne.s32.totalorder %s22, %s38
    %p40 = scmp.eq.s32.totalorder %s14, 0
    %p41 = por %p39, %p40
    %s42 = ssub.s32 %s8, %s15
    %p43 = scmp.eq.s32.totalorder %s42, 0
    %s45 = sadd.s32 %s44, 1
    %s46 = scalar_select %p43, %s44, %s45
    %p49 = pneg %p43
    %p50 = scmp.eq.s32.totalorder %s8, 3
    %p51 = por %p49, %p50
    %p52 = scmp.ne.s32.totalorder %s44, %s47
    %p53 = scmp.eq.s32.totalorder %s8, 0
    %p54 = por %p52, %p53
    %p55 = scmp.ne.s32.totalorder %s44, %s47
    %p56 = scmp.eq.s32.totalorder %s13, 3
    %p57 = por %p55, %p56
    %p58 = scmp.ne.s32.totalorder %s47, %s48
    %p59 = scmp.eq.s32.totalorder %s13, 0
    %p60 = por %p58, %p59
    %p61 = scmp.ne.s32.totalorder %s47, %s48
    %p62 = scmp.eq.s32.totalorder %s14, 3
    %p63 = por %p61, %p62
    %p65 = scmp.ne.s32.totalorder %s48, %s64
    %p66 = scmp.eq.s32.totalorder %s14, 0
    %p67 = por %p65, %p66
    %s68 = ssub.s32 %s8, %s15
    %p69 = scmp.eq.s32.totalorder %s68, 0
    %s71 = sadd.s32 %s70, 1
    %s72 = scalar_select %p69, %s70, %s71
    %p75 = pneg %p69
    %p76 = scmp.eq.s32.totalorder %s8, 3
    %p77 = por %p75, %p76
    %p78 = scmp.ne.s32.totalorder %s70, %s73
    %p79 = scmp.eq.s32.totalorder %s8, 0
    %p80 = por %p78, %p79
    %p81 = scmp.ne.s32.totalorder %s70, %s73
    %p82 = scmp.eq.s32.totalorder %s13, 3
    %p83 = por %p81, %p82
    %p84 = scmp.ne.s32.totalorder %s73, %s74
    %p85 = scmp.eq.s32.totalorder %s13, 0
    %p86 = por %p84, %p85
    %p87 = scmp.ne.s32.totalorder %s73, %s74
    %p88 = scmp.eq.s32.totalorder %s14, 3
    %p89 = por %p87, %p88
    %p91 = scmp.ne.s32.totalorder %s74, %s90
    %p92 = scmp.eq.s32.totalorder %s14, 0
    %p93 = por %p91, %p92
    %p94 = scmp.le.s32.totalorder 1, %s8
    %p95 = scmp.lt.s32.totalorder %s8, 5
    %p96 = pnand %p94, %p95
    %p97 = pneg %p96
    // Predicated region
    $region9: #{invnet_forward.14} parent=5 // pred_check
      _
    $region10: #{invnet_forward.14} parent=5 // pred_check_branch
      %99 = sbr.rel (%p96) target = $region12
    $region11: #{invnet_forward.14} parent=5 // pred_region
      %s100 = ssub.s32 %s8, 1
    $region12: #{invnet_forward.14} parent=5 // pred_fallthru
      _
    %p101 = scmp.lt.s32.totalorder %s8, 4
    // Predicated region
    $region13: #{invnet_forward.14} parent=5 // pred_check
      %p102 = pneg %p101
    $region14: #{invnet_forward.14} parent=5 // pred_check_branch
      %104 = sbr.rel (%p102) target = $region16
    $region15: #{invnet_forward.14} parent=5 // pred_region
      // Predicated region
      $region17: #{invnet_forward.14} parent=15 // pred_check
        %p105 = pneg %p28
      $region18: #{invnet_forward.14} parent=15 // pred_check_branch
        %107 = sbr.rel (%p105) target = $region20
      $region19: #{invnet_forward.14} parent=15 // pred_region
        %p108 = scmp.lt.s32.totalorder %s8, 3
        %s109 = scalar_select %p108, %s8, 3
        %s110 = smul.addr %s109, 16
        %s111 = smul.addr %s110, 8
        %s112 = scalar_lea.vmem %s0, %s111
      $region20: #{invnet_forward.14} parent=15 // pred_fallthru
        _
      // Predicated region
      $region21: #{invnet_forward.14} parent=15 // pred_check
        %p113 = pneg %p54
      $region22: #{invnet_forward.14} parent=15 // pred_check_branch
        %115 = sbr.rel (%p113) target = $region24
      $region23: #{invnet_forward.14} parent=15 // pred_region
        %p116 = scmp.lt.s32.totalorder %s8, 3
        %s117 = scalar_select %p116, %s8, 3
        %s118 = smul.addr %s117, 9
        %s119 = smul.addr %s118, 8
        %s120 = scalar_lea.vmem %s1, %s119
      $region24: #{invnet_forward.14} parent=15 // pred_fallthru
        _
    $region16: #{invnet_forward.14} parent=5 // pred_fallthru
      _
    %p121 = scmp.le.s32.totalorder 1, %s8
    %p122 = scmp.lt.s32.totalorder %s8, 5
    %p123 = pnand %p121, %p122
    %p124 = pneg %p123
    // Predicated region
    $region25: #{invnet_forward.14} parent=5 // pred_check
      _
    $region26: #{invnet_forward.14} parent=5 // pred_check_branch
      %126 = sbr.rel (%p123) target = $region28
    $region27: #{invnet_forward.14} parent=5 // pred_region
      %s127 = ssub.s32 %s8, 1
      %p128 = scmp.lt.s32.totalorder %s13, 3
      %s129 = scalar_select %p128, %s13, 3
      %s130 = smul.addr %s129, 16
      %s131 = smul.addr %s130, 8
      %s132 = scalar_lea.vmem %s0, %s131
      %p133 = pneg %p34
      %p134 = pneg %p31
      %p135 = scmp.lt.s32.totalorder %s13, 3
      %s136 = scalar_select %p135, %s13, 3
      %s137 = smul.addr %s136, 9
      %s138 = smul.addr %s137, 8
      %s139 = scalar_lea.vmem %s1, %s138
      %p140 = pneg %p60
      %p141 = pneg %p57
      %p142 = pneg %p86
      %p143 = pneg %p83
      %p144 = scmp.lt.s32.totalorder %s13, 3
      %s145 = scalar_select %p144, %s13, 3
      %s146 = smul.addr %s145, 16
      %s147 = smul.addr %s146, 8
      %s148 = scalar_lea.vmem %s2, %s147
      %p149 = scmp.lt.s32.totalorder %s13, 3
      %s150 = scalar_select %p149, %s13, 3
      %s151 = smul.addr %s150, 16
      %s152 = smul.addr %s151, 8
      %s153 = scalar_lea.vmem %s0, %s152
      %p154 = scmp.lt.s32.totalorder %s13, 3
      %s155 = scalar_select %p154, %s13, 3
      %s156 = smul.addr %s155, 9
      %s157 = smul.addr %s156, 8
      %s158 = scalar_lea.vmem %s1, %s157
      %p159 = scmp.lt.s32.totalorder %s13, 3
      %s160 = scalar_select %p159, %s13, 3
      %s161 = smul.addr %s160, 16
      %s162 = smul.addr %s161, 8
      %s163 = scalar_lea.vmem %s2, %s162
      %v164 = vld [vmem:[%s153] sm:$0xff]
      %v165 = vld [vmem:[%s153 + $0x8] sm:$0xff]
      %v166 = vld [vmem:[%s153 + $0x10] sm:$0xff]
      %v167 = vld [vmem:[%s153 + $0x18] sm:$0xff]
      %v168 = vld [vmem:[%s153 + $0x20] sm:$0xff]
      %v169 = vld [vmem:[%s153 + $0x28] sm:$0xff]
      %v170 = vld [vmem:[%s153 + $0x30] sm:$0xff]
      %v171 = vld [vmem:[%s153 + $0x38] sm:$0xff]
      %v172 = vld [vmem:[%s153 + $0x40] sm:$0xff]
      %v173 = vld [vmem:[%s153 + $0x48] sm:$0xff]
      %v174 = vld [vmem:[%s153 + $0x50] sm:$0xff]
      %v175 = vld [vmem:[%s153 + $0x58] sm:$0xff]
      %v176 = vld [vmem:[%s153 + $0x60] sm:$0xff]
      %v177 = vld [vmem:[%s153 + $0x68] sm:$0xff]
      %v178 = vld [vmem:[%s153 + $0x70] sm:$0xff]
      %v179 = vld [vmem:[%s153 + $0x78] sm:$0xff]
      %v180 = vld [vmem:[%s158] sm:$0x3f]
      %v181 = vld [vmem:[%s158 + $0x8] sm:$0x3f]
      %v182 = vld [vmem:[%s158 + $0x10] sm:$0x3f]
      %v183 = vld [vmem:[%s158 + $0x18] sm:$0x3f]
      %v184 = vld [vmem:[%s158 + $0x20] sm:$0x3f]
      %v185 = vld [vmem:[%s158 + $0x28] sm:$0x3f]
      %v186 = vld [vmem:[%s158 + $0x30] sm:$0x3f]
      %v187 = vld [vmem:[%s158 + $0x38] sm:$0x3f]
      %v188 = vld [vmem:[%s158 + $0x40] sm:$0x3f]
      %v189 = vmul.f32 %v164, %v180
      %v190 = vmul.f32 %v165, %v180
      %v191 = vmul.f32 %v166, %v180
      %v192 = vmul.f32 %v167, %v180
      %v193 = vmul.f32 %v168, %v180
      %v194 = vmul.f32 %v169, %v180
      %v195 = vmul.f32 %v170, %v180
      %v196 = vmul.f32 %v171, %v180
      %v197 = vmul.f32 %v172, %v180
      %v198 = vmul.f32 %v173, %v180
      %v199 = vmul.f32 %v174, %v180
      %v200 = vmul.f32 %v175, %v180
      %v201 = vmul.f32 %v176, %v180
      %v202 = vmul.f32 %v177, %v180
      %v203 = vmul.f32 %v178, %v180
      %v204 = vmul.f32 %v179, %v180
      %v205 = vadd.f32 %v189, 0.0
      %v206 = vadd.f32 %v190, 0.0
      %v207 = vadd.f32 %v191, 0.0
      %v208 = vadd.f32 %v192, 0.0
      %v209 = vadd.f32 %v193, 0.0
      %v210 = vadd.f32 %v194, 0.0
      %v211 = vadd.f32 %v195, 0.0
      %v212 = vadd.f32 %v196, 0.0
      %v213 = vadd.f32 %v197, 0.0
      %v214 = vadd.f32 %v198, 0.0
      %v215 = vadd.f32 %v199, 0.0
      %v216 = vadd.f32 %v200, 0.0
      %v217 = vadd.f32 %v201, 0.0
      %v218 = vadd.f32 %v202, 0.0
      %v219 = vadd.f32 %v203, 0.0
      %v220 = vadd.f32 %v204, 0.0
      %222 = vrot.lane.b32.xlu0 %v181, 1
      %v223 = vpop.permute.xlu0 %222
      %v225 = vmul.f32 %v164, %v223
      %v226 = vmul.f32 %v165, %v223
      %v227 = vmul.f32 %v166, %v223
      %v228 = vmul.f32 %v167, %v223
      %v229 = vmul.f32 %v168, %v223
      %v230 = vmul.f32 %v169, %v223
      %v231 = vmul.f32 %v170, %v223
      %v232 = vmul.f32 %v171, %v223
      %v233 = vmul.f32 %v172, %v223
      %v234 = vmul.f32 %v173, %v223
      %v235 = vmul.f32 %v174, %v223
      %v236 = vmul.f32 %v175, %v223
      %v237 = vmul.f32 %v176, %v223
      %v238 = vmul.f32 %v177, %v223
      %v239 = vmul.f32 %v178, %v223
      %v240 = vmul.f32 %v179, %v223
      %257 = vrot.lane.b32.xlu0 %v225, 127
      %v258 = vpop.permute.xlu0 %257
      %259 = vrot.lane.b32.xlu0 %v226, 127
      %v260 = vpop.permute.xlu0 %259
      %261 = vrot.lane.b32.xlu0 %v227, 127
      %v262 = vpop.permute.xlu0 %261
      %263 = vrot.lane.b32.xlu0 %v228, 127
      %v264 = vpop.permute.xlu0 %263
      %265 = vrot.lane.b32.xlu0 %v229, 127
      %v266 = vpop.permute.xlu0 %265
      %267 = vrot.lane.b32.xlu0 %v230, 127
      %v268 = vpop.permute.xlu0 %267
      %269 = vrot.lane.b32.xlu0 %v231, 127
      %v270 = vpop.permute.xlu0 %269
      %271 = vrot.lane.b32.xlu0 %v232, 127
      %v272 = vpop.permute.xlu0 %271
      %273 = vrot.lane.b32.xlu0 %v233, 127
      %v274 = vpop.permute.xlu0 %273
      %275 = vrot.lane.b32.xlu0 %v234, 127
      %v276 = vpop.permute.xlu0 %275
      %277 = vrot.lane.b32.xlu0 %v235, 127
      %v278 = vpop.permute.xlu0 %277
      %279 = vrot.lane.b32.xlu0 %v236, 127
      %v280 = vpop.permute.xlu0 %279
      %281 = vrot.lane.b32.xlu0 %v237, 127
      %v282 = vpop.permute.xlu0 %281
      %283 = vrot.lane.b32.xlu0 %v238, 127
      %v284 = vpop.permute.xlu0 %283
      %285 = vrot.lane.b32.xlu0 %v239, 127
      %v286 = vpop.permute.xlu0 %285
      %287 = vrot.lane.b32.xlu0 %v240, 127
      %v288 = vpop.permute.xlu0 %287
      %v305 = vadd.f32 %v205, %v258
      %v306 = vadd.f32 %v206, %v260
      %v307 = vadd.f32 %v207, %v262
      %v308 = vadd.f32 %v208, %v264
      %v309 = vadd.f32 %v209, %v266
      %v310 = vadd.f32 %v210, %v268
      %v311 = vadd.f32 %v211, %v270
      %v312 = vadd.f32 %v212, %v272
      %v313 = vadd.f32 %v213, %v274
      %v314 = vadd.f32 %v214, %v276
      %v315 = vadd.f32 %v215, %v278
      %v316 = vadd.f32 %v216, %v280
      %v317 = vadd.f32 %v217, %v282
      %v318 = vadd.f32 %v218, %v284
      %v319 = vadd.f32 %v219, %v286
      %v320 = vadd.f32 %v220, %v288
      %322 = vrot.lane.b32.xlu0 %v182, 2
      %v323 = vpop.permute.xlu0 %322
      %v325 = vmul.f32 %v164, %v323
      %v326 = vmul.f32 %v165, %v323
      %v327 = vmul.f32 %v166, %v323
      %v328 = vmul.f32 %v167, %v323
      %v329 = vmul.f32 %v168, %v323
      %v330 = vmul.f32 %v169, %v323
      %v331 = vmul.f32 %v170, %v323
      %v332 = vmul.f32 %v171, %v323
      %v333 = vmul.f32 %v172, %v323
      %v334 = vmul.f32 %v173, %v323
      %v335 = vmul.f32 %v174, %v323
      %v336 = vmul.f32 %v175, %v323
      %v337 = vmul.f32 %v176, %v323
      %v338 = vmul.f32 %v177, %v323
      %v339 = vmul.f32 %v178, %v323
      %v340 = vmul.f32 %v179, %v323
      %357 = vrot.lane.b32.xlu0 %v325, 126
      %v358 = vpop.permute.xlu0 %357
      %359 = vrot.lane.b32.xlu0 %v326, 126
      %v360 = vpop.permute.xlu0 %359
      %361 = vrot.lane.b32.xlu0 %v327, 126
      %v362 = vpop.permute.xlu0 %361
      %363 = vrot.lane.b32.xlu0 %v328, 126
      %v364 = vpop.permute.xlu0 %363
      %365 = vrot.lane.b32.xlu0 %v329, 126
      %v366 = vpop.permute.xlu0 %365
      %367 = vrot.lane.b32.xlu0 %v330, 126
      %v368 = vpop.permute.xlu0 %367
      %369 = vrot.lane.b32.xlu0 %v331, 126
      %v370 = vpop.permute.xlu0 %369
      %371 = vrot.lane.b32.xlu0 %v332, 126
      %v372 = vpop.permute.xlu0 %371
      %373 = vrot.lane.b32.xlu0 %v333, 126
      %v374 = vpop.permute.xlu0 %373
      %375 = vrot.lane.b32.xlu0 %v334, 126
      %v376 = vpop.permute.xlu0 %375
      %377 = vrot.lane.b32.xlu0 %v335, 126
      %v378 = vpop.permute.xlu0 %377
      %379 = vrot.lane.b32.xlu0 %v336, 126
      %v380 = vpop.permute.xlu0 %379
      %381 = vrot.lane.b32.xlu0 %v337, 126
      %v382 = vpop.permute.xlu0 %381
      %383 = vrot.lane.b32.xlu0 %v338, 126
      %v384 = vpop.permute.xlu0 %383
      %385 = vrot.lane.b32.xlu0 %v339, 126
      %v386 = vpop.permute.xlu0 %385
      %387 = vrot.lane.b32.xlu0 %v340, 126
      %v388 = vpop.permute.xlu0 %387
      %v405 = vadd.f32 %v305, %v358
      %v406 = vadd.f32 %v306, %v360
      %v407 = vadd.f32 %v307, %v362
      %v408 = vadd.f32 %v308, %v364
      %v409 = vadd.f32 %v309, %v366
      %v410 = vadd.f32 %v310, %v368
      %v411 = vadd.f32 %v311, %v370
      %v412 = vadd.f32 %v312, %v372
      %v413 = vadd.f32 %v313, %v374
      %v414 = vadd.f32 %v314, %v376
      %v415 = vadd.f32 %v315, %v378
      %v416 = vadd.f32 %v316, %v380
      %v417 = vadd.f32 %v317, %v382
      %v418 = vadd.f32 %v318, %v384
      %v419 = vadd.f32 %v319, %v386
      %v420 = vadd.f32 %v320, %v388
      %v422 = vrot.slane %v183, 7
      %v424 = vmul.f32 %v164, %v422
      %v425 = vmul.f32 %v165, %v422
      %v426 = vmul.f32 %v166, %v422
      %v427 = vmul.f32 %v167, %v422
      %v428 = vmul.f32 %v168, %v422
      %v429 = vmul.f32 %v169, %v422
      %v430 = vmul.f32 %v170, %v422
      %v431 = vmul.f32 %v171, %v422
      %v432 = vmul.f32 %v172, %v422
      %v433 = vmul.f32 %v173, %v422
      %v434 = vmul.f32 %v174, %v422
      %v435 = vmul.f32 %v175, %v422
      %v436 = vmul.f32 %v176, %v422
      %v437 = vmul.f32 %v177, %v422
      %v438 = vmul.f32 %v178, %v422
      %v439 = vmul.f32 %v179, %v422
      %v456 = vrot.slane %v424, 1
      %v457 = vrot.slane %v425, 1
      %v458 = vrot.slane %v426, 1
      %v459 = vrot.slane %v427, 1
      %v460 = vrot.slane %v428, 1
      %v461 = vrot.slane %v429, 1
      %v462 = vrot.slane %v430, 1
      %v463 = vrot.slane %v431, 1
      %v464 = vrot.slane %v432, 1
      %v465 = vrot.slane %v433, 1
      %v466 = vrot.slane %v434, 1
      %v467 = vrot.slane %v435, 1
      %v468 = vrot.slane %v436, 1
      %v469 = vrot.slane %v437, 1
      %v470 = vrot.slane %v438, 1
      %v471 = vrot.slane %v439, 1
      %v488 = vadd.f32 %v405, %v456
      %v489 = vadd.f32 %v406, %v457
      %v490 = vadd.f32 %v407, %v458
      %v491 = vadd.f32 %v408, %v459
      %v492 = vadd.f32 %v409, %v460
      %v493 = vadd.f32 %v410, %v461
      %v494 = vadd.f32 %v411, %v462
      %v495 = vadd.f32 %v412, %v463
      %v496 = vadd.f32 %v413, %v464
      %v497 = vadd.f32 %v414, %v465
      %v498 = vadd.f32 %v415, %v466
      %v499 = vadd.f32 %v416, %v467
      %v500 = vadd.f32 %v417, %v468
      %v501 = vadd.f32 %v418, %v469
      %v502 = vadd.f32 %v419, %v470
      %v503 = vadd.f32 %v420, %v471
      %v505 = vrot.slane %v184, 7
      %506 = vrot.lane.b32.xlu0 %v505, 1
      %v507 = vpop.permute.xlu0 %506
      %v509 = vmul.f32 %v164, %v507
      %v510 = vmul.f32 %v165, %v507
      %v511 = vmul.f32 %v166, %v507
      %v512 = vmul.f32 %v167, %v507
      %v513 = vmul.f32 %v168, %v507
      %v514 = vmul.f32 %v169, %v507
      %v515 = vmul.f32 %v170, %v507
      %v516 = vmul.f32 %v171, %v507
      %v517 = vmul.f32 %v172, %v507
      %v518 = vmul.f32 %v173, %v507
      %v519 = vmul.f32 %v174, %v507
      %v520 = vmul.f32 %v175, %v507
      %v521 = vmul.f32 %v176, %v507
      %v522 = vmul.f32 %v177, %v507
      %v523 = vmul.f32 %v178, %v507
      %v524 = vmul.f32 %v179, %v507
      %v541 = vrot.slane %v509, 1
      %v542 = vrot.slane %v510, 1
      %v543 = vrot.slane %v511, 1
      %v544 = vrot.slane %v512, 1
      %v545 = vrot.slane %v513, 1
      %v546 = vrot.slane %v514, 1
      %v547 = vrot.slane %v515, 1
      %v548 = vrot.slane %v516, 1
      %v549 = vrot.slane %v517, 1
      %v550 = vrot.slane %v518, 1
      %v551 = vrot.slane %v519, 1
      %v552 = vrot.slane %v520, 1
      %v553 = vrot.slane %v521, 1
      %v554 = vrot.slane %v522, 1
      %v555 = vrot.slane %v523, 1
      %v556 = vrot.slane %v524, 1
      %557 = vrot.lane.b32.xlu0 %v541, 127
      %v558 = vpop.permute.xlu0 %557
      %559 = vrot.lane.b32.xlu0 %v542, 127
      %v560 = vpop.permute.xlu0 %559
      %561 = vrot.lane.b32.xlu0 %v543, 127
      %v562 = vpop.permute.xlu0 %561
      %563 = vrot.lane.b32.xlu0 %v544, 127
      %v564 = vpop.permute.xlu0 %563
      %565 = vrot.lane.b32.xlu0 %v545, 127
      %v566 = vpop.permute.xlu0 %565
      %567 = vrot.lane.b32.xlu0 %v546, 127
      %v568 = vpop.permute.xlu0 %567
      %569 = vrot.lane.b32.xlu0 %v547, 127
      %v570 = vpop.permute.xlu0 %569
      %571 = vrot.lane.b32.xlu0 %v548, 127
      %v572 = vpop.permute.xlu0 %571
      %573 = vrot.lane.b32.xlu0 %v549, 127
      %v574 = vpop.permute.xlu0 %573
      %575 = vrot.lane.b32.xlu0 %v550, 127
      %v576 = vpop.permute.xlu0 %575
      %577 = vrot.lane.b32.xlu0 %v551, 127
      %v578 = vpop.permute.xlu0 %577
      %579 = vrot.lane.b32.xlu0 %v552, 127
      %v580 = vpop.permute.xlu0 %579
      %581 = vrot.lane.b32.xlu0 %v553, 127
      %v582 = vpop.permute.xlu0 %581
      %583 = vrot.lane.b32.xlu0 %v554, 127
      %v584 = vpop.permute.xlu0 %583
      %585 = vrot.lane.b32.xlu0 %v555, 127
      %v586 = vpop.permute.xlu0 %585
      %587 = vrot.lane.b32.xlu0 %v556, 127
      %v588 = vpop.permute.xlu0 %587
      %v605 = vadd.f32 %v488, %v558
      %v606 = vadd.f32 %v489, %v560
      %v607 = vadd.f32 %v490, %v562
      %v608 = vadd.f32 %v491, %v564
      %v609 = vadd.f32 %v492, %v566
      %v610 = vadd.f32 %v493, %v568
      %v611 = vadd.f32 %v494, %v570
      %v612 = vadd.f32 %v495, %v572
      %v613 = vadd.f32 %v496, %v574
      %v614 = vadd.f32 %v497, %v576
      %v615 = vadd.f32 %v498, %v578
      %v616 = vadd.f32 %v499, %v580
      %v617 = vadd.f32 %v500, %v582
      %v618 = vadd.f32 %v501, %v584
      %v619 = vadd.f32 %v502, %v586
      %v620 = vadd.f32 %v503, %v588
      %v622 = vrot.slane %v185, 7
      %623 = vrot.lane.b32.xlu0 %v622, 2
      %v624 = vpop.permute.xlu0 %623
      %v626 = vmul.f32 %v164, %v624
      %v627 = vmul.f32 %v165, %v624
      %v628 = vmul.f32 %v166, %v624
      %v629 = vmul.f32 %v167, %v624
      %v630 = vmul.f32 %v168, %v624
      %v631 = vmul.f32 %v169, %v624
      %v632 = vmul.f32 %v170, %v624
      %v633 = vmul.f32 %v171, %v624
      %v634 = vmul.f32 %v172, %v624
      %v635 = vmul.f32 %v173, %v624
      %v636 = vmul.f32 %v174, %v624
      %v637 = vmul.f32 %v175, %v624
      %v638 = vmul.f32 %v176, %v624
      %v639 = vmul.f32 %v177, %v624
      %v640 = vmul.f32 %v178, %v624
      %v641 = vmul.f32 %v179, %v624
      %v658 = vrot.slane %v626, 1
      %v659 = vrot.slane %v627, 1
      %v660 = vrot.slane %v628, 1
      %v661 = vrot.slane %v629, 1
      %v662 = vrot.slane %v630, 1
      %v663 = vrot.slane %v631, 1
      %v664 = vrot.slane %v632, 1
      %v665 = vrot.slane %v633, 1
      %v666 = vrot.slane %v634, 1
      %v667 = vrot.slane %v635, 1
      %v668 = vrot.slane %v636, 1
      %v669 = vrot.slane %v637, 1
      %v670 = vrot.slane %v638, 1
      %v671 = vrot.slane %v639, 1
      %v672 = vrot.slane %v640, 1
      %v673 = vrot.slane %v641, 1
      %674 = vrot.lane.b32.xlu0 %v658, 126
      %v675 = vpop.permute.xlu0 %674
      %676 = vrot.lane.b32.xlu0 %v659, 126
      %v677 = vpop.permute.xlu0 %676
      %678 = vrot.lane.b32.xlu0 %v660, 126
      %v679 = vpop.permute.xlu0 %678
      %680 = vrot.lane.b32.xlu0 %v661, 126
      %v681 = vpop.permute.xlu0 %680
      %682 = vrot.lane.b32.xlu0 %v662, 126
      %v683 = vpop.permute.xlu0 %682
      %684 = vrot.lane.b32.xlu0 %v663, 126
      %v685 = vpop.permute.xlu0 %684
      %686 = vrot.lane.b32.xlu0 %v664, 126
      %v687 = vpop.permute.xlu0 %686
      %688 = vrot.lane.b32.xlu0 %v665, 126
      %v689 = vpop.permute.xlu0 %688
      %690 = vrot.lane.b32.xlu0 %v666, 126
      %v691 = vpop.permute.xlu0 %690
      %692 = vrot.lane.b32.xlu0 %v667, 126
      %v693 = vpop.permute.xlu0 %692
      %694 = vrot.lane.b32.xlu0 %v668, 126
      %v695 = vpop.permute.xlu0 %694
      %696 = vrot.lane.b32.xlu0 %v669, 126
      %v697 = vpop.permute.xlu0 %696
      %698 = vrot.lane.b32.xlu0 %v670, 126
      %v699 = vpop.permute.xlu0 %698
      %700 = vrot.lane.b32.xlu0 %v671, 126
      %v701 = vpop.permute.xlu0 %700
      %702 = vrot.lane.b32.xlu0 %v672, 126
      %v703 = vpop.permute.xlu0 %702
      %704 = vrot.lane.b32.xlu0 %v673, 126
      %v705 = vpop.permute.xlu0 %704
      %v722 = vadd.f32 %v605, %v675
      %v723 = vadd.f32 %v606, %v677
      %v724 = vadd.f32 %v607, %v679
      %v725 = vadd.f32 %v608, %v681
      %v726 = vadd.f32 %v609, %v683
      %v727 = vadd.f32 %v610, %v685
      %v728 = vadd.f32 %v611, %v687
      %v729 = vadd.f32 %v612, %v689
      %v730 = vadd.f32 %v613, %v691
      %v731 = vadd.f32 %v614, %v693
      %v732 = vadd.f32 %v615, %v695
      %v733 = vadd.f32 %v616, %v697
      %v734 = vadd.f32 %v617, %v699
      %v735 = vadd.f32 %v618, %v701
      %v736 = vadd.f32 %v619, %v703
      %v737 = vadd.f32 %v620, %v705
      %v739 = vrot.slane %v186, 6
      %v741 = vmul.f32 %v164, %v739
      %v742 = vmul.f32 %v165, %v739
      %v743 = vmul.f32 %v166, %v739
      %v744 = vmul.f32 %v167, %v739
      %v745 = vmul.f32 %v168, %v739
      %v746 = vmul.f32 %v169, %v739
      %v747 = vmul.f32 %v170, %v739
      %v748 = vmul.f32 %v171, %v739
      %v749 = vmul.f32 %v172, %v739
      %v750 = vmul.f32 %v173, %v739
      %v751 = vmul.f32 %v174, %v739
      %v752 = vmul.f32 %v175, %v739
      %v753 = vmul.f32 %v176, %v739
      %v754 = vmul.f32 %v177, %v739
      %v755 = vmul.f32 %v178, %v739
      %v756 = vmul.f32 %v179, %v739
      %v773 = vrot.slane %v741, 2
      %v774 = vrot.slane %v742, 2
      %v775 = vrot.slane %v743, 2
      %v776 = vrot.slane %v744, 2
      %v777 = vrot.slane %v745, 2
      %v778 = vrot.slane %v746, 2
      %v779 = vrot.slane %v747, 2
      %v780 = vrot.slane %v748, 2
      %v781 = vrot.slane %v749, 2
      %v782 = vrot.slane %v750, 2
      %v783 = vrot.slane %v751, 2
      %v784 = vrot.slane %v752, 2
      %v785 = vrot.slane %v753, 2
      %v786 = vrot.slane %v754, 2
      %v787 = vrot.slane %v755, 2
      %v788 = vrot.slane %v756, 2
      %v805 = vadd.f32 %v722, %v773
      %v806 = vadd.f32 %v723, %v774
      %v807 = vadd.f32 %v724, %v775
      %v808 = vadd.f32 %v725, %v776
      %v809 = vadd.f32 %v726, %v777
      %v810 = vadd.f32 %v727, %v778
      %v811 = vadd.f32 %v728, %v779
      %v812 = vadd.f32 %v729, %v780
      %v813 = vadd.f32 %v730, %v781
      %v814 = vadd.f32 %v731, %v782
      %v815 = vadd.f32 %v732, %v783
      %v816 = vadd.f32 %v733, %v784
      %v817 = vadd.f32 %v734, %v785
      %v818 = vadd.f32 %v735, %v786
      %v819 = vadd.f32 %v736, %v787
      %v820 = vadd.f32 %v737, %v788
      %v822 = vrot.slane %v187, 6
      %823 = vrot.lane.b32.xlu0 %v822, 1
      %v824 = vpop.permute.xlu0 %823
      %v826 = vmul.f32 %v164, %v824
      %v827 = vmul.f32 %v165, %v824
      %v828 = vmul.f32 %v166, %v824
      %v829 = vmul.f32 %v167, %v824
      %v830 = vmul.f32 %v168, %v824
      %v831 = vmul.f32 %v169, %v824
      %v832 = vmul.f32 %v170, %v824
      %v833 = vmul.f32 %v171, %v824
      %v834 = vmul.f32 %v172, %v824
      %v835 = vmul.f32 %v173, %v824
      %v836 = vmul.f32 %v174, %v824
      %v837 = vmul.f32 %v175, %v824
      %v838 = vmul.f32 %v176, %v824
      %v839 = vmul.f32 %v177, %v824
      %v840 = vmul.f32 %v178, %v824
      %v841 = vmul.f32 %v179, %v824
      %v858 = vrot.slane %v826, 2
      %v859 = vrot.slane %v827, 2
      %v860 = vrot.slane %v828, 2
      %v861 = vrot.slane %v829, 2
      %v862 = vrot.slane %v830, 2
      %v863 = vrot.slane %v831, 2
      %v864 = vrot.slane %v832, 2
      %v865 = vrot.slane %v833, 2
      %v866 = vrot.slane %v834, 2
      %v867 = vrot.slane %v835, 2
      %v868 = vrot.slane %v836, 2
      %v869 = vrot.slane %v837, 2
      %v870 = vrot.slane %v838, 2
      %v871 = vrot.slane %v839, 2
      %v872 = vrot.slane %v840, 2
      %v873 = vrot.slane %v841, 2
      %874 = vrot.lane.b32.xlu0 %v858, 127
      %v875 = vpop.permute.xlu0 %874
      %876 = vrot.lane.b32.xlu0 %v859, 127
      %v877 = vpop.permute.xlu0 %876
      %878 = vrot.lane.b32.xlu0 %v860, 127
      %v879 = vpop.permute.xlu0 %878
      %880 = vrot.lane.b32.xlu0 %v861, 127
      %v881 = vpop.permute.xlu0 %880
      %882 = vrot.lane.b32.xlu0 %v862, 127
      %v883 = vpop.permute.xlu0 %882
      %884 = vrot.lane.b32.xlu0 %v863, 127
      %v885 = vpop.permute.xlu0 %884
      %886 = vrot.lane.b32.xlu0 %v864, 127
      %v887 = vpop.permute.xlu0 %886
      %888 = vrot.lane.b32.xlu0 %v865, 127
      %v889 = vpop.permute.xlu0 %888
      %890 = vrot.lane.b32.xlu0 %v866, 127
      %v891 = vpop.permute.xlu0 %890
      %892 = vrot.lane.b32.xlu0 %v867, 127
      %v893 = vpop.permute.xlu0 %892
      %894 = vrot.lane.b32.xlu0 %v868, 127
      %v895 = vpop.permute.xlu0 %894
      %896 = vrot.lane.b32.xlu0 %v869, 127
      %v897 = vpop.permute.xlu0 %896
      %898 = vrot.lane.b32.xlu0 %v870, 127
      %v899 = vpop.permute.xlu0 %898
      %900 = vrot.lane.b32.xlu0 %v871, 127
      %v901 = vpop.permute.xlu0 %900
      %902 = vrot.lane.b32.xlu0 %v872, 127
      %v903 = vpop.permute.xlu0 %902
      %904 = vrot.lane.b32.xlu0 %v873, 127
      %v905 = vpop.permute.xlu0 %904
      %v922 = vadd.f32 %v805, %v875
      %v923 = vadd.f32 %v806, %v877
      %v924 = vadd.f32 %v807, %v879
      %v925 = vadd.f32 %v808, %v881
      %v926 = vadd.f32 %v809, %v883
      %v927 = vadd.f32 %v810, %v885
      %v928 = vadd.f32 %v811, %v887
      %v929 = vadd.f32 %v812, %v889
      %v930 = vadd.f32 %v813, %v891
      %v931 = vadd.f32 %v814, %v893
      %v932 = vadd.f32 %v815, %v895
      %v933 = vadd.f32 %v816, %v897
      %v934 = vadd.f32 %v817, %v899
      %v935 = vadd.f32 %v818, %v901
      %v936 = vadd.f32 %v819, %v903
      %v937 = vadd.f32 %v820, %v905
      %v939 = vrot.slane %v188, 6
      %940 = vrot.lane.b32.xlu0 %v939, 2
      %v941 = vpop.permute.xlu0 %940
      %v943 = vmul.f32 %v164, %v941
      %v944 = vmul.f32 %v165, %v941
      %v945 = vmul.f32 %v166, %v941
      %v946 = vmul.f32 %v167, %v941
      %v947 = vmul.f32 %v168, %v941
      %v948 = vmul.f32 %v169, %v941
      %v949 = vmul.f32 %v170, %v941
      %v950 = vmul.f32 %v171, %v941
      %v951 = vmul.f32 %v172, %v941
      %v952 = vmul.f32 %v173, %v941
      %v953 = vmul.f32 %v174, %v941
      %v954 = vmul.f32 %v175, %v941
      %v955 = vmul.f32 %v176, %v941
      %v956 = vmul.f32 %v177, %v941
      %v957 = vmul.f32 %v178, %v941
      %v958 = vmul.f32 %v179, %v941
      %v975 = vrot.slane %v943, 2
      %v976 = vrot.slane %v944, 2
      %v977 = vrot.slane %v945, 2
      %v978 = vrot.slane %v946, 2
      %v979 = vrot.slane %v947, 2
      %v980 = vrot.slane %v948, 2
      %v981 = vrot.slane %v949, 2
      %v982 = vrot.slane %v950, 2
      %v983 = vrot.slane %v951, 2
      %v984 = vrot.slane %v952, 2
      %v985 = vrot.slane %v953, 2
      %v986 = vrot.slane %v954, 2
      %v987 = vrot.slane %v955, 2
      %v988 = vrot.slane %v956, 2
      %v989 = vrot.slane %v957, 2
      %v990 = vrot.slane %v958, 2
      %991 = vrot.lane.b32.xlu0 %v975, 126
      %v992 = vpop.permute.xlu0 %991
      %993 = vrot.lane.b32.xlu0 %v976, 126
      %v994 = vpop.permute.xlu0 %993
      %995 = vrot.lane.b32.xlu0 %v977, 126
      %v996 = vpop.permute.xlu0 %995
      %997 = vrot.lane.b32.xlu0 %v978, 126
      %v998 = vpop.permute.xlu0 %997
      %999 = vrot.lane.b32.xlu0 %v979, 126
      %v1000 = vpop.permute.xlu0 %999
      %1001 = vrot.lane.b32.xlu0 %v980, 126
      %v1002 = vpop.permute.xlu0 %1001
      %1003 = vrot.lane.b32.xlu0 %v981, 126
      %v1004 = vpop.permute.xlu0 %1003
      %1005 = vrot.lane.b32.xlu0 %v982, 126
      %v1006 = vpop.permute.xlu0 %1005
      %1007 = vrot.lane.b32.xlu0 %v983, 126
      %v1008 = vpop.permute.xlu0 %1007
      %1009 = vrot.lane.b32.xlu0 %v984, 126
      %v1010 = vpop.permute.xlu0 %1009
      %1011 = vrot.lane.b32.xlu0 %v985, 126
      %v1012 = vpop.permute.xlu0 %1011
      %1013 = vrot.lane.b32.xlu0 %v986, 126
      %v1014 = vpop.permute.xlu0 %1013
      %1015 = vrot.lane.b32.xlu0 %v987, 126
      %v1016 = vpop.permute.xlu0 %1015
      %1017 = vrot.lane.b32.xlu0 %v988, 126
      %v1018 = vpop.permute.xlu0 %1017
      %1019 = vrot.lane.b32.xlu0 %v989, 126
      %v1020 = vpop.permute.xlu0 %1019
      %1021 = vrot.lane.b32.xlu0 %v990, 126
      %v1022 = vpop.permute.xlu0 %1021
      %v1039 = vadd.f32 %v922, %v992
      %v1040 = vadd.f32 %v923, %v994
      %v1041 = vadd.f32 %v924, %v996
      %v1042 = vadd.f32 %v925, %v998
      %v1043 = vadd.f32 %v926, %v1000
      %v1044 = vadd.f32 %v927, %v1002
      %v1045 = vadd.f32 %v928, %v1004
      %v1046 = vadd.f32 %v929, %v1006
      %v1047 = vadd.f32 %v930, %v1008
      %v1048 = vadd.f32 %v931, %v1010
      %v1049 = vadd.f32 %v932, %v1012
      %v1050 = vadd.f32 %v933, %v1014
      %v1051 = vadd.f32 %v934, %v1016
      %v1052 = vadd.f32 %v935, %v1018
      %v1053 = vadd.f32 %v936, %v1020
      %v1054 = vadd.f32 %v937, %v1022
      %vm1055 = vcmask 46080
      %1056 = vst.msk [vmem:[%s163] sm:$0x3f] %vm1055, %v1039
      %1057 = vst.msk [vmem:[%s163 + $0x8] sm:$0x3f] %vm1055, %v1040
      %1058 = vst.msk [vmem:[%s163 + $0x10] sm:$0x3f] %vm1055, %v1041
      %1059 = vst.msk [vmem:[%s163 + $0x18] sm:$0x3f] %vm1055, %v1042
      %1060 = vst.msk [vmem:[%s163 + $0x20] sm:$0x3f] %vm1055, %v1043
      %1061 = vst.msk [vmem:[%s163 + $0x28] sm:$0x3f] %vm1055, %v1044
      %1062 = vst.msk [vmem:[%s163 + $0x30] sm:$0x3f] %vm1055, %v1045
      %1063 = vst.msk [vmem:[%s163 + $0x38] sm:$0x3f] %vm1055, %v1046
      %1064 = vst.msk [vmem:[%s163 + $0x40] sm:$0x3f] %vm1055, %v1047
      %1065 = vst.msk [vmem:[%s163 + $0x48] sm:$0x3f] %vm1055, %v1048
      %1066 = vst.msk [vmem:[%s163 + $0x50] sm:$0x3f] %vm1055, %v1049
      %1067 = vst.msk [vmem:[%s163 + $0x58] sm:$0x3f] %vm1055, %v1050
      %1068 = vst.msk [vmem:[%s163 + $0x60] sm:$0x3f] %vm1055, %v1051
      %1069 = vst.msk [vmem:[%s163 + $0x68] sm:$0x3f] %vm1055, %v1052
      %1070 = vst.msk [vmem:[%s163 + $0x70] sm:$0x3f] %vm1055, %v1053
      %1071 = vst.msk [vmem:[%s163 + $0x78] sm:$0x3f] %vm1055, %v1054
      %p1072 = scmp.lt.s32.totalorder %s13, 3
      %s1073 = scalar_select %p1072, %s13, 3
      %s1074 = smul.addr %s1073, 16
      %s1075 = smul.addr %s1074, 8
      %s1076 = scalar_lea.vmem %s2, %s1075
      // Predicated region
      $region29: #{invnet_forward.14} parent=27 // pred_check
        %p1077 = pneg %p83
      $region30: #{invnet_forward.14} parent=27 // pred_check_branch
        %1079 = sbr.rel (%p1077) target = $region32
      $region31: #{invnet_forward.14} parent=27 // pred_region
        _
      $region32: #{invnet_forward.14} parent=27 // pred_fallthru
        _
    $region28: #{invnet_forward.14} parent=5 // pred_fallthru
      _
    %p1080 = scmp.le.s32.totalorder 2, %s8
    // Predicated region
    $region33: #{invnet_forward.14} parent=5 // pred_check
      %p1081 = pneg %p1080
    $region34: #{invnet_forward.14} parent=5 // pred_check_branch
      %1083 = sbr.rel (%p1081) target = $region36
    $region35: #{invnet_forward.14} parent=5 // pred_region
      %s1084 = ssub.s32 %s8, 2
      // Predicated region
      $region37: #{invnet_forward.14} parent=35 // pred_check
        %p1085 = pneg %p89
      $region38: #{invnet_forward.14} parent=35 // pred_check_branch
        %1087 = sbr.rel (%p1085) target = $region40
      $region39: #{invnet_forward.14} parent=35 // pred_region
        %p1088 = scmp.lt.s32.totalorder %s14, 3
        %s1089 = scalar_select %p1088, %s14, 3
        %s1090 = smul.addr %s1089, 16
        %s1091 = smul.addr %s1090, 8
        %s1092 = scalar_lea.vmem %s2, %s1091
      $region40: #{invnet_forward.14} parent=35 // pred_fallthru
        _
    $region36: #{invnet_forward.14} parent=5 // pred_fallthru
      _
  $region6: #{invnet_forward.14} parent=0 // loop_footer
    %s12 = sadd.s32 1, %s8
  $region7: #{invnet_forward.14} parent=0 // loop_footer_branch
    %7 = sbr.rel target = $region3
  $region8: #{invnet_forward.14} parent=0 // loop_exit
    _

// kernel: invnet_forward.15
$region0: #{invnet_forward.15}
  #allocation0 [shape = 'u32[]', space=smem, size = 0x4, offset = 0x4, fixed_abs, tag = 'smem constant byte address 0x4 - core index']
  #allocation1 [shape = 'u32[144,128]{1,0:T(1,128)}', space=vmem, size = 0x12000, scoped, tag = 'internal scratch']
  %s0 = inlined_call_operand.vmem [shape: f32[72,32], index: 0, kind: input, shape index: {}]
  %s1 = inlined_call_operand.vmem [shape: f32[72,32], index: 1, kind: input, shape index: {}]
  %s2 = inlined_call_operand.vmem [shape: f32[1,32], index: 2, kind: input, shape index: {}]
  %s3 = inlined_call_operand.vmem [shape: f32[1,32], index: 3, kind: input, shape index: {}]
  %s4 = inlined_call_operand.vmem [shape: bf16[32,128], index: 4, kind: input, shape index: {}]
  %s5 = inlined_call_operand.vmem [shape: f32[1,128], index: 5, kind: input, shape index: {}]
  %s6 = inlined_call_operand.vmem [shape: bf16[128,32], index: 6, kind: input, shape index: {}]
  %s7 = inlined_call_operand.vmem [shape: f32[1,32], index: 7, kind: input, shape index: {}]
  %s8 = inlined_call_operand.vmem [shape: f32[1,32], index: 8, kind: input, shape index: {}]
  %s9 = inlined_call_operand.vmem [shape: f32[1,32], index: 9, kind: input, shape index: {}]
  %s10 = inlined_call_operand.vmem [shape: f32[72,32], index: 10, kind: output, shape index: {}]
  %s11 = sld [smem:[#allocation0]]
  $region50: #{invnet_forward.15} parent=0
    _
  %s13 = ssub.s32 1, %s11
  %s14 = scalar_select 0, %s13, %s11
  // Predicated region
  $region2: #{invnet_forward.15} parent=0 // pred_check
    _
  $region3: #{invnet_forward.15} parent=0 // pred_check_branch
    %16 = sbr.rel (0) target = $region5
  $region4: #{invnet_forward.15} parent=0 // pred_region
    _
  $region5: #{invnet_forward.15} parent=0 // pred_fallthru
    _
  // Predicated region
  $region6: #{invnet_forward.15} parent=0 // pred_check
    _
  $region7: #{invnet_forward.15} parent=0 // pred_check_branch
    %18 = sbr.rel (0) target = $region9
  $region8: #{invnet_forward.15} parent=0 // pred_region
    _
  $region9: #{invnet_forward.15} parent=0 // pred_fallthru
    _
  // Predicated region
  $region10: #{invnet_forward.15} parent=0 // pred_check
    _
  $region11: #{invnet_forward.15} parent=0 // pred_check_branch
    %20 = sbr.rel (0) target = $region13
  $region12: #{invnet_forward.15} parent=0 // pred_region
    _
  $region13: #{invnet_forward.15} parent=0 // pred_fallthru
    _
  // Predicated region
  $region14: #{invnet_forward.15} parent=0 // pred_check
    _
  $region15: #{invnet_forward.15} parent=0 // pred_check_branch
    %22 = sbr.rel (0) target = $region17
  $region16: #{invnet_forward.15} parent=0 // pred_region
    _
  $region17: #{invnet_forward.15} parent=0 // pred_fallthru
    _
  // Predicated region
  $region18: #{invnet_forward.15} parent=0 // pred_check
    _
  $region19: #{invnet_forward.15} parent=0 // pred_check_branch
    %24 = sbr.rel (0) target = $region21
  $region20: #{invnet_forward.15} parent=0 // pred_region
    _
  $region21: #{invnet_forward.15} parent=0 // pred_fallthru
    _
  // Predicated region
  $region22: #{invnet_forward.15} parent=0 // pred_check
    _
  $region23: #{invnet_forward.15} parent=0 // pred_check_branch
    %26 = sbr.rel (0) target = $region25
  $region24: #{invnet_forward.15} parent=0 // pred_region
    _
  $region25: #{invnet_forward.15} parent=0 // pred_fallthru
    _
  // Predicated region
  $region26: #{invnet_forward.15} parent=0 // pred_check
    _
  $region27: #{invnet_forward.15} parent=0 // pred_check_branch
    %28 = sbr.rel (0) target = $region29
  $region28: #{invnet_forward.15} parent=0 // pred_region
    _
  $region29: #{invnet_forward.15} parent=0 // pred_fallthru
    _
  // Predicated region
  $region30: #{invnet_forward.15} parent=0 // pred_check
    _
  $region31: #{invnet_forward.15} parent=0 // pred_check_branch
    %30 = sbr.rel (0) target = $region33
  $region32: #{invnet_forward.15} parent=0 // pred_region
    _
  $region33: #{invnet_forward.15} parent=0 // pred_fallthru
    _
  // Predicated region
  $region34: #{invnet_forward.15} parent=0 // pred_check
    _
  $region35: #{invnet_forward.15} parent=0 // pred_check_branch
    %32 = sbr.rel (0) target = $region37
  $region36: #{invnet_forward.15} parent=0 // pred_region
    _
  $region37: #{invnet_forward.15} parent=0 // pred_fallthru
    _
  // Predicated region
  $region38: #{invnet_forward.15} parent=0 // pred_check
    _
  $region39: #{invnet_forward.15} parent=0 // pred_check_branch
    %34 = sbr.rel (0) target = $region41
  $region40: #{invnet_forward.15} parent=0 // pred_region
    _
  $region41: #{invnet_forward.15} parent=0 // pred_fallthru
    _
  %v36 = vld [vmem:[%s0] sm:$0xff]
  %v37 = vld [vmem:[%s0 + $0x8] sm:$0xff]
  %v38 = vld [vmem:[%s0 + $0x10] sm:$0xff]
  %v39 = vld [vmem:[%s0 + $0x18] sm:$0xff]
  %v40 = vld [vmem:[%s0 + $0x20] sm:$0xff]
  %v41 = vld [vmem:[%s0 + $0x28] sm:$0xff]
  %v42 = vld [vmem:[%s0 + $0x30] sm:$0xff]
  %v43 = vld [vmem:[%s0 + $0x38] sm:$0xff]
  %v44 = vld [vmem:[%s0 + $0x40] sm:$0xff]
  %vm45 = vcmask 261120
  %v46 = vsel %vm45, %v36, 0.0
  %47 = vadd.xlane.f32.xlu0 %v46
  %v48 = vpop.xlane.xlu0 %47
  %v49 = vsel %vm45, %v37, 0.0
  %50 = vadd.xlane.f32.xlu0 %v49
  %v51 = vpop.xlane.xlu0 %50
  %v52 = vsel %vm45, %v38, 0.0
  %53 = vadd.xlane.f32.xlu0 %v52
  %v54 = vpop.xlane.xlu0 %53
  %v55 = vsel %vm45, %v39, 0.0
  %56 = vadd.xlane.f32.xlu0 %v55
  %v57 = vpop.xlane.xlu0 %56
  %v58 = vsel %vm45, %v40, 0.0
  %59 = vadd.xlane.f32.xlu0 %v58
  %v60 = vpop.xlane.xlu0 %59
  %v61 = vsel %vm45, %v41, 0.0
  %62 = vadd.xlane.f32.xlu0 %v61
  %v63 = vpop.xlane.xlu0 %62
  %v64 = vsel %vm45, %v42, 0.0
  %65 = vadd.xlane.f32.xlu0 %v64
  %v66 = vpop.xlane.xlu0 %65
  %v67 = vsel %vm45, %v43, 0.0
  %68 = vadd.xlane.f32.xlu0 %v67
  %v69 = vpop.xlane.xlu0 %68
  %v70 = vsel %vm45, %v44, 0.0
  %71 = vadd.xlane.f32.xlu0 %v70
  %v72 = vpop.xlane.xlu0 %71
  %v73 = vrcp.pop 32.0
  %v74 = vmul.f32 %v48, %v73
  %v75 = vmul.f32 %v51, %v73
  %v76 = vmul.f32 %v54, %v73
  %v77 = vmul.f32 %v57, %v73
  %v78 = vmul.f32 %v60, %v73
  %v79 = vmul.f32 %v63, %v73
  %v80 = vmul.f32 %v66, %v73
  %v81 = vmul.f32 %v69, %v73
  %v82 = vmul.f32 %v72, %v73
  %v83 = vsub.f32 %v36, %v74
  %v84 = vsub.f32 %v37, %v75
  %v85 = vsub.f32 %v38, %v76
  %v86 = vsub.f32 %v39, %v77
  %v87 = vsub.f32 %v40, %v78
  %v88 = vsub.f32 %v41, %v79
  %v89 = vsub.f32 %v42, %v80
  %v90 = vsub.f32 %v43, %v81
  %v91 = vsub.f32 %v44, %v82
  %v92 = vmul.f32 %v83, %v83
  %v93 = vmul.f32 %v84, %v84
  %v94 = vmul.f32 %v85, %v85
  %v95 = vmul.f32 %v86, %v86
  %v96 = vmul.f32 %v87, %v87
  %v97 = vmul.f32 %v88, %v88
  %v98 = vmul.f32 %v89, %v89
  %v99 = vmul.f32 %v90, %v90
  %v100 = vmul.f32 %v91, %v91
  %v101 = vsel %vm45, %v92, 0.0
  %102 = vadd.xlane.f32.xlu0 %v101
  %v103 = vpop.xlane.xlu0 %102
  %v104 = vsel %vm45, %v93, 0.0
  %105 = vadd.xlane.f32.xlu0 %v104
  %v106 = vpop.xlane.xlu0 %105
  %v107 = vsel %vm45, %v94, 0.0
  %108 = vadd.xlane.f32.xlu0 %v107
  %v109 = vpop.xlane.xlu0 %108
  %v110 = vsel %vm45, %v95, 0.0
  %111 = vadd.xlane.f32.xlu0 %v110
  %v112 = vpop.xlane.xlu0 %111
  %v113 = vsel %vm45, %v96, 0.0
  %114 = vadd.xlane.f32.xlu0 %v113
  %v115 = vpop.xlane.xlu0 %114
  %v116 = vsel %vm45, %v97, 0.0
  %117 = vadd.xlane.f32.xlu0 %v116
  %v118 = vpop.xlane.xlu0 %117
  %v119 = vsel %vm45, %v98, 0.0
  %120 = vadd.xlane.f32.xlu0 %v119
  %v121 = vpop.xlane.xlu0 %120
  %v122 = vsel %vm45, %v99, 0.0
  %123 = vadd.xlane.f32.xlu0 %v122
  %v124 = vpop.xlane.xlu0 %123
  %v125 = vsel %vm45, %v100, 0.0
  %126 = vadd.xlane.f32.xlu0 %v125
  %v127 = vpop.xlane.xlu0 %126
  %v128 = vmul.f32 %v103, %v73
  %v129 = vmul.f32 %v106, %v73
  %v130 = vmul.f32 %v109, %v73
  %v131 = vmul.f32 %v112, %v73
  %v132 = vmul.f32 %v115, %v73
  %v133 = vmul.f32 %v118, %v73
  %v134 = vmul.f32 %v121, %v73
  %v135 = vmul.f32 %v124, %v73
  %v136 = vmul.f32 %v127, %v73
  %v137 = vadd.f32 %v128, 1e-06
  %v138 = vadd.f32 %v129, 1e-06
  %v139 = vadd.f32 %v130, 1e-06
  %v140 = vadd.f32 %v131, 1e-06
  %v141 = vadd.f32 %v132, 1e-06
  %v142 = vadd.f32 %v133, 1e-06
  %v143 = vadd.f32 %v134, 1e-06
  %v144 = vadd.f32 %v135, 1e-06
  %v145 = vadd.f32 %v136, 1e-06
  %v146 = vrsqrt.pop %v137
  %v147 = vrsqrt.pop %v138
  %v148 = vrsqrt.pop %v139
  %v149 = vrsqrt.pop %v140
  %v150 = vrsqrt.pop %v141
  %v151 = vrsqrt.pop %v142
  %v152 = vrsqrt.pop %v143
  %v153 = vrsqrt.pop %v144
  %v154 = vrsqrt.pop %v145
  %v155 = vmul.f32 %v83, %v146
  %v156 = vmul.f32 %v84, %v147
  %v157 = vmul.f32 %v85, %v148
  %v158 = vmul.f32 %v86, %v149
  %v159 = vmul.f32 %v87, %v150
  %v160 = vmul.f32 %v88, %v151
  %v161 = vmul.f32 %v89, %v152
  %v162 = vmul.f32 %v90, %v153
  %v163 = vmul.f32 %v91, %v154
  %v164 = vld [vmem:[%s2] sm:$0x1]
  %v166 = vlaneseq
  %v167 = vshrl.u32 %v166, 7
  %v168 = vsub.s32 0, %v167
  %v169 = vrot.slane %v164, %v168
  %v171 = vmul.f32 %v155, %v169
  %v172 = vmul.f32 %v156, %v169
  %v173 = vmul.f32 %v157, %v169
  %v174 = vmul.f32 %v158, %v169
  %v175 = vmul.f32 %v159, %v169
  %v176 = vmul.f32 %v160, %v169
  %v177 = vmul.f32 %v161, %v169
  %v178 = vmul.f32 %v162, %v169
  %v179 = vmul.f32 %v163, %v169
  %v180 = vld [vmem:[%s3] sm:$0x1]
  %v182 = vlaneseq
  %v183 = vshrl.u32 %v182, 7
  %v184 = vsub.s32 0, %v183
  %v185 = vrot.slane %v180, %v184
  %v187 = vadd.f32 %v171, %v185
  %v188 = vadd.f32 %v172, %v185
  %v189 = vadd.f32 %v173, %v185
  %v190 = vadd.f32 %v174, %v185
  %v191 = vadd.f32 %v175, %v185
  %v192 = vadd.f32 %v176, %v185
  %v193 = vadd.f32 %v177, %v185
  %v194 = vadd.f32 %v178, %v185
  %v195 = vadd.f32 %v179, %v185
  %v196 = vpack.c.bf16 %v188, %v187
  %v197 = vpack.c.bf16 %v190, %v189
  %v198 = vpack.c.bf16 %v192, %v191
  %v199 = vpack.c.bf16 %v194, %v193
  %v200 = vpack.c.bf16 %v195, %v195
  %v201 = vld [vmem:[%s4] sm:$0xf]
  %v202 = vld [vmem:[%s4 + $0x4] sm:$0xf]
  %v203 = vld [vmem:[%s4 + $0x8] sm:$0xf]
  %v204 = vld [vmem:[%s4 + $0xc] sm:$0xf]
  %v205 = vld [vmem:[%s5] sm:$0x1]
  %v207 = vlaneseq
  %v208 = vshrl.u32 %v207, 7
  %v209 = vsub.s32 0, %v208
  %v210 = vrot.slane %v205, %v209
  %v216 = vunpack.c.l.b16 %v201
  %v217 = vunpack.c.l.b16 %v202
  %v218 = vunpack.c.l.b16 %v203
  %v219 = vunpack.c.l.b16 %v204
  %v220 = vpack.c.b16 %v217, %v216
  %v221 = vpack.c.b16 %v219, %v218
  %v225 = vsel %vm45, %v196, 0
  %v228 = vsel %vm45, %v197, 0
  %v231 = vsel %vm45, %v198, 0
  %v234 = vsel %vm45, %v199, 0
  %v237 = vsel %vm45, %v200, 0
  %239 = vmatprep.subr.bf16.mxu0 0
  %240 = vmatpush1.bf16.msra.mxu0 %v220
  %241 = vmatprep.subr.bf16.mxu0 0
  %242 = vmatpush1.bf16.msra.mxu0 %v221
  %243 = vmatprep.subr.bf16.mxu0 0
  %244 = vmatpush1.bf16.msra.mxu0 0
  %245 = vmatprep.subr.bf16.mxu0 0
  %246 = vmatpush1.bf16.msra.mxu0 0
  %247 = vmatprep.subr.bf16.mxu0 0
  %248 = vmatpush1.bf16.msra.mxu0 0
  %249 = vmatprep.subr.bf16.mxu0 0
  %250 = vmatpush1.bf16.msra.mxu0 0
  %251 = vmatprep.subr.bf16.mxu0 0
  %252 = vmatpush1.bf16.msra.mxu0 0
  %253 = vmatprep.subr.bf16.mxu0 0
  %254 = vmatpush1.bf16.msra.mxu0 0
  %255 = vmatprep.subr.bf16.mxu0 0
  %256 = vmatpush1.bf16.msra.mxu0 0
  %257 = vmatprep.subr.bf16.mxu0 0
  %258 = vmatpush1.bf16.msra.mxu0 0
  %259 = vmatprep.subr.bf16.mxu0 0
  %260 = vmatpush1.bf16.msra.mxu0 0
  %261 = vmatprep.subr.bf16.mxu0 0
  %262 = vmatpush1.bf16.msra.mxu0 0
  %263 = vmatprep.subr.bf16.mxu0 0
  %264 = vmatpush1.bf16.msra.mxu0 0
  %265 = vmatprep.subr.bf16.mxu0 0
  %266 = vmatpush1.bf16.msra.mxu0 0
  %267 = vmatprep.subr.bf16.mxu0 0
  %268 = vmatpush1.bf16.msra.mxu0 0
  %269 = vmatprep.subr.bf16.mxu0 0
  %270 = vmatpush1.bf16.msra.mxu0 0
  %271 = vmatprep.mubr.bf16.mxu0 0
  %272 = vmatmul.mubr.bf16.gmra.mrb[0].mxu0 %v225
  %v273 = vpop.f32.mrb[0].mxu0
  %v274 = vadd.f32 %v210, %v273
  %v275 = vpop.f32.mrb[0].mxu0
  %v276 = vpop.f32.mrb[0].mxu0
  %v277 = vadd.f32 %v210, %v276
  %v278 = vpop.f32.mrb[0].mxu0
  %279 = vmatprep.mubr.bf16.mxu0 0
  %280 = vmatmul.mubr.bf16.gmra.mrb[0].mxu0 %v228
  %v281 = vpop.f32.mrb[0].mxu0
  %v282 = vadd.f32 %v210, %v281
  %v283 = vpop.f32.mrb[0].mxu0
  %v284 = vpop.f32.mrb[0].mxu0
  %v285 = vadd.f32 %v210, %v284
  %v286 = vpop.f32.mrb[0].mxu0
  %287 = vmatprep.mubr.bf16.mxu0 0
  %288 = vmatmul.mubr.bf16.gmra.mrb[0].mxu0 %v231
  %v289 = vpop.f32.mrb[0].mxu0
  %v290 = vadd.f32 %v210, %v289
  %v291 = vpop.f32.mrb[0].mxu0
  %v292 = vpop.f32.mrb[0].mxu0
  %v293 = vadd.f32 %v210, %v292
  %v294 = vpop.f32.mrb[0].mxu0
  %295 = vmatprep.mubr.bf16.mxu0 0
  %296 = vmatmul.mubr.bf16.gmra.mrb[0].mxu0 %v234
  %v297 = vpop.f32.mrb[0].mxu0
  %v298 = vadd.f32 %v210, %v297
  %v299 = vpop.f32.mrb[0].mxu0
  %v300 = vpop.f32.mrb[0].mxu0
  %v301 = vadd.f32 %v210, %v300
  %v302 = vpop.f32.mrb[0].mxu0
  %303 = vmatprep.mubr.bf16.mxu0 0
  %304 = vmatmul.mubr.bf16.gmra.mrb[0].mxu0 %v237
  %v305 = vpop.f32.mrb[0].mxu0
  %v306 = vadd.f32 %v210, %v305
  %v307 = vpop.f32.mrb[0].mxu0
  %v308 = vpop.f32.mrb[0].mxu0
  %v309 = vpop.f32.mrb[0].mxu0
  %310 = vdwg.mxu0
  %v311 = vmul.f32 %v274, 0.5
  %v312 = vmul.f32 %v277, 0.5
  %v313 = vmul.f32 %v282, 0.5
  %v314 = vmul.f32 %v285, 0.5
  %v315 = vmul.f32 %v290, 0.5
  %v316 = vmul.f32 %v293, 0.5
  %v317 = vmul.f32 %v298, 0.5
  %v318 = vmul.f32 %v301, 0.5
  %v319 = vmul.f32 %v306, 0.5
  %v320 = vmul.f32 %v274, 0.044715
  %v321 = vmul.f32 %v277, 0.044715
  %v322 = vmul.f32 %v282, 0.044715
  %v323 = vmul.f32 %v285, 0.044715
  %v324 = vmul.f32 %v290, 0.044715
  %v325 = vmul.f32 %v293, 0.044715
  %v326 = vmul.f32 %v298, 0.044715
  %v327 = vmul.f32 %v301, 0.044715
  %v328 = vmul.f32 %v306, 0.044715
  %v329 = vmul.f32 %v320, %v274
  %v330 = vmul.f32 %v321, %v277
  %v331 = vmul.f32 %v322, %v282
  %v332 = vmul.f32 %v323, %v285
  %v333 = vmul.f32 %v324, %v290
  %v334 = vmul.f32 %v325, %v293
  %v335 = vmul.f32 %v326, %v298
  %v336 = vmul.f32 %v327, %v301
  %v337 = vmul.f32 %v328, %v306
  %v338 = vmul.f32 %v329, %v274
  %v339 = vmul.f32 %v330, %v277
  %v340 = vmul.f32 %v331, %v282
  %v341 = vmul.f32 %v332, %v285
  %v342 = vmul.f32 %v333, %v290
  %v343 = vmul.f32 %v334, %v293
  %v344 = vmul.f32 %v335, %v298
  %v345 = vmul.f32 %v336, %v301
  %v346 = vmul.f32 %v337, %v306
  %v347 = vadd.f32 %v274, %v338
  %v348 = vadd.f32 %v277, %v339
  %v349 = vadd.f32 %v282, %v340
  %v350 = vadd.f32 %v285, %v341
  %v351 = vadd.f32 %v290, %v342
  %v352 = vadd.f32 %v293, %v343
  %v353 = vadd.f32 %v298, %v344
  %v354 = vadd.f32 %v301, %v345
  %v355 = vadd.f32 %v306, %v346
  %v356 = vmul.f32 %v347, 0.7978846
  %v357 = vmul.f32 %v348, 0.7978846
  %v358 = vmul.f32 %v349, 0.7978846
  %v359 = vmul.f32 %v350, 0.7978846
  %v360 = vmul.f32 %v351, 0.7978846
  %v361 = vmul.f32 %v352, 0.7978846
  %v362 = vmul.f32 %v353, 0.7978846
  %v363 = vmul.f32 %v354, 0.7978846
  %v364 = vmul.f32 %v355, 0.7978846
  %v365 = vtanh.pop %v356
  %v366 = vtanh.pop %v357
  %v367 = vtanh.pop %v358
  %v368 = vtanh.pop %v359
  %v369 = vtanh.pop %v360
  %v370 = vtanh.pop %v361
  %v371 = vtanh.pop %v362
  %v372 = vtanh.pop %v363
  %v373 = vtanh.pop %v364
  %v374 = vadd.f32 %v365, 1.0
  %v375 = vadd.f32 %v366, 1.0
  %v376 = vadd.f32 %v367, 1.0
  %v377 = vadd.f32 %v368, 1.0
  %v378 = vadd.f32 %v369, 1.0
  %v379 = vadd.f32 %v370, 1.0
  %v380 = vadd.f32 %v371, 1.0
  %v381 = vadd.f32 %v372, 1.0
  %v382 = vadd.f32 %v373, 1.0
  %v383 = vmul.f32 %v311, %v374
  %v384 = vmul.f32 %v312, %v375
  %v385 = vmul.f32 %v313, %v376
  %v386 = vmul.f32 %v314, %v377
  %v387 = vmul.f32 %v315, %v378
  %v388 = vmul.f32 %v316, %v379
  %v389 = vmul.f32 %v317, %v380
  %v390 = vmul.f32 %v318, %v381
  %v391 = vmul.f32 %v319, %v382
  %v392 = vpack.c.bf16 %v384, %v383
  %v393 = vpack.c.bf16 %v386, %v385
  %v394 = vpack.c.bf16 %v388, %v387
  %v395 = vpack.c.bf16 %v390, %v389
  %v396 = vpack.c.bf16 %v391, %v391
  %v397 = vld [vmem:[%s6] sm:$0xf]
  %v398 = vld [vmem:[%s6 + $0x4] sm:$0xf]
  %v399 = vld [vmem:[%s6 + $0x8] sm:$0xf]
  %v400 = vld [vmem:[%s6 + $0xc] sm:$0xf]
  %v401 = vld [vmem:[%s6 + $0x10] sm:$0xf]
  %v402 = vld [vmem:[%s6 + $0x14] sm:$0xf]
  %v403 = vld [vmem:[%s6 + $0x18] sm:$0xf]
  %v404 = vld [vmem:[%s6 + $0x1c] sm:$0xf]
  %v405 = vld [vmem:[%s6 + $0x20] sm:$0xf]
  %v406 = vld [vmem:[%s6 + $0x24] sm:$0xf]
  %v407 = vld [vmem:[%s6 + $0x28] sm:$0xf]
  %v408 = vld [vmem:[%s6 + $0x2c] sm:$0xf]
  %v409 = vld [vmem:[%s6 + $0x30] sm:$0xf]
  %v410 = vld [vmem:[%s6 + $0x34] sm:$0xf]
  %v411 = vld [vmem:[%s6 + $0x38] sm:$0xf]
  %v412 = vld [vmem:[%s6 + $0x3c] sm:$0xf]
  %v413 = vld [vmem:[%s7] sm:$0x1]
  %v415 = vlaneseq
  %v416 = vshrl.u32 %v415, 7
  %v417 = vsub.s32 0, %v416
  %v418 = vrot.slane %v413, %v417
  %v436 = vunpack.c.l.b16 %v397
  %v437 = vunpack.c.l.b16 %v398
  %v438 = vunpack.c.l.b16 %v399
  %v439 = vunpack.c.l.b16 %v400
  %v440 = vunpack.c.l.b16 %v401
  %v441 = vunpack.c.l.b16 %v402
  %v442 = vunpack.c.l.b16 %v403
  %v443 = vunpack.c.l.b16 %v404
  %v444 = vunpack.c.l.b16 %v405
  %v445 = vunpack.c.l.b16 %v406
  %v446 = vunpack.c.l.b16 %v407
  %v447 = vunpack.c.l.b16 %v408
  %v448 = vunpack.c.l.b16 %v409
  %v449 = vunpack.c.l.b16 %v410
  %v450 = vunpack.c.l.b16 %v411
  %v451 = vunpack.c.l.b16 %v412
  %v452 = vpack.c.b16 %v437, %v436
  %v453 = vpack.c.b16 %v439, %v438
  %v454 = vpack.c.b16 %v441, %v440
  %v455 = vpack.c.b16 %v443, %v442
  %v456 = vpack.c.b16 %v445, %v444
  %v457 = vpack.c.b16 %v447, %v446
  %v458 = vpack.c.b16 %v449, %v448
  %v459 = vpack.c.b16 %v451, %v450
  %468 = vmatprep.subr.bf16.mxu0 0
  %469 = vmatpush1.bf16.msra.mxu0 %v452
  %470 = vmatprep.subr.bf16.mxu0 0
  %471 = vmatpush1.bf16.msra.mxu0 %v453
  %472 = vmatprep.subr.bf16.mxu0 0
  %473 = vmatpush1.bf16.msra.mxu0 %v454
  %474 = vmatprep.subr.bf16.mxu0 0
  %475 = vmatpush1.bf16.msra.mxu0 %v455
  %476 = vmatprep.subr.bf16.mxu0 0
  %477 = vmatpush1.bf16.msra.mxu0 %v456
  %478 = vmatprep.subr.bf16.mxu0 0
  %479 = vmatpush1.bf16.msra.mxu0 %v457
  %480 = vmatprep.subr.bf16.mxu0 0
  %481 = vmatpush1.bf16.msra.mxu0 %v458
  %482 = vmatprep.subr.bf16.mxu0 0
  %483 = vmatpush1.bf16.msra.mxu0 %v459
  %484 = vmatprep.subr.bf16.mxu0 0
  %485 = vmatpush1.bf16.msra.mxu0 0
  %486 = vmatprep.subr.bf16.mxu0 0
  %487 = vmatpush1.bf16.msra.mxu0 0
  %488 = vmatprep.subr.bf16.mxu0 0
  %489 = vmatpush1.bf16.msra.mxu0 0
  %490 = vmatprep.subr.bf16.mxu0 0
  %491 = vmatpush1.bf16.msra.mxu0 0
  %492 = vmatprep.subr.bf16.mxu0 0
  %493 = vmatpush1.bf16.msra.mxu0 0
  %494 = vmatprep.subr.bf16.mxu0 0
  %495 = vmatpush1.bf16.msra.mxu0 0
  %496 = vmatprep.subr.bf16.mxu0 0
  %497 = vmatpush1.bf16.msra.mxu0 0
  %498 = vmatprep.subr.bf16.mxu0 0
  %499 = vmatpush1.bf16.msra.mxu0 0
  %500 = vmatprep.mubr.bf16.mxu0 0
  %501 = vmatmul.mubr.bf16.gmra.mrb[0].mxu0 %v392
  %v502 = vpop.f32.mrb[0].mxu0
  %v503 = vadd.f32 %v418, %v502
  %v504 = vpop.f32.mrb[0].mxu0
  %v505 = vpop.f32.mrb[0].mxu0
  %v506 = vadd.f32 %v418, %v505
  %v507 = vpop.f32.mrb[0].mxu0
  %508 = vmatprep.mubr.bf16.mxu0 0
  %509 = vmatmul.mubr.bf16.gmra.mrb[0].mxu0 %v393
  %v510 = vpop.f32.mrb[0].mxu0
  %v511 = vadd.f32 %v418, %v510
  %v512 = vpop.f32.mrb[0].mxu0
  %v513 = vpop.f32.mrb[0].mxu0
  %v514 = vadd.f32 %v418, %v513
  %v515 = vpop.f32.mrb[0].mxu0
  %516 = vmatprep.mubr.bf16.mxu0 0
  %517 = vmatmul.mubr.bf16.gmra.mrb[0].mxu0 %v394
  %v518 = vpop.f32.mrb[0].mxu0
  %v519 = vadd.f32 %v418, %v518
  %v520 = vpop.f32.mrb[0].mxu0
  %v521 = vpop.f32.mrb[0].mxu0
  %v522 = vadd.f32 %v418, %v521
  %v523 = vpop.f32.mrb[0].mxu0
  %524 = vmatprep.mubr.bf16.mxu0 0
  %525 = vmatmul.mubr.bf16.gmra.mrb[0].mxu0 %v395
  %v526 = vpop.f32.mrb[0].mxu0
  %v527 = vadd.f32 %v418, %v526
  %v528 = vpop.f32.mrb[0].mxu0
  %v529 = vpop.f32.mrb[0].mxu0
  %v530 = vadd.f32 %v418, %v529
  %v531 = vpop.f32.mrb[0].mxu0
  %532 = vmatprep.mubr.bf16.mxu0 0
  %533 = vmatmul.mubr.bf16.gmra.mrb[0].mxu0 %v396
  %v534 = vpop.f32.mrb[0].mxu0
  %v535 = vadd.f32 %v418, %v534
  %v536 = vpop.f32.mrb[0].mxu0
  %v537 = vpop.f32.mrb[0].mxu0
  %v538 = vpop.f32.mrb[0].mxu0
  %539 = vdwg.mxu0
  %v540 = vld [vmem:[%s1] sm:$0xff]
  %v541 = vld [vmem:[%s1 + $0x8] sm:$0xff]
  %v542 = vld [vmem:[%s1 + $0x10] sm:$0xff]
  %v543 = vld [vmem:[%s1 + $0x18] sm:$0xff]
  %v544 = vld [vmem:[%s1 + $0x20] sm:$0xff]
  %v545 = vld [vmem:[%s1 + $0x28] sm:$0xff]
  %v546 = vld [vmem:[%s1 + $0x30] sm:$0xff]
  %v547 = vld [vmem:[%s1 + $0x38] sm:$0xff]
  %v548 = vld [vmem:[%s1 + $0x40] sm:$0xff]
  %v549 = vadd.f32 %v503, %v540
  %v550 = vadd.f32 %v506, %v541
  %v551 = vadd.f32 %v511, %v542
  %v552 = vadd.f32 %v514, %v543
  %v553 = vadd.f32 %v519, %v544
  %v554 = vadd.f32 %v522, %v545
  %v555 = vadd.f32 %v527, %v546
  %v556 = vadd.f32 %v530, %v547
  %v557 = vadd.f32 %v535, %v548
  %v558 = vsel %vm45, %v549, 0.0
  %559 = vadd.xlane.f32.xlu0 %v558
  %v560 = vpop.xlane.xlu0 %559
  %v561 = vsel %vm45, %v550, 0.0
  %562 = vadd.xlane.f32.xlu0 %v561
  %v563 = vpop.xlane.xlu0 %562
  %v564 = vsel %vm45, %v551, 0.0
  %565 = vadd.xlane.f32.xlu0 %v564
  %v566 = vpop.xlane.xlu0 %565
  %v567 = vsel %vm45, %v552, 0.0
  %568 = vadd.xlane.f32.xlu0 %v567
  %v569 = vpop.xlane.xlu0 %568
  %v570 = vsel %vm45, %v553, 0.0
  %571 = vadd.xlane.f32.xlu0 %v570
  %v572 = vpop.xlane.xlu0 %571
  %v573 = vsel %vm45, %v554, 0.0
  %574 = vadd.xlane.f32.xlu0 %v573
  %v575 = vpop.xlane.xlu0 %574
  %v576 = vsel %vm45, %v555, 0.0
  %577 = vadd.xlane.f32.xlu0 %v576
  %v578 = vpop.xlane.xlu0 %577
  %v579 = vsel %vm45, %v556, 0.0
  %580 = vadd.xlane.f32.xlu0 %v579
  %v581 = vpop.xlane.xlu0 %580
  %v582 = vsel %vm45, %v557, 0.0
  %583 = vadd.xlane.f32.xlu0 %v582
  %v584 = vpop.xlane.xlu0 %583
  %v585 = vmul.f32 %v560, %v73
  %v586 = vmul.f32 %v563, %v73
  %v587 = vmul.f32 %v566, %v73
  %v588 = vmul.f32 %v569, %v73
  %v589 = vmul.f32 %v572, %v73
  %v590 = vmul.f32 %v575, %v73
  %v591 = vmul.f32 %v578, %v73
  %v592 = vmul.f32 %v581, %v73
  %v593 = vmul.f32 %v584, %v73
  %v594 = vsub.f32 %v549, %v585
  %v595 = vsub.f32 %v550, %v586
  %v596 = vsub.f32 %v551, %v587
  %v597 = vsub.f32 %v552, %v588
  %v598 = vsub.f32 %v553, %v589
  %v599 = vsub.f32 %v554, %v590
  %v600 = vsub.f32 %v555, %v591
  %v601 = vsub.f32 %v556, %v592
  %v602 = vsub.f32 %v557, %v593
  %v603 = vmul.f32 %v594, %v594
  %v604 = vmul.f32 %v595, %v595
  %v605 = vmul.f32 %v596, %v596
  %v606 = vmul.f32 %v597, %v597
  %v607 = vmul.f32 %v598, %v598
  %v608 = vmul.f32 %v599, %v599
  %v609 = vmul.f32 %v600, %v600
  %v610 = vmul.f32 %v601, %v601
  %v611 = vmul.f32 %v602, %v602
  %v612 = vsel %vm45, %v603, 0.0
  %613 = vadd.xlane.f32.xlu0 %v612
  %v614 = vpop.xlane.xlu0 %613
  %v615 = vsel %vm45, %v604, 0.0
  %616 = vadd.xlane.f32.xlu0 %v615
  %v617 = vpop.xlane.xlu0 %616
  %v618 = vsel %vm45, %v605, 0.0
  %619 = vadd.xlane.f32.xlu0 %v618
  %v620 = vpop.xlane.xlu0 %619
  %v621 = vsel %vm45, %v606, 0.0
  %622 = vadd.xlane.f32.xlu0 %v621
  %v623 = vpop.xlane.xlu0 %622
  %v624 = vsel %vm45, %v607, 0.0
  %625 = vadd.xlane.f32.xlu0 %v624
  %v626 = vpop.xlane.xlu0 %625
  %v627 = vsel %vm45, %v608, 0.0
  %628 = vadd.xlane.f32.xlu0 %v627
  %v629 = vpop.xlane.xlu0 %628
  %v630 = vsel %vm45, %v609, 0.0
  %631 = vadd.xlane.f32.xlu0 %v630
  %v632 = vpop.xlane.xlu0 %631
  %v633 = vsel %vm45, %v610, 0.0
  %634 = vadd.xlane.f32.xlu0 %v633
  %v635 = vpop.xlane.xlu0 %634
  %v636 = vsel %vm45, %v611, 0.0
  %637 = vadd.xlane.f32.xlu0 %v636
  %v638 = vpop.xlane.xlu0 %637
  %v639 = vmul.f32 %v614, %v73
  %v640 = vmul.f32 %v617, %v73
  %v641 = vmul.f32 %v620, %v73
  %v642 = vmul.f32 %v623, %v73
  %v643 = vmul.f32 %v626, %v73
  %v644 = vmul.f32 %v629, %v73
  %v645 = vmul.f32 %v632, %v73
  %v646 = vmul.f32 %v635, %v73
  %v647 = vmul.f32 %v638, %v73
  %v648 = vadd.f32 %v639, 1e-06
  %v649 = vadd.f32 %v640, 1e-06
  %v650 = vadd.f32 %v641, 1e-06
  %v651 = vadd.f32 %v642, 1e-06
  %v652 = vadd.f32 %v643, 1e-06
  %v653 = vadd.f32 %v644, 1e-06
  %v654 = vadd.f32 %v645, 1e-06
  %v655 = vadd.f32 %v646, 1e-06
  %v656 = vadd.f32 %v647, 1e-06
  %v657 = vrsqrt.pop %v648
  %v658 = vrsqrt.pop %v649
  %v659 = vrsqrt.pop %v650
  %v660 = vrsqrt.pop %v651
  %v661 = vrsqrt.pop %v652
  %v662 = vrsqrt.pop %v653
  %v663 = vrsqrt.pop %v654
  %v664 = vrsqrt.pop %v655
  %v665 = vrsqrt.pop %v656
  %v666 = vmul.f32 %v594, %v657
  %v667 = vmul.f32 %v595, %v658
  %v668 = vmul.f32 %v596, %v659
  %v669 = vmul.f32 %v597, %v660
  %v670 = vmul.f32 %v598, %v661
  %v671 = vmul.f32 %v599, %v662
  %v672 = vmul.f32 %v600, %v663
  %v673 = vmul.f32 %v601, %v664
  %v674 = vmul.f32 %v602, %v665
  %v675 = vld [vmem:[%s8] sm:$0x1]
  %v677 = vlaneseq
  %v678 = vshrl.u32 %v677, 7
  %v679 = vsub.s32 0, %v678
  %v680 = vrot.slane %v675, %v679
  %v682 = vmul.f32 %v666, %v680
  %v683 = vmul.f32 %v667, %v680
  %v684 = vmul.f32 %v668, %v680
  %v685 = vmul.f32 %v669, %v680
  %v686 = vmul.f32 %v670, %v680
  %v687 = vmul.f32 %v671, %v680
  %v688 = vmul.f32 %v672, %v680
  %v689 = vmul.f32 %v673, %v680
  %v690 = vmul.f32 %v674, %v680
  %v691 = vld [vmem:[%s9] sm:$0x1]
  %v693 = vlaneseq
  %v694 = vshrl.u32 %v693, 7
  %v695 = vsub.s32 0, %v694
  %v696 = vrot.slane %v691, %v695
  %v698 = vadd.f32 %v682, %v696
  %v699 = vadd.f32 %v683, %v696
  %v700 = vadd.f32 %v684, %v696
  %v701 = vadd.f32 %v685, %v696
  %v702 = vadd.f32 %v686, %v696
  %v703 = vadd.f32 %v687, %v696
  %v704 = vadd.f32 %v688, %v696
  %v705 = vadd.f32 %v689, %v696
  %v706 = vadd.f32 %v690, %v696
  %707 = vst.msk [vmem:[%s10] sm:$0xff] %vm45, %v698
  %708 = vst.msk [vmem:[%s10 + $0x8] sm:$0xff] %vm45, %v699
  %709 = vst.msk [vmem:[%s10 + $0x10] sm:$0xff] %vm45, %v700
  %710 = vst.msk [vmem:[%s10 + $0x18] sm:$0xff] %vm45, %v701
  %711 = vst.msk [vmem:[%s10 + $0x20] sm:$0xff] %vm45, %v702
  %712 = vst.msk [vmem:[%s10 + $0x28] sm:$0xff] %vm45, %v703
  %713 = vst.msk [vmem:[%s10 + $0x30] sm:$0xff] %vm45, %v704
  %714 = vst.msk [vmem:[%s10 + $0x38] sm:$0xff] %vm45, %v705
  %715 = vst.msk [vmem:[%s10 + $0x40] sm:$0xff] %vm45, %v706
  // Predicated region
  $region42: #{invnet_forward.15} parent=0 // pred_check
    _
  $region43: #{invnet_forward.15} parent=0 // pred_check_branch
    %717 = sbr.rel (0) target = $region45
  $region44: #{invnet_forward.15} parent=0 // pred_region
    _
  $region45: #{invnet_forward.15} parent=0 // pred_fallthru
    _
  // Predicated region
  $region46: #{invnet_forward.15} parent=0 // pred_check
    _
  $region47: #{invnet_forward.15} parent=0 // pred_check_branch
    %719 = sbr.rel (0) target = $region49
  $region48: #{invnet_forward.15} parent=0 // pred_region
    _
  $region49: #{invnet_forward.15} parent=0 // pred_fallthru
    _

// kernel: invnet_forward.16
$region0: #{invnet_forward.16}
  #allocation0 [shape = 'u32[]', space=smem, size = 0x4, offset = 0x4, fixed_abs, tag = 'smem constant byte address 0x4 - core index']
  #allocation1 [shape = 'u32[144,128]{1,0:T(1,128)}', space=vmem, size = 0x12000, scoped, tag = 'internal scratch']
  %s0 = inlined_call_operand.vmem [shape: bf16[8,288], index: 0, kind: input, shape index: {}]
  %s1 = inlined_call_operand.vmem [shape: bf16[288,64], index: 1, kind: input, shape index: {}]
  %s2 = inlined_call_operand.vmem [shape: f32[1,64], index: 2, kind: input, shape index: {}]
  %s3 = inlined_call_operand.vmem [shape: f32[8,64], index: 3, kind: output, shape index: {}]
  %s4 = sld [smem:[#allocation0]]
  $region22: #{invnet_forward.16} parent=0
    _
  %s6 = ssub.s32 1, %s4
  %s7 = scalar_select 0, %s6, %s4
  // Predicated region
  $region2: #{invnet_forward.16} parent=0 // pred_check
    _
  $region3: #{invnet_forward.16} parent=0 // pred_check_branch
    %9 = sbr.rel (0) target = $region5
  $region4: #{invnet_forward.16} parent=0 // pred_region
    _
  $region5: #{invnet_forward.16} parent=0 // pred_fallthru
    _
  // Predicated region
  $region6: #{invnet_forward.16} parent=0 // pred_check
    _
  $region7: #{invnet_forward.16} parent=0 // pred_check_branch
    %11 = sbr.rel (0) target = $region9
  $region8: #{invnet_forward.16} parent=0 // pred_region
    _
  $region9: #{invnet_forward.16} parent=0 // pred_fallthru
    _
  // Predicated region
  $region10: #{invnet_forward.16} parent=0 // pred_check
    _
  $region11: #{invnet_forward.16} parent=0 // pred_check_branch
    %13 = sbr.rel (0) target = $region13
  $region12: #{invnet_forward.16} parent=0 // pred_region
    _
  $region13: #{invnet_forward.16} parent=0 // pred_fallthru
    _
  %v15 = vld [vmem:[%s0] sm:$0xff]
  %v16 = vld [vmem:[%s0 + $0x8] sm:$0xf]
  %v17 = vld [vmem:[%s1] sm:$0xf]
  %v18 = vld [vmem:[%s1 + $0x4] sm:$0xf]
  %v19 = vld [vmem:[%s1 + $0x8] sm:$0xf]
  %v20 = vld [vmem:[%s1 + $0xc] sm:$0xf]
  %v21 = vld [vmem:[%s1 + $0x10] sm:$0xf]
  %v22 = vld [vmem:[%s1 + $0x14] sm:$0xf]
  %v23 = vld [vmem:[%s1 + $0x18] sm:$0xf]
  %v24 = vld [vmem:[%s1 + $0x1c] sm:$0xf]
  %v25 = vld [vmem:[%s1 + $0x20] sm:$0xf]
  %v26 = vld [vmem:[%s1 + $0x24] sm:$0xf]
  %v27 = vld [vmem:[%s1 + $0x28] sm:$0xf]
  %v28 = vld [vmem:[%s1 + $0x2c] sm:$0xf]
  %v29 = vld [vmem:[%s1 + $0x30] sm:$0xf]
  %v30 = vld [vmem:[%s1 + $0x34] sm:$0xf]
  %v31 = vld [vmem:[%s1 + $0x38] sm:$0xf]
  %v32 = vld [vmem:[%s1 + $0x3c] sm:$0xf]
  %v33 = vld [vmem:[%s1 + $0x40] sm:$0xf]
  %v34 = vld [vmem:[%s1 + $0x44] sm:$0xf]
  %v35 = vld [vmem:[%s1 + $0x48] sm:$0xf]
  %v36 = vld [vmem:[%s1 + $0x4c] sm:$0xf]
  %v37 = vld [vmem:[%s1 + $0x50] sm:$0xf]
  %v38 = vld [vmem:[%s1 + $0x54] sm:$0xf]
  %v39 = vld [vmem:[%s1 + $0x58] sm:$0xf]
  %v40 = vld [vmem:[%s1 + $0x5c] sm:$0xf]
  %v41 = vld [vmem:[%s1 + $0x60] sm:$0xf]
  %v42 = vld [vmem:[%s1 + $0x64] sm:$0xf]
  %v43 = vld [vmem:[%s1 + $0x68] sm:$0xf]
  %v44 = vld [vmem:[%s1 + $0x6c] sm:$0xf]
  %v45 = vld [vmem:[%s1 + $0x70] sm:$0xf]
  %v46 = vld [vmem:[%s1 + $0x74] sm:$0xf]
  %v47 = vld [vmem:[%s1 + $0x78] sm:$0xf]
  %v48 = vld [vmem:[%s1 + $0x7c] sm:$0xf]
  %v49 = vld [vmem:[%s1 + $0x80] sm:$0xf]
  %v50 = vld [vmem:[%s1 + $0x84] sm:$0xf]
  %v51 = vld [vmem:[%s1 + $0x88] sm:$0xf]
  %v52 = vld [vmem:[%s1 + $0x8c] sm:$0xf]
  %v53 = vld [vmem:[%s2] sm:$0x1]
  %v55 = vlaneseq
  %v56 = vshrl.u32 %v55, 7
  %v57 = vsub.s32 0, %v56
  %v58 = vrot.slane %v53, %v57
  %v62 = vunpack.c.l.b16 %v15
  %v63 = vunpack.c.h.b16 %v15
  %v64 = vunpack.c.l.b16 %v16
  %v65 = vpack.c.b16 %v62, %v62
  %v66 = vpack.c.b16 %v63, %v63
  %v67 = vpack.c.b16 %v64, %v64
  %v106 = vunpack.c.l.b16 %v17
  %v107 = vunpack.c.l.b16 %v18
  %v108 = vunpack.c.l.b16 %v19
  %v109 = vunpack.c.l.b16 %v20
  %v110 = vunpack.c.l.b16 %v21
  %v111 = vunpack.c.l.b16 %v22
  %v112 = vunpack.c.l.b16 %v23
  %v113 = vunpack.c.l.b16 %v24
  %v114 = vunpack.c.l.b16 %v25
  %v115 = vunpack.c.l.b16 %v26
  %v116 = vunpack.c.l.b16 %v27
  %v117 = vunpack.c.l.b16 %v28
  %v118 = vunpack.c.l.b16 %v29
  %v119 = vunpack.c.l.b16 %v30
  %v120 = vunpack.c.l.b16 %v31
  %v121 = vunpack.c.l.b16 %v32
  %v122 = vunpack.c.l.b16 %v33
  %v123 = vunpack.c.l.b16 %v34
  %v124 = vunpack.c.l.b16 %v35
  %v125 = vunpack.c.l.b16 %v36
  %v126 = vunpack.c.l.b16 %v37
  %v127 = vunpack.c.l.b16 %v38
  %v128 = vunpack.c.l.b16 %v39
  %v129 = vunpack.c.l.b16 %v40
  %v130 = vunpack.c.l.b16 %v41
  %v131 = vunpack.c.l.b16 %v42
  %v132 = vunpack.c.l.b16 %v43
  %v133 = vunpack.c.l.b16 %v44
  %v134 = vunpack.c.l.b16 %v45
  %v135 = vunpack.c.l.b16 %v46
  %v136 = vunpack.c.l.b16 %v47
  %v137 = vunpack.c.l.b16 %v48
  %v138 = vunpack.c.l.b16 %v49
  %v139 = vunpack.c.l.b16 %v50
  %v140 = vunpack.c.l.b16 %v51
  %v141 = vunpack.c.l.b16 %v52
  %v142 = vpack.c.b16 %v107, %v106
  %v143 = vpack.c.b16 %v109, %v108
  %v144 = vpack.c.b16 %v111, %v110
  %v145 = vpack.c.b16 %v113, %v112
  %v146 = vpack.c.b16 %v115, %v114
  %v147 = vpack.c.b16 %v117, %v116
  %v148 = vpack.c.b16 %v119, %v118
  %v149 = vpack.c.b16 %v121, %v120
  %v150 = vpack.c.b16 %v123, %v122
  %v151 = vpack.c.b16 %v125, %v124
  %v152 = vpack.c.b16 %v127, %v126
  %v153 = vpack.c.b16 %v129, %v128
  %v154 = vpack.c.b16 %v131, %v130
  %v155 = vpack.c.b16 %v133, %v132
  %v156 = vpack.c.b16 %v135, %v134
  %v157 = vpack.c.b16 %v137, %v136
  %v158 = vpack.c.b16 %v139, %v138
  %v159 = vpack.c.b16 %v141, %v140
  %vm178 = vcmask 261120
  %v180 = vsel %vm178, %v67, 0
  %182 = vmatprep.subr.bf16.mxu0 0
  %183 = vmatpush1.bf16.msra.mxu0 %v142
  %184 = vmatprep.subr.bf16.mxu0 0
  %185 = vmatpush1.bf16.msra.mxu0 %v143
  %186 = vmatprep.subr.bf16.mxu0 0
  %187 = vmatpush1.bf16.msra.mxu0 %v144
  %188 = vmatprep.subr.bf16.mxu0 0
  %189 = vmatpush1.bf16.msra.mxu0 %v145
  %190 = vmatprep.subr.bf16.mxu0 0
  %191 = vmatpush1.bf16.msra.mxu0 %v146
  %192 = vmatprep.subr.bf16.mxu0 0
  %193 = vmatpush1.bf16.msra.mxu0 %v147
  %194 = vmatprep.subr.bf16.mxu0 0
  %195 = vmatpush1.bf16.msra.mxu0 %v148
  %196 = vmatprep.subr.bf16.mxu0 0
  %197 = vmatpush1.bf16.msra.mxu0 %v149
  %198 = vmatprep.subr.bf16.mxu0 0
  %199 = vmatpush1.bf16.msra.mxu0 %v150
  %200 = vmatprep.subr.bf16.mxu0 0
  %201 = vmatpush1.bf16.msra.mxu0 %v151
  %202 = vmatprep.subr.bf16.mxu0 0
  %203 = vmatpush1.bf16.msra.mxu0 %v152
  %204 = vmatprep.subr.bf16.mxu0 0
  %205 = vmatpush1.bf16.msra.mxu0 %v153
  %206 = vmatprep.subr.bf16.mxu0 0
  %207 = vmatpush1.bf16.msra.mxu0 %v154
  %208 = vmatprep.subr.bf16.mxu0 0
  %209 = vmatpush1.bf16.msra.mxu0 %v155
  %210 = vmatprep.subr.bf16.mxu0 0
  %211 = vmatpush1.bf16.msra.mxu0 %v156
  %212 = vmatprep.subr.bf16.mxu0 0
  %213 = vmatpush1.bf16.msra.mxu0 %v157
  %214 = vmatprep.mubr.bf16.mxu0 %v66
  %215 = vmatmul.mubr.bf16.gmra.mrb[0].mxu0 %v65
  %v216 = vpop.f32.mrb[0].mxu0
  %v217 = vadd.f32 %v58, %v216
  %v218 = vpop.f32.mrb[0].mxu0
  %v219 = vpop.f32.mrb[0].mxu0
  %v220 = vpop.f32.mrb[0].mxu0
  %221 = vdwg.mxu0
  %222 = vmatprep.subr.bf16.mxu0 0
  %223 = vmatpush1.bf16.msra.mxu0 %v158
  %224 = vmatprep.subr.bf16.mxu0 0
  %225 = vmatpush1.bf16.msra.mxu0 %v159
  %226 = vmatprep.subr.bf16.mxu0 0
  %227 = vmatpush1.bf16.msra.mxu0 0
  %228 = vmatprep.subr.bf16.mxu0 0
  %229 = vmatpush1.bf16.msra.mxu0 0
  %230 = vmatprep.subr.bf16.mxu0 0
  %231 = vmatpush1.bf16.msra.mxu0 0
  %232 = vmatprep.subr.bf16.mxu0 0
  %233 = vmatpush1.bf16.msra.mxu0 0
  %234 = vmatprep.subr.bf16.mxu0 0
  %235 = vmatpush1.bf16.msra.mxu0 0
  %236 = vmatprep.subr.bf16.mxu0 0
  %237 = vmatpush1.bf16.msra.mxu0 0
  %238 = vmatprep.subr.bf16.mxu0 0
  %239 = vmatpush1.bf16.msra.mxu0 0
  %240 = vmatprep.subr.bf16.mxu0 0
  %241 = vmatpush1.bf16.msra.mxu0 0
  %242 = vmatprep.subr.bf16.mxu0 0
  %243 = vmatpush1.bf16.msra.mxu0 0
  %244 = vmatprep.subr.bf16.mxu0 0
  %245 = vmatpush1.bf16.msra.mxu0 0
  %246 = vmatprep.subr.bf16.mxu0 0
  %247 = vmatpush1.bf16.msra.mxu0 0
  %248 = vmatprep.subr.bf16.mxu0 0
  %249 = vmatpush1.bf16.msra.mxu0 0
  %250 = vmatprep.subr.bf16.mxu0 0
  %251 = vmatpush1.bf16.msra.mxu0 0
  %252 = vmatprep.subr.bf16.mxu0 0
  %253 = vmatpush1.bf16.msra.mxu0 0
  %254 = vmatprep.mubr.bf16.mxu0 0
  %255 = vmatmul.mubr.bf16.gmra.mrb[0].mxu0 %v180
  %v256 = vpop.f32.mrb[0].mxu0
  %v257 = vadd.f32 %v217, %v256
  %v258 = vpop.f32.mrb[0].mxu0
  %v259 = vpop.f32.mrb[0].mxu0
  %v260 = vpop.f32.mrb[0].mxu0
  %261 = vdwg.mxu0
  %vm262 = vcmask 523264
  %263 = vst.msk [vmem:[%s3] sm:$0xff] %vm262, %v257
  // Predicated region
  $region14: #{invnet_forward.16} parent=0 // pred_check
    _
  $region15: #{invnet_forward.16} parent=0 // pred_check_branch
    %265 = sbr.rel (0) target = $region17
  $region16: #{invnet_forward.16} parent=0 // pred_region
    _
  $region17: #{invnet_forward.16} parent=0 // pred_fallthru
    _
  // Predicated region
  $region18: #{invnet_forward.16} parent=0 // pred_check
    _
  $region19: #{invnet_forward.16} parent=0 // pred_check_branch
    %267 = sbr.rel (0) target = $region21
  $region20: #{invnet_forward.16} parent=0 // pred_region
    _
  $region21: #{invnet_forward.16} parent=0 // pred_fallthru
    _

// kernel: invnet_forward.17
$region0: #{invnet_forward.17}
  #allocation0 [shape = 'u32[]', space=smem, size = 0x4, offset = 0x4, fixed_abs, tag = 'smem constant byte address 0x4 - core index']
  #allocation1 [shape = 'u32[144,128]{1,0:T(1,128)}', space=vmem, size = 0x12000, scoped, tag = 'internal scratch']
  %s0 = inlined_call_operand.vmem [shape: f32[8,64], index: 0, kind: input, shape index: {}]
  %s1 = inlined_call_operand.vmem [shape: f32[1,64], index: 1, kind: input, shape index: {}]
  %s2 = inlined_call_operand.vmem [shape: f32[1,64], index: 2, kind: input, shape index: {}]
  %s3 = inlined_call_operand.vmem [shape: f32[8,64], index: 3, kind: output, shape index: {}]
  %s4 = sld [smem:[#allocation0]]
  $region22: #{invnet_forward.17} parent=0
    _
  %s6 = ssub.s32 1, %s4
  %s7 = scalar_select 0, %s6, %s4
  // Predicated region
  $region2: #{invnet_forward.17} parent=0 // pred_check
    _
  $region3: #{invnet_forward.17} parent=0 // pred_check_branch
    %9 = sbr.rel (0) target = $region5
  $region4: #{invnet_forward.17} parent=0 // pred_region
    _
  $region5: #{invnet_forward.17} parent=0 // pred_fallthru
    _
  // Predicated region
  $region6: #{invnet_forward.17} parent=0 // pred_check
    _
  $region7: #{invnet_forward.17} parent=0 // pred_check_branch
    %11 = sbr.rel (0) target = $region9
  $region8: #{invnet_forward.17} parent=0 // pred_region
    _
  $region9: #{invnet_forward.17} parent=0 // pred_fallthru
    _
  // Predicated region
  $region10: #{invnet_forward.17} parent=0 // pred_check
    _
  $region11: #{invnet_forward.17} parent=0 // pred_check_branch
    %13 = sbr.rel (0) target = $region13
  $region12: #{invnet_forward.17} parent=0 // pred_region
    _
  $region13: #{invnet_forward.17} parent=0 // pred_fallthru
    _
  %v14 = vld [vmem:[%s0] sm:$0xff]
  %vm15 = vcmask 523264
  %v16 = vsel %vm15, %v14, 0.0
  %17 = vadd.xlane.f32.xlu0 %v16
  %v18 = vpop.xlane.xlu0 %17
  %v19 = vrcp.pop 64.0
  %v20 = vmul.f32 %v18, %v19
  %v21 = vsub.f32 %v14, %v20
  %v22 = vmul.f32 %v21, %v21
  %v23 = vsel %vm15, %v22, 0.0
  %24 = vadd.xlane.f32.xlu0 %v23
  %v25 = vpop.xlane.xlu0 %24
  %v26 = vmul.f32 %v25, %v19
  %v27 = vadd.f32 %v26, 1e-06
  %v28 = vrsqrt.pop %v27
  %v29 = vmul.f32 %v21, %v28
  %v30 = vld [vmem:[%s1] sm:$0x1]
  %v32 = vlaneseq
  %v33 = vshrl.u32 %v32, 7
  %v34 = vsub.s32 0, %v33
  %v35 = vrot.slane %v30, %v34
  %v37 = vmul.f32 %v29, %v35
  %v38 = vld [vmem:[%s2] sm:$0x1]
  %v40 = vlaneseq
  %v41 = vshrl.u32 %v40, 7
  %v42 = vsub.s32 0, %v41
  %v43 = vrot.slane %v38, %v42
  %v45 = vadd.f32 %v37, %v43
  %46 = vst.msk [vmem:[%s3] sm:$0xff] %vm15, %v45
  // Predicated region
  $region14: #{invnet_forward.17} parent=0 // pred_check
    _
  $region15: #{invnet_forward.17} parent=0 // pred_check_branch
    %48 = sbr.rel (0) target = $region17
  $region16: #{invnet_forward.17} parent=0 // pred_region
    _
  $region17: #{invnet_forward.17} parent=0 // pred_fallthru
    _
  // Predicated region
  $region18: #{invnet_forward.17} parent=0 // pred_check
    _
  $region19: #{invnet_forward.17} parent=0 // pred_check_branch
    %50 = sbr.rel (0) target = $region21
  $region20: #{invnet_forward.17} parent=0 // pred_region
    _
  $region21: #{invnet_forward.17} parent=0 // pred_fallthru
    _

// kernel: invnet_forward.18
$region0: #{invnet_forward.18}
  #allocation0 [shape = 'u32[]', space=smem, size = 0x4, offset = 0x4, fixed_abs, tag = 'smem constant byte address 0x4 - core index']
  #allocation1 [shape = 'u32[144,128]{1,0:T(1,128)}', space=vmem, size = 0x12000, scoped, tag = 'internal scratch']
  %s0 = inlined_call_operand.vmem [shape: bf16[8,64], index: 0, kind: input, shape index: {}]
  %s1 = inlined_call_operand.vmem [shape: bf16[64,16], index: 1, kind: input, shape index: {}]
  %s2 = inlined_call_operand.vmem [shape: f32[1,16], index: 2, kind: input, shape index: {}]
  %s3 = inlined_call_operand.vmem [shape: bf16[16,36], index: 3, kind: input, shape index: {}]
  %s4 = inlined_call_operand.vmem [shape: f32[1,36], index: 4, kind: input, shape index: {}]
  %s5 = inlined_call_operand.vmem [shape: f32[8,36], index: 5, kind: output, shape index: {}]
  %s6 = sld [smem:[#allocation0]]
  $region30: #{invnet_forward.18} parent=0
    _
  %s8 = ssub.s32 1, %s6
  %s9 = scalar_select 0, %s8, %s6
  // Predicated region
  $region2: #{invnet_forward.18} parent=0 // pred_check
    _
  $region3: #{invnet_forward.18} parent=0 // pred_check_branch
    %11 = sbr.rel (0) target = $region5
  $region4: #{invnet_forward.18} parent=0 // pred_region
    _
  $region5: #{invnet_forward.18} parent=0 // pred_fallthru
    _
  // Predicated region
  $region6: #{invnet_forward.18} parent=0 // pred_check
    _
  $region7: #{invnet_forward.18} parent=0 // pred_check_branch
    %13 = sbr.rel (0) target = $region9
  $region8: #{invnet_forward.18} parent=0 // pred_region
    _
  $region9: #{invnet_forward.18} parent=0 // pred_fallthru
    _
  // Predicated region
  $region10: #{invnet_forward.18} parent=0 // pred_check
    _
  $region11: #{invnet_forward.18} parent=0 // pred_check_branch
    %15 = sbr.rel (0) target = $region13
  $region12: #{invnet_forward.18} parent=0 // pred_region
    _
  $region13: #{invnet_forward.18} parent=0 // pred_fallthru
    _
  // Predicated region
  $region14: #{invnet_forward.18} parent=0 // pred_check
    _
  $region15: #{invnet_forward.18} parent=0 // pred_check_branch
    %17 = sbr.rel (0) target = $region17
  $region16: #{invnet_forward.18} parent=0 // pred_region
    _
  $region17: #{invnet_forward.18} parent=0 // pred_fallthru
    _
  // Predicated region
  $region18: #{invnet_forward.18} parent=0 // pred_check
    _
  $region19: #{invnet_forward.18} parent=0 // pred_check_branch
    %19 = sbr.rel (0) target = $region21
  $region20: #{invnet_forward.18} parent=0 // pred_region
    _
  $region21: #{invnet_forward.18} parent=0 // pred_fallthru
    _
  %v21 = vld [vmem:[%s0] sm:$0xf]
  %v22 = vld [vmem:[%s1] sm:$0xf]
  %v23 = vld [vmem:[%s1 + $0x4] sm:$0xf]
  %v24 = vld [vmem:[%s1 + $0x8] sm:$0xf]
  %v25 = vld [vmem:[%s1 + $0xc] sm:$0xf]
  %v26 = vld [vmem:[%s1 + $0x10] sm:$0xf]
  %v27 = vld [vmem:[%s1 + $0x14] sm:$0xf]
  %v28 = vld [vmem:[%s1 + $0x18] sm:$0xf]
  %v29 = vld [vmem:[%s1 + $0x1c] sm:$0xf]
  %v30 = vld [vmem:[%s2] sm:$0x1]
  %v32 = vlaneseq
  %v33 = vshrl.u32 %v32, 7
  %v34 = vsub.s32 0, %v33
  %v35 = vrot.slane %v30, %v34
  %v45 = vunpack.c.l.b16 %v22
  %v46 = vunpack.c.l.b16 %v23
  %v47 = vunpack.c.l.b16 %v24
  %v48 = vunpack.c.l.b16 %v25
  %v49 = vunpack.c.l.b16 %v26
  %v50 = vunpack.c.l.b16 %v27
  %v51 = vunpack.c.l.b16 %v28
  %v52 = vunpack.c.l.b16 %v29
  %v53 = vpack.c.b16 %v46, %v45
  %v54 = vpack.c.b16 %v48, %v47
  %v55 = vpack.c.b16 %v50, %v49
  %v56 = vpack.c.b16 %v52, %v51
  %vm61 = vcmask 523264
  %v63 = vsel %vm61, %v21, 0
  %65 = vmatprep.subr.bf16.mxu0 0
  %66 = vmatpush1.bf16.msra.mxu0 %v53
  %67 = vmatprep.subr.bf16.mxu0 0
  %68 = vmatpush1.bf16.msra.mxu0 %v54
  %69 = vmatprep.subr.bf16.mxu0 0
  %70 = vmatpush1.bf16.msra.mxu0 %v55
  %71 = vmatprep.subr.bf16.mxu0 0
  %72 = vmatpush1.bf16.msra.mxu0 %v56
  %73 = vmatprep.subr.bf16.mxu0 0
  %74 = vmatpush1.bf16.msra.mxu0 0
  %75 = vmatprep.subr.bf16.mxu0 0
  %76 = vmatpush1.bf16.msra.mxu0 0
  %77 = vmatprep.subr.bf16.mxu0 0
  %78 = vmatpush1.bf16.msra.mxu0 0
  %79 = vmatprep.subr.bf16.mxu0 0
  %80 = vmatpush1.bf16.msra.mxu0 0
  %81 = vmatprep.subr.bf16.mxu0 0
  %82 = vmatpush1.bf16.msra.mxu0 0
  %83 = vmatprep.subr.bf16.mxu0 0
  %84 = vmatpush1.bf16.msra.mxu0 0
  %85 = vmatprep.subr.bf16.mxu0 0
  %86 = vmatpush1.bf16.msra.mxu0 0
  %87 = vmatprep.subr.bf16.mxu0 0
  %88 = vmatpush1.bf16.msra.mxu0 0
  %89 = vmatprep.subr.bf16.mxu0 0
  %90 = vmatpush1.bf16.msra.mxu0 0
  %91 = vmatprep.subr.bf16.mxu0 0
  %92 = vmatpush1.bf16.msra.mxu0 0
  %93 = vmatprep.subr.bf16.mxu0 0
  %94 = vmatpush1.bf16.msra.mxu0 0
  %95 = vmatprep.subr.bf16.mxu0 0
  %96 = vmatpush1.bf16.msra.mxu0 0
  %97 = vmatprep.mubr.bf16.mxu0 0
  %98 = vmatmul.mubr.bf16.gmra.mrb[0].mxu0 %v63
  %v99 = vpop.f32.mrb[0].mxu0
  %v100 = vadd.f32 %v35, %v99
  %v101 = vpop.f32.mrb[0].mxu0
  %v102 = vpop.f32.mrb[0].mxu0
  %v103 = vpop.f32.mrb[0].mxu0
  %104 = vdwg.mxu0
  %v105 = vmax.f32 %v100, 0.0
  %v106 = vpack.c.bf16 %v105, %v105
  %v107 = vld [vmem:[%s3] sm:$0xf]
  %v108 = vld [vmem:[%s3 + $0x4] sm:$0xf]
  %v109 = vld [vmem:[%s4] sm:$0x1]
  %v111 = vlaneseq
  %v112 = vshrl.u32 %v111, 7
  %v113 = vsub.s32 0, %v112
  %v114 = vrot.slane %v109, %v113
  %v118 = vunpack.c.l.b16 %v107
  %v119 = vunpack.c.l.b16 %v108
  %v120 = vpack.c.b16 %v119, %v118
  %vm122 = vcmask 130048
  %v124 = vsel %vm122, %v106, 0
  %126 = vmatprep.subr.bf16.mxu0 0
  %127 = vmatpush1.bf16.msra.mxu0 %v120
  %128 = vmatprep.subr.bf16.mxu0 0
  %129 = vmatpush1.bf16.msra.mxu0 0
  %130 = vmatprep.subr.bf16.mxu0 0
  %131 = vmatpush1.bf16.msra.mxu0 0
  %132 = vmatprep.subr.bf16.mxu0 0
  %133 = vmatpush1.bf16.msra.mxu0 0
  %134 = vmatprep.subr.bf16.mxu0 0
  %135 = vmatpush1.bf16.msra.mxu0 0
  %136 = vmatprep.subr.bf16.mxu0 0
  %137 = vmatpush1.bf16.msra.mxu0 0
  %138 = vmatprep.subr.bf16.mxu0 0
  %139 = vmatpush1.bf16.msra.mxu0 0
  %140 = vmatprep.subr.bf16.mxu0 0
  %141 = vmatpush1.bf16.msra.mxu0 0
  %142 = vmatprep.subr.bf16.mxu0 0
  %143 = vmatpush1.bf16.msra.mxu0 0
  %144 = vmatprep.subr.bf16.mxu0 0
  %145 = vmatpush1.bf16.msra.mxu0 0
  %146 = vmatprep.subr.bf16.mxu0 0
  %147 = vmatpush1.bf16.msra.mxu0 0
  %148 = vmatprep.subr.bf16.mxu0 0
  %149 = vmatpush1.bf16.msra.mxu0 0
  %150 = vmatprep.subr.bf16.mxu0 0
  %151 = vmatpush1.bf16.msra.mxu0 0
  %152 = vmatprep.subr.bf16.mxu0 0
  %153 = vmatpush1.bf16.msra.mxu0 0
  %154 = vmatprep.subr.bf16.mxu0 0
  %155 = vmatpush1.bf16.msra.mxu0 0
  %156 = vmatprep.subr.bf16.mxu0 0
  %157 = vmatpush1.bf16.msra.mxu0 0
  %158 = vmatprep.mubr.bf16.mxu0 0
  %159 = vmatmul.mubr.bf16.gmra.mrb[0].mxu0 %v124
  %v160 = vpop.f32.mrb[0].mxu0
  %v161 = vadd.f32 %v114, %v160
  %v162 = vpop.f32.mrb[0].mxu0
  %v163 = vpop.f32.mrb[0].mxu0
  %v164 = vpop.f32.mrb[0].mxu0
  %165 = vdwg.mxu0
  %vm166 = vcmask 293888
  %167 = vst.msk [vmem:[%s5] sm:$0xff] %vm166, %v161
  // Predicated region
  $region22: #{invnet_forward.18} parent=0 // pred_check
    _
  $region23: #{invnet_forward.18} parent=0 // pred_check_branch
    %169 = sbr.rel (0) target = $region25
  $region24: #{invnet_forward.18} parent=0 // pred_region
    _
  $region25: #{invnet_forward.18} parent=0 // pred_fallthru
    _
  // Predicated region
  $region26: #{invnet_forward.18} parent=0 // pred_check
    _
  $region27: #{invnet_forward.18} parent=0 // pred_check_branch
    %171 = sbr.rel (0) target = $region29
  $region28: #{invnet_forward.18} parent=0 // pred_region
    _
  $region29: #{invnet_forward.18} parent=0 // pred_fallthru
    _

// kernel: invnet_forward.20
$region0: #{invnet_forward.20}
  #allocation0 [shape = 'u32[]', space=smem, size = 0x4, offset = 0x4, fixed_abs, tag = 'smem constant byte address 0x4 - core index']
  #allocation1 [shape = 'u32[144,128]{1,0:T(1,128)}', space=vmem, size = 0x12000, scoped, tag = 'internal scratch']
  %s0 = inlined_call_operand.vmem [shape: f32[8,64], index: 0, kind: input, shape index: {}]
  %s1 = inlined_call_operand.vmem [shape: f32[8,64], index: 1, kind: input, shape index: {}]
  %s2 = inlined_call_operand.vmem [shape: f32[1,64], index: 2, kind: input, shape index: {}]
  %s3 = inlined_call_operand.vmem [shape: f32[1,64], index: 3, kind: input, shape index: {}]
  %s4 = inlined_call_operand.vmem [shape: bf16[64,256], index: 4, kind: input, shape index: {}]
  %s5 = inlined_call_operand.vmem [shape: f32[1,256], index: 5, kind: input, shape index: {}]
  %s6 = inlined_call_operand.vmem [shape: bf16[256,64], index: 6, kind: input, shape index: {}]
  %s7 = inlined_call_operand.vmem [shape: f32[1,64], index: 7, kind: input, shape index: {}]
  %s8 = inlined_call_operand.vmem [shape: f32[1,64], index: 8, kind: input, shape index: {}]
  %s9 = inlined_call_operand.vmem [shape: f32[1,64], index: 9, kind: input, shape index: {}]
  %s10 = inlined_call_operand.vmem [shape: f32[8,64], index: 10, kind: output, shape index: {}]
  %s11 = sld [smem:[#allocation0]]
  $region50: #{invnet_forward.20} parent=0
    _
  %s13 = ssub.s32 1, %s11
  %s14 = scalar_select 0, %s13, %s11
  // Predicated region
  $region2: #{invnet_forward.20} parent=0 // pred_check
    _
  $region3: #{invnet_forward.20} parent=0 // pred_check_branch
    %16 = sbr.rel (0) target = $region5
  $region4: #{invnet_forward.20} parent=0 // pred_region
    _
  $region5: #{invnet_forward.20} parent=0 // pred_fallthru
    _
  // Predicated region
  $region6: #{invnet_forward.20} parent=0 // pred_check
    _
  $region7: #{invnet_forward.20} parent=0 // pred_check_branch
    %18 = sbr.rel (0) target = $region9
  $region8: #{invnet_forward.20} parent=0 // pred_region
    _
  $region9: #{invnet_forward.20} parent=0 // pred_fallthru
    _
  // Predicated region
  $region10: #{invnet_forward.20} parent=0 // pred_check
    _
  $region11: #{invnet_forward.20} parent=0 // pred_check_branch
    %20 = sbr.rel (0) target = $region13
  $region12: #{invnet_forward.20} parent=0 // pred_region
    _
  $region13: #{invnet_forward.20} parent=0 // pred_fallthru
    _
  // Predicated region
  $region14: #{invnet_forward.20} parent=0 // pred_check
    _
  $region15: #{invnet_forward.20} parent=0 // pred_check_branch
    %22 = sbr.rel (0) target = $region17
  $region16: #{invnet_forward.20} parent=0 // pred_region
    _
  $region17: #{invnet_forward.20} parent=0 // pred_fallthru
    _
  // Predicated region
  $region18: #{invnet_forward.20} parent=0 // pred_check
    _
  $region19: #{invnet_forward.20} parent=0 // pred_check_branch
    %24 = sbr.rel (0) target = $region21
  $region20: #{invnet_forward.20} parent=0 // pred_region
    _
  $region21: #{invnet_forward.20} parent=0 // pred_fallthru
    _
  // Predicated region
  $region22: #{invnet_forward.20} parent=0 // pred_check
    _
  $region23: #{invnet_forward.20} parent=0 // pred_check_branch
    %26 = sbr.rel (0) target = $region25
  $region24: #{invnet_forward.20} parent=0 // pred_region
    _
  $region25: #{invnet_forward.20} parent=0 // pred_fallthru
    _
  // Predicated region
  $region26: #{invnet_forward.20} parent=0 // pred_check
    _
  $region27: #{invnet_forward.20} parent=0 // pred_check_branch
    %28 = sbr.rel (0) target = $region29
  $region28: #{invnet_forward.20} parent=0 // pred_region
    _
  $region29: #{invnet_forward.20} parent=0 // pred_fallthru
    _
  // Predicated region
  $region30: #{invnet_forward.20} parent=0 // pred_check
    _
  $region31: #{invnet_forward.20} parent=0 // pred_check_branch
    %30 = sbr.rel (0) target = $region33
  $region32: #{invnet_forward.20} parent=0 // pred_region
    _
  $region33: #{invnet_forward.20} parent=0 // pred_fallthru
    _
  // Predicated region
  $region34: #{invnet_forward.20} parent=0 // pred_check
    _
  $region35: #{invnet_forward.20} parent=0 // pred_check_branch
    %32 = sbr.rel (0) target = $region37
  $region36: #{invnet_forward.20} parent=0 // pred_region
    _
  $region37: #{invnet_forward.20} parent=0 // pred_fallthru
    _
  // Predicated region
  $region38: #{invnet_forward.20} parent=0 // pred_check
    _
  $region39: #{invnet_forward.20} parent=0 // pred_check_branch
    %34 = sbr.rel (0) target = $region41
  $region40: #{invnet_forward.20} parent=0 // pred_region
    _
  $region41: #{invnet_forward.20} parent=0 // pred_fallthru
    _
  %v36 = vld [vmem:[%s0] sm:$0xff]
  %vm37 = vcmask 523264
  %v38 = vsel %vm37, %v36, 0.0
  %39 = vadd.xlane.f32.xlu0 %v38
  %v40 = vpop.xlane.xlu0 %39
  %v41 = vrcp.pop 64.0
  %v42 = vmul.f32 %v40, %v41
  %v43 = vsub.f32 %v36, %v42
  %v44 = vmul.f32 %v43, %v43
  %v45 = vsel %vm37, %v44, 0.0
  %46 = vadd.xlane.f32.xlu0 %v45
  %v47 = vpop.xlane.xlu0 %46
  %v48 = vmul.f32 %v47, %v41
  %v49 = vadd.f32 %v48, 1e-06
  %v50 = vrsqrt.pop %v49
  %v51 = vmul.f32 %v43, %v50
  %v52 = vld [vmem:[%s2] sm:$0x1]
  %v54 = vlaneseq
  %v55 = vshrl.u32 %v54, 7
  %v56 = vsub.s32 0, %v55
  %v57 = vrot.slane %v52, %v56
  %v59 = vmul.f32 %v51, %v57
  %v60 = vld [vmem:[%s3] sm:$0x1]
  %v62 = vlaneseq
  %v63 = vshrl.u32 %v62, 7
  %v64 = vsub.s32 0, %v63
  %v65 = vrot.slane %v60, %v64
  %v67 = vadd.f32 %v59, %v65
  %v68 = vpack.c.bf16 %v67, %v67
  %v69 = vld [vmem:[%s4] sm:$0xff]
  %v70 = vld [vmem:[%s4 + $0x8] sm:$0xff]
  %v71 = vld [vmem:[%s4 + $0x10] sm:$0xff]
  %v72 = vld [vmem:[%s4 + $0x18] sm:$0xff]
  %v73 = vld [vmem:[%s4 + $0x20] sm:$0xff]
  %v74 = vld [vmem:[%s4 + $0x28] sm:$0xff]
  %v75 = vld [vmem:[%s4 + $0x30] sm:$0xff]
  %v76 = vld [vmem:[%s4 + $0x38] sm:$0xff]
  %v77 = vld [vmem:[%s5] sm:$0x3]
  %v79 = vlaneseq
  %v80 = vshrl.u32 %v79, 7
  %v81 = vsub.s32 0, %v80
  %v82 = vrot.slane %v77, %v81
  %v83 = vlaneseq
  %v84 = vshrl.u32 %v83, 7
  %v85 = vsub.s32 1, %v84
  %v86 = vrot.slane %v77, %v85
  %v97 = vunpack.c.l.b16 %v69
  %v98 = vunpack.c.h.b16 %v69
  %v99 = vunpack.c.l.b16 %v70
  %v100 = vunpack.c.h.b16 %v70
  %v101 = vunpack.c.l.b16 %v71
  %v102 = vunpack.c.h.b16 %v71
  %v103 = vunpack.c.l.b16 %v72
  %v104 = vunpack.c.h.b16 %v72
  %v105 = vunpack.c.l.b16 %v73
  %v106 = vunpack.c.h.b16 %v73
  %v107 = vunpack.c.l.b16 %v74
  %v108 = vunpack.c.h.b16 %v74
  %v109 = vunpack.c.l.b16 %v75
  %v110 = vunpack.c.h.b16 %v75
  %v111 = vunpack.c.l.b16 %v76
  %v112 = vunpack.c.h.b16 %v76
  %v113 = vpack.c.b16 %v99, %v97
  %v114 = vpack.c.b16 %v100, %v98
  %v115 = vpack.c.b16 %v103, %v101
  %v116 = vpack.c.b16 %v104, %v102
  %v117 = vpack.c.b16 %v107, %v105
  %v118 = vpack.c.b16 %v108, %v106
  %v119 = vpack.c.b16 %v111, %v109
  %v120 = vpack.c.b16 %v112, %v110
  %v130 = vsel %vm37, %v68, 0
  %132 = vmatprep.subr.bf16.mxu0 %v114
  %133 = vmatpush1.bf16.msra.mxu0 %v113
  %134 = vmatprep.subr.bf16.mxu0 %v116
  %135 = vmatpush1.bf16.msra.mxu0 %v115
  %136 = vmatprep.subr.bf16.mxu0 %v118
  %137 = vmatpush1.bf16.msra.mxu0 %v117
  %138 = vmatprep.subr.bf16.mxu0 %v120
  %139 = vmatpush1.bf16.msra.mxu0 %v119
  %140 = vmatprep.subr.bf16.mxu0 0
  %141 = vmatpush1.bf16.msra.mxu0 0
  %142 = vmatprep.subr.bf16.mxu0 0
  %143 = vmatpush1.bf16.msra.mxu0 0
  %144 = vmatprep.subr.bf16.mxu0 0
  %145 = vmatpush1.bf16.msra.mxu0 0
  %146 = vmatprep.subr.bf16.mxu0 0
  %147 = vmatpush1.bf16.msra.mxu0 0
  %148 = vmatprep.subr.bf16.mxu0 0
  %149 = vmatpush1.bf16.msra.mxu0 0
  %150 = vmatprep.subr.bf16.mxu0 0
  %151 = vmatpush1.bf16.msra.mxu0 0
  %152 = vmatprep.subr.bf16.mxu0 0
  %153 = vmatpush1.bf16.msra.mxu0 0
  %154 = vmatprep.subr.bf16.mxu0 0
  %155 = vmatpush1.bf16.msra.mxu0 0
  %156 = vmatprep.subr.bf16.mxu0 0
  %157 = vmatpush1.bf16.msra.mxu0 0
  %158 = vmatprep.subr.bf16.mxu0 0
  %159 = vmatpush1.bf16.msra.mxu0 0
  %160 = vmatprep.subr.bf16.mxu0 0
  %161 = vmatpush1.bf16.msra.mxu0 0
  %162 = vmatprep.subr.bf16.mxu0 0
  %163 = vmatpush1.bf16.msra.mxu0 0
  %164 = vmatprep.mubr.bf16.mxu0 0
  %165 = vmatmul.mubr.bf16.gmra.mrb[0].mxu0 %v130
  %v166 = vpop.f32.mrb[0].mxu0
  %v167 = vadd.f32 %v82, %v166
  %v168 = vpop.f32.mrb[0].mxu0
  %v169 = vadd.f32 %v86, %v168
  %v170 = vpop.f32.mrb[0].mxu0
  %v171 = vpop.f32.mrb[0].mxu0
  %172 = vdwg.mxu0
  %v173 = vmul.f32 %v167, 0.5
  %v174 = vmul.f32 %v169, 0.5
  %v175 = vmul.f32 %v167, 0.044715
  %v176 = vmul.f32 %v169, 0.044715
  %v177 = vmul.f32 %v175, %v167
  %v178 = vmul.f32 %v176, %v169
  %v179 = vmul.f32 %v177, %v167
  %v180 = vmul.f32 %v178, %v169
  %v181 = vadd.f32 %v167, %v179
  %v182 = vadd.f32 %v169, %v180
  %v183 = vmul.f32 %v181, 0.7978846
  %v184 = vmul.f32 %v182, 0.7978846
  %v185 = vtanh.pop %v183
  %v186 = vtanh.pop %v184
  %v187 = vadd.f32 %v185, 1.0
  %v188 = vadd.f32 %v186, 1.0
  %v189 = vmul.f32 %v173, %v187
  %v190 = vmul.f32 %v174, %v188
  %v191 = vpack.c.bf16 %v189, %v189
  %v192 = vpack.c.bf16 %v190, %v190
  %v193 = vld [vmem:[%s6] sm:$0xf]
  %v194 = vld [vmem:[%s6 + $0x4] sm:$0xf]
  %v195 = vld [vmem:[%s6 + $0x8] sm:$0xf]
  %v196 = vld [vmem:[%s6 + $0xc] sm:$0xf]
  %v197 = vld [vmem:[%s6 + $0x10] sm:$0xf]
  %v198 = vld [vmem:[%s6 + $0x14] sm:$0xf]
  %v199 = vld [vmem:[%s6 + $0x18] sm:$0xf]
  %v200 = vld [vmem:[%s6 + $0x1c] sm:$0xf]
  %v201 = vld [vmem:[%s6 + $0x20] sm:$0xf]
  %v202 = vld [vmem:[%s6 + $0x24] sm:$0xf]
  %v203 = vld [vmem:[%s6 + $0x28] sm:$0xf]
  %v204 = vld [vmem:[%s6 + $0x2c] sm:$0xf]
  %v205 = vld [vmem:[%s6 + $0x30] sm:$0xf]
  %v206 = vld [vmem:[%s6 + $0x34] sm:$0xf]
  %v207 = vld [vmem:[%s6 + $0x38] sm:$0xf]
  %v208 = vld [vmem:[%s6 + $0x3c] sm:$0xf]
  %v209 = vld [vmem:[%s6 + $0x40] sm:$0xf]
  %v210 = vld [vmem:[%s6 + $0x44] sm:$0xf]
  %v211 = vld [vmem:[%s6 + $0x48] sm:$0xf]
  %v212 = vld [vmem:[%s6 + $0x4c] sm:$0xf]
  %v213 = vld [vmem:[%s6 + $0x50] sm:$0xf]
  %v214 = vld [vmem:[%s6 + $0x54] sm:$0xf]
  %v215 = vld [vmem:[%s6 + $0x58] sm:$0xf]
  %v216 = vld [vmem:[%s6 + $0x5c] sm:$0xf]
  %v217 = vld [vmem:[%s6 + $0x60] sm:$0xf]
  %v218 = vld [vmem:[%s6 + $0x64] sm:$0xf]
  %v219 = vld [vmem:[%s6 + $0x68] sm:$0xf]
  %v220 = vld [vmem:[%s6 + $0x6c] sm:$0xf]
  %v221 = vld [vmem:[%s6 + $0x70] sm:$0xf]
  %v222 = vld [vmem:[%s6 + $0x74] sm:$0xf]
  %v223 = vld [vmem:[%s6 + $0x78] sm:$0xf]
  %v224 = vld [vmem:[%s6 + $0x7c] sm:$0xf]
  %v225 = vld [vmem:[%s7] sm:$0x1]
  %v227 = vlaneseq
  %v228 = vshrl.u32 %v227, 7
  %v229 = vsub.s32 0, %v228
  %v230 = vrot.slane %v225, %v229
  %v264 = vunpack.c.l.b16 %v193
  %v265 = vunpack.c.l.b16 %v194
  %v266 = vunpack.c.l.b16 %v195
  %v267 = vunpack.c.l.b16 %v196
  %v268 = vunpack.c.l.b16 %v197
  %v269 = vunpack.c.l.b16 %v198
  %v270 = vunpack.c.l.b16 %v199
  %v271 = vunpack.c.l.b16 %v200
  %v272 = vunpack.c.l.b16 %v201
  %v273 = vunpack.c.l.b16 %v202
  %v274 = vunpack.c.l.b16 %v203
  %v275 = vunpack.c.l.b16 %v204
  %v276 = vunpack.c.l.b16 %v205
  %v277 = vunpack.c.l.b16 %v206
  %v278 = vunpack.c.l.b16 %v207
  %v279 = vunpack.c.l.b16 %v208
  %v280 = vunpack.c.l.b16 %v209
  %v281 = vunpack.c.l.b16 %v210
  %v282 = vunpack.c.l.b16 %v211
  %v283 = vunpack.c.l.b16 %v212
  %v284 = vunpack.c.l.b16 %v213
  %v285 = vunpack.c.l.b16 %v214
  %v286 = vunpack.c.l.b16 %v215
  %v287 = vunpack.c.l.b16 %v216
  %v288 = vunpack.c.l.b16 %v217
  %v289 = vunpack.c.l.b16 %v218
  %v290 = vunpack.c.l.b16 %v219
  %v291 = vunpack.c.l.b16 %v220
  %v292 = vunpack.c.l.b16 %v221
  %v293 = vunpack.c.l.b16 %v222
  %v294 = vunpack.c.l.b16 %v223
  %v295 = vunpack.c.l.b16 %v224
  %v296 = vpack.c.b16 %v265, %v264
  %v297 = vpack.c.b16 %v267, %v266
  %v298 = vpack.c.b16 %v269, %v268
  %v299 = vpack.c.b16 %v271, %v270
  %v300 = vpack.c.b16 %v273, %v272
  %v301 = vpack.c.b16 %v275, %v274
  %v302 = vpack.c.b16 %v277, %v276
  %v303 = vpack.c.b16 %v279, %v278
  %v304 = vpack.c.b16 %v281, %v280
  %v305 = vpack.c.b16 %v283, %v282
  %v306 = vpack.c.b16 %v285, %v284
  %v307 = vpack.c.b16 %v287, %v286
  %v308 = vpack.c.b16 %v289, %v288
  %v309 = vpack.c.b16 %v291, %v290
  %v310 = vpack.c.b16 %v293, %v292
  %v311 = vpack.c.b16 %v295, %v294
  %328 = vmatprep.subr.bf16.mxu0 0
  %329 = vmatpush1.bf16.msra.mxu0 %v296
  %330 = vmatprep.subr.bf16.mxu0 0
  %331 = vmatpush1.bf16.msra.mxu0 %v297
  %332 = vmatprep.subr.bf16.mxu0 0
  %333 = vmatpush1.bf16.msra.mxu0 %v298
  %334 = vmatprep.subr.bf16.mxu0 0
  %335 = vmatpush1.bf16.msra.mxu0 %v299
  %336 = vmatprep.subr.bf16.mxu0 0
  %337 = vmatpush1.bf16.msra.mxu0 %v300
  %338 = vmatprep.subr.bf16.mxu0 0
  %339 = vmatpush1.bf16.msra.mxu0 %v301
  %340 = vmatprep.subr.bf16.mxu0 0
  %341 = vmatpush1.bf16.msra.mxu0 %v302
  %342 = vmatprep.subr.bf16.mxu0 0
  %343 = vmatpush1.bf16.msra.mxu0 %v303
  %344 = vmatprep.subr.bf16.mxu0 0
  %345 = vmatpush1.bf16.msra.mxu0 %v304
  %346 = vmatprep.subr.bf16.mxu0 0
  %347 = vmatpush1.bf16.msra.mxu0 %v305
  %348 = vmatprep.subr.bf16.mxu0 0
  %349 = vmatpush1.bf16.msra.mxu0 %v306
  %350 = vmatprep.subr.bf16.mxu0 0
  %351 = vmatpush1.bf16.msra.mxu0 %v307
  %352 = vmatprep.subr.bf16.mxu0 0
  %353 = vmatpush1.bf16.msra.mxu0 %v308
  %354 = vmatprep.subr.bf16.mxu0 0
  %355 = vmatpush1.bf16.msra.mxu0 %v309
  %356 = vmatprep.subr.bf16.mxu0 0
  %357 = vmatpush1.bf16.msra.mxu0 %v310
  %358 = vmatprep.subr.bf16.mxu0 0
  %359 = vmatpush1.bf16.msra.mxu0 %v311
  %360 = vmatprep.mubr.bf16.mxu0 %v192
  %361 = vmatmul.mubr.bf16.gmra.mrb[0].mxu0 %v191
  %v362 = vpop.f32.mrb[0].mxu0
  %v363 = vadd.f32 %v230, %v362
  %v364 = vpop.f32.mrb[0].mxu0
  %v365 = vpop.f32.mrb[0].mxu0
  %v366 = vpop.f32.mrb[0].mxu0
  %367 = vdwg.mxu0
  %v368 = vld [vmem:[%s1] sm:$0xff]
  %v369 = vadd.f32 %v363, %v368
  %v370 = vsel %vm37, %v369, 0.0
  %371 = vadd.xlane.f32.xlu0 %v370
  %v372 = vpop.xlane.xlu0 %371
  %v373 = vmul.f32 %v372, %v41
  %v374 = vsub.f32 %v369, %v373
  %v375 = vmul.f32 %v374, %v374
  %v376 = vsel %vm37, %v375, 0.0
  %377 = vadd.xlane.f32.xlu0 %v376
  %v378 = vpop.xlane.xlu0 %377
  %v379 = vmul.f32 %v378, %v41
  %v380 = vadd.f32 %v379, 1e-06
  %v381 = vrsqrt.pop %v380
  %v382 = vmul.f32 %v374, %v381
  %v383 = vld [vmem:[%s8] sm:$0x1]
  %v385 = vlaneseq
  %v386 = vshrl.u32 %v385, 7
  %v387 = vsub.s32 0, %v386
  %v388 = vrot.slane %v383, %v387
  %v390 = vmul.f32 %v382, %v388
  %v391 = vld [vmem:[%s9] sm:$0x1]
  %v393 = vlaneseq
  %v394 = vshrl.u32 %v393, 7
  %v395 = vsub.s32 0, %v394
  %v396 = vrot.slane %v391, %v395
  %v398 = vadd.f32 %v390, %v396
  %399 = vst.msk [vmem:[%s10] sm:$0xff] %vm37, %v398
  // Predicated region
  $region42: #{invnet_forward.20} parent=0 // pred_check
    _
  $region43: #{invnet_forward.20} parent=0 // pred_check_branch
    %401 = sbr.rel (0) target = $region45
  $region44: #{invnet_forward.20} parent=0 // pred_region
    _
  $region45: #{invnet_forward.20} parent=0 // pred_fallthru
    _
  // Predicated region
  $region46: #{invnet_forward.20} parent=0 // pred_check
    _
  $region47: #{invnet_forward.20} parent=0 // pred_check_branch
    %403 = sbr.rel (0) target = $region49
  $region48: #{invnet_forward.20} parent=0 // pred_region
    _
  $region49: #{invnet_forward.20} parent=0 // pred_fallthru
    _

// kernel: invnet_forward.21
$region0: #{invnet_forward.21}
  #allocation0 [shape = 'u32[]', space=smem, size = 0x4, offset = 0x4, fixed_abs, tag = 'smem constant byte address 0x4 - core index']
  #allocation1 [shape = 'u32[144,128]{1,0:T(1,128)}', space=vmem, size = 0x12000, scoped, tag = 'internal scratch']
  %s0 = inlined_call_operand.vmem [shape: bf16[8,64], index: 0, kind: input, shape index: {}]
  %s1 = inlined_call_operand.vmem [shape: bf16[64,2], index: 1, kind: input, shape index: {}]
  %s2 = inlined_call_operand.vmem [shape: f32[1,2], index: 2, kind: input, shape index: {}]
  %s3 = inlined_call_operand.vmem [shape: f32[8,2], index: 3, kind: output, shape index: {}]
  %s4 = sld [smem:[#allocation0]]
  $region22: #{invnet_forward.21} parent=0
    _
  %s6 = ssub.s32 1, %s4
  %s7 = scalar_select 0, %s6, %s4
  // Predicated region
  $region2: #{invnet_forward.21} parent=0 // pred_check
    _
  $region3: #{invnet_forward.21} parent=0 // pred_check_branch
    %9 = sbr.rel (0) target = $region5
  $region4: #{invnet_forward.21} parent=0 // pred_region
    _
  $region5: #{invnet_forward.21} parent=0 // pred_fallthru
    _
  // Predicated region
  $region6: #{invnet_forward.21} parent=0 // pred_check
    _
  $region7: #{invnet_forward.21} parent=0 // pred_check_branch
    %11 = sbr.rel (0) target = $region9
  $region8: #{invnet_forward.21} parent=0 // pred_region
    _
  $region9: #{invnet_forward.21} parent=0 // pred_fallthru
    _
  // Predicated region
  $region10: #{invnet_forward.21} parent=0 // pred_check
    _
  $region11: #{invnet_forward.21} parent=0 // pred_check_branch
    %13 = sbr.rel (0) target = $region13
  $region12: #{invnet_forward.21} parent=0 // pred_region
    _
  $region13: #{invnet_forward.21} parent=0 // pred_fallthru
    _
  %v15 = vld [vmem:[%s0] sm:$0xf]
  %v16 = vld [vmem:[%s1] sm:$0xf]
  %v17 = vld [vmem:[%s1 + $0x4] sm:$0xf]
  %v18 = vld [vmem:[%s1 + $0x8] sm:$0xf]
  %v19 = vld [vmem:[%s1 + $0xc] sm:$0xf]
  %v20 = vld [vmem:[%s1 + $0x10] sm:$0xf]
  %v21 = vld [vmem:[%s1 + $0x14] sm:$0xf]
  %v22 = vld [vmem:[%s1 + $0x18] sm:$0xf]
  %v23 = vld [vmem:[%s1 + $0x1c] sm:$0xf]
  %v24 = vld [vmem:[%s2] sm:$0x1]
  %v26 = vlaneseq
  %v27 = vshrl.u32 %v26, 7
  %v28 = vsub.s32 0, %v27
  %v29 = vrot.slane %v24, %v28
  %v39 = vunpack.c.l.b16 %v16
  %v40 = vunpack.c.l.b16 %v17
  %v41 = vunpack.c.l.b16 %v18
  %v42 = vunpack.c.l.b16 %v19
  %v43 = vunpack.c.l.b16 %v20
  %v44 = vunpack.c.l.b16 %v21
  %v45 = vunpack.c.l.b16 %v22
  %v46 = vunpack.c.l.b16 %v23
  %v47 = vpack.c.b16 %v40, %v39
  %v48 = vpack.c.b16 %v42, %v41
  %v49 = vpack.c.b16 %v44, %v43
  %v50 = vpack.c.b16 %v46, %v45
  %vm55 = vcmask 523264
  %v57 = vsel %vm55, %v15, 0
  %59 = vmatprep.subr.bf16.mxu0 0
  %60 = vmatpush1.bf16.msra.mxu0 %v47
  %61 = vmatprep.subr.bf16.mxu0 0
  %62 = vmatpush1.bf16.msra.mxu0 %v48
  %63 = vmatprep.subr.bf16.mxu0 0
  %64 = vmatpush1.bf16.msra.mxu0 %v49
  %65 = vmatprep.subr.bf16.mxu0 0
  %66 = vmatpush1.bf16.msra.mxu0 %v50
  %67 = vmatprep.subr.bf16.mxu0 0
  %68 = vmatpush1.bf16.msra.mxu0 0
  %69 = vmatprep.subr.bf16.mxu0 0
  %70 = vmatpush1.bf16.msra.mxu0 0
  %71 = vmatprep.subr.bf16.mxu0 0
  %72 = vmatpush1.bf16.msra.mxu0 0
  %73 = vmatprep.subr.bf16.mxu0 0
  %74 = vmatpush1.bf16.msra.mxu0 0
  %75 = vmatprep.subr.bf16.mxu0 0
  %76 = vmatpush1.bf16.msra.mxu0 0
  %77 = vmatprep.subr.bf16.mxu0 0
  %78 = vmatpush1.bf16.msra.mxu0 0
  %79 = vmatprep.subr.bf16.mxu0 0
  %80 = vmatpush1.bf16.msra.mxu0 0
  %81 = vmatprep.subr.bf16.mxu0 0
  %82 = vmatpush1.bf16.msra.mxu0 0
  %83 = vmatprep.subr.bf16.mxu0 0
  %84 = vmatpush1.bf16.msra.mxu0 0
  %85 = vmatprep.subr.bf16.mxu0 0
  %86 = vmatpush1.bf16.msra.mxu0 0
  %87 = vmatprep.subr.bf16.mxu0 0
  %88 = vmatpush1.bf16.msra.mxu0 0
  %89 = vmatprep.subr.bf16.mxu0 0
  %90 = vmatpush1.bf16.msra.mxu0 0
  %91 = vmatprep.mubr.bf16.mxu0 0
  %92 = vmatmul.mubr.bf16.gmra.mrb[0].mxu0 %v57
  %v93 = vpop.f32.mrb[0].mxu0
  %v94 = vadd.f32 %v29, %v93
  %v95 = vpop.f32.mrb[0].mxu0
  %v96 = vpop.f32.mrb[0].mxu0
  %v97 = vpop.f32.mrb[0].mxu0
  %98 = vdwg.mxu0
  %vm99 = vcmask 15360
  %100 = vst.msk [vmem:[%s3] sm:$0xff] %vm99, %v94
  // Predicated region
  $region14: #{invnet_forward.21} parent=0 // pred_check
    _
  $region15: #{invnet_forward.21} parent=0 // pred_check_branch
    %102 = sbr.rel (0) target = $region17
  $region16: #{invnet_forward.21} parent=0 // pred_region
    _
  $region17: #{invnet_forward.21} parent=0 // pred_fallthru
    _
  // Predicated region
  $region18: #{invnet_forward.21} parent=0 // pred_check
    _
  $region19: #{invnet_forward.21} parent=0 // pred_check_branch
    %104 = sbr.rel (0) target = $region21
  $region20: #{invnet_forward.21} parent=0 // pred_region
    _
  $region21: #{invnet_forward.21} parent=0 // pred_fallthru
    _

// kernel: invnet_forward.19
$region0: #{invnet_forward.19}
  #allocation0 [shape = 'u32[]', space=smem, size = 0x4, offset = 0x4, fixed_abs, tag = 'smem constant byte address 0x4 - core index']
  #allocation1 [shape = 'u32[144,128]{1,0:T(1,128)}', space=vmem, size = 0x12000, scoped, tag = 'internal scratch']
  %s0 = inlined_call_operand.vmem [shape: f32[8,16,4,4], index: 0, kind: input, shape index: {}]
  %s1 = inlined_call_operand.vmem [shape: f32[8,9,2,2], index: 1, kind: input, shape index: {}]
  %s2 = inlined_call_operand.vmem [shape: f32[8,16,2,2], index: 2, kind: output, shape index: {}]
  %s3 = sld [smem:[#allocation0]]
  $region41: #{invnet_forward.19} parent=0
    _
  %s5 = ssub.s32 1, %s3
  %s6 = scalar_select 0, %s5, %s3
  loop: start=0, step=1, limit=10
  $region2: #{invnet_forward.19} parent=0 // loop_pre_header
    _
  $region3: #{invnet_forward.19} parent=0 // loop_header
    %s8 = sphi 0, %s12
    %p9 = scmp.ge.s32.totalorder %s8, 10
    %s18 = sphi 0, %s20
    %s21 = sphi 0, %s18
    %s22 = sphi 0, %s21
    %s38 = sphi 0, %s22
    %s44 = sphi 0, %s46
    %s47 = sphi 0, %s44
    %s48 = sphi 0, %s47
    %s64 = sphi 0, %s48
    %s70 = sphi 0, %s72
    %s73 = sphi 0, %s70
    %s74 = sphi 0, %s73
    %s90 = sphi 0, %s74
  $region4: #{invnet_forward.19} parent=0 // loop_header_branch
    %11 = sbr.rel (%p9) target = $region8
  $region5: #{invnet_forward.19} parent=0 // loop_body
    %s13 = ssub.s32 %s8, 1
    %s14 = ssub.s32 %s8, 2
    %s15 = sadd.s32 %s8, 1
    %s16 = ssub.s32 %s8, %s15
    %p17 = scmp.eq.s32.totalorder %s16, 0
    %s19 = sadd.s32 %s18, 1
    %s20 = scalar_select %p17, %s18, %s19
    %p23 = pneg %p17
    %p24 = scmp.eq.s32.totalorder %s8, 7
    %p25 = por %p23, %p24
    %p26 = scmp.ne.s32.totalorder %s18, %s21
    %p27 = scmp.eq.s32.totalorder %s8, 0
    %p28 = por %p26, %p27
    %p29 = scmp.ne.s32.totalorder %s18, %s21
    %p30 = scmp.eq.s32.totalorder %s13, 7
    %p31 = por %p29, %p30
    %p32 = scmp.ne.s32.totalorder %s21, %s22
    %p33 = scmp.eq.s32.totalorder %s13, 0
    %p34 = por %p32, %p33
    %p35 = scmp.ne.s32.totalorder %s21, %s22
    %p36 = scmp.eq.s32.totalorder %s14, 7
    %p37 = por %p35, %p36
    %p39 = scmp.ne.s32.totalorder %s22, %s38
    %p40 = scmp.eq.s32.totalorder %s14, 0
    %p41 = por %p39, %p40
    %s42 = ssub.s32 %s8, %s15
    %p43 = scmp.eq.s32.totalorder %s42, 0
    %s45 = sadd.s32 %s44, 1
    %s46 = scalar_select %p43, %s44, %s45
    %p49 = pneg %p43
    %p50 = scmp.eq.s32.totalorder %s8, 7
    %p51 = por %p49, %p50
    %p52 = scmp.ne.s32.totalorder %s44, %s47
    %p53 = scmp.eq.s32.totalorder %s8, 0
    %p54 = por %p52, %p53
    %p55 = scmp.ne.s32.totalorder %s44, %s47
    %p56 = scmp.eq.s32.totalorder %s13, 7
    %p57 = por %p55, %p56
    %p58 = scmp.ne.s32.totalorder %s47, %s48
    %p59 = scmp.eq.s32.totalorder %s13, 0
    %p60 = por %p58, %p59
    %p61 = scmp.ne.s32.totalorder %s47, %s48
    %p62 = scmp.eq.s32.totalorder %s14, 7
    %p63 = por %p61, %p62
    %p65 = scmp.ne.s32.totalorder %s48, %s64
    %p66 = scmp.eq.s32.totalorder %s14, 0
    %p67 = por %p65, %p66
    %s68 = ssub.s32 %s8, %s15
    %p69 = scmp.eq.s32.totalorder %s68, 0
    %s71 = sadd.s32 %s70, 1
    %s72 = scalar_select %p69, %s70, %s71
    %p75 = pneg %p69
    %p76 = scmp.eq.s32.totalorder %s8, 7
    %p77 = por %p75, %p76
    %p78 = scmp.ne.s32.totalorder %s70, %s73
    %p79 = scmp.eq.s32.totalorder %s8, 0
    %p80 = por %p78, %p79
    %p81 = scmp.ne.s32.totalorder %s70, %s73
    %p82 = scmp.eq.s32.totalorder %s13, 7
    %p83 = por %p81, %p82
    %p84 = scmp.ne.s32.totalorder %s73, %s74
    %p85 = scmp.eq.s32.totalorder %s13, 0
    %p86 = por %p84, %p85
    %p87 = scmp.ne.s32.totalorder %s73, %s74
    %p88 = scmp.eq.s32.totalorder %s14, 7
    %p89 = por %p87, %p88
    %p91 = scmp.ne.s32.totalorder %s74, %s90
    %p92 = scmp.eq.s32.totalorder %s14, 0
    %p93 = por %p91, %p92
    %p94 = scmp.le.s32.totalorder 1, %s8
    %p95 = scmp.lt.s32.totalorder %s8, 9
    %p96 = pnand %p94, %p95
    %p97 = pneg %p96
    // Predicated region
    $region9: #{invnet_forward.19} parent=5 // pred_check
      _
    $region10: #{invnet_forward.19} parent=5 // pred_check_branch
      %99 = sbr.rel (%p96) target = $region12
    $region11: #{invnet_forward.19} parent=5 // pred_region
      %s100 = ssub.s32 %s8, 1
    $region12: #{invnet_forward.19} parent=5 // pred_fallthru
      _
    %p101 = scmp.lt.s32.totalorder %s8, 8
    // Predicated region
    $region13: #{invnet_forward.19} parent=5 // pred_check
      %p102 = pneg %p101
    $region14: #{invnet_forward.19} parent=5 // pred_check_branch
      %104 = sbr.rel (%p102) target = $region16
    $region15: #{invnet_forward.19} parent=5 // pred_region
      // Predicated region
      $region17: #{invnet_forward.19} parent=15 // pred_check
        %p105 = pneg %p28
      $region18: #{invnet_forward.19} parent=15 // pred_check_branch
        %107 = sbr.rel (%p105) target = $region20
      $region19: #{invnet_forward.19} parent=15 // pred_region
        %p108 = scmp.lt.s32.totalorder %s8, 7
        %s109 = scalar_select %p108, %s8, 7
        %s110 = smul.addr %s109, 16
        %s111 = smul.addr %s110, 4
        %s112 = scalar_lea.vmem %s0, %s111
      $region20: #{invnet_forward.19} parent=15 // pred_fallthru
        _
      // Predicated region
      $region21: #{invnet_forward.19} parent=15 // pred_check
        %p113 = pneg %p54
      $region22: #{invnet_forward.19} parent=15 // pred_check_branch
        %115 = sbr.rel (%p113) target = $region24
      $region23: #{invnet_forward.19} parent=15 // pred_region
        %p116 = scmp.lt.s32.totalorder %s8, 7
        %s117 = scalar_select %p116, %s8, 7
        %s118 = smul.addr %s117, 9
        %s119 = smul.addr %s118, 2
        %s120 = scalar_lea.vmem %s1, %s119
      $region24: #{invnet_forward.19} parent=15 // pred_fallthru
        _
    $region16: #{invnet_forward.19} parent=5 // pred_fallthru
      _
    %p121 = scmp.le.s32.totalorder 1, %s8
    %p122 = scmp.lt.s32.totalorder %s8, 9
    %p123 = pnand %p121, %p122
    %p124 = pneg %p123
    // Predicated region
    $region25: #{invnet_forward.19} parent=5 // pred_check
      _
    $region26: #{invnet_forward.19} parent=5 // pred_check_branch
      %126 = sbr.rel (%p123) target = $region28
    $region27: #{invnet_forward.19} parent=5 // pred_region
      %s127 = ssub.s32 %s8, 1
      %p128 = scmp.lt.s32.totalorder %s13, 7
      %s129 = scalar_select %p128, %s13, 7
      %s130 = smul.addr %s129, 16
      %s131 = smul.addr %s130, 4
      %s132 = scalar_lea.vmem %s0, %s131
      %p133 = pneg %p34
      %p134 = pneg %p31
      %p135 = scmp.lt.s32.totalorder %s13, 7
      %s136 = scalar_select %p135, %s13, 7
      %s137 = smul.addr %s136, 9
      %s138 = smul.addr %s137, 2
      %s139 = scalar_lea.vmem %s1, %s138
      %p140 = pneg %p60
      %p141 = pneg %p57
      %p142 = pneg %p86
      %p143 = pneg %p83
      %p144 = scmp.lt.s32.totalorder %s13, 7
      %s145 = scalar_select %p144, %s13, 7
      %s146 = smul.addr %s145, 16
      %s147 = smul.addr %s146, 2
      %s148 = scalar_lea.vmem %s2, %s147
      %p149 = scmp.lt.s32.totalorder %s13, 7
      %s150 = scalar_select %p149, %s13, 7
      %s151 = smul.addr %s150, 16
      %s152 = smul.addr %s151, 4
      %s153 = scalar_lea.vmem %s0, %s152
      %p154 = scmp.lt.s32.totalorder %s13, 7
      %s155 = scalar_select %p154, %s13, 7
      %s156 = smul.addr %s155, 9
      %s157 = smul.addr %s156, 2
      %s158 = scalar_lea.vmem %s1, %s157
      %p159 = scmp.lt.s32.totalorder %s13, 7
      %s160 = scalar_select %p159, %s13, 7
      %s161 = smul.addr %s160, 16
      %s162 = smul.addr %s161, 2
      %s163 = scalar_lea.vmem %s2, %s162
      %v164 = vld [vmem:[%s153] sm:$0xf]
      %v165 = vld [vmem:[%s153 + $0x4] sm:$0xf]
      %v166 = vld [vmem:[%s153 + $0x8] sm:$0xf]
      %v167 = vld [vmem:[%s153 + $0xc] sm:$0xf]
      %v168 = vld [vmem:[%s153 + $0x10] sm:$0xf]
      %v169 = vld [vmem:[%s153 + $0x14] sm:$0xf]
      %v170 = vld [vmem:[%s153 + $0x18] sm:$0xf]
      %v171 = vld [vmem:[%s153 + $0x1c] sm:$0xf]
      %v172 = vld [vmem:[%s153 + $0x20] sm:$0xf]
      %v173 = vld [vmem:[%s153 + $0x24] sm:$0xf]
      %v174 = vld [vmem:[%s153 + $0x28] sm:$0xf]
      %v175 = vld [vmem:[%s153 + $0x2c] sm:$0xf]
      %v176 = vld [vmem:[%s153 + $0x30] sm:$0xf]
      %v177 = vld [vmem:[%s153 + $0x34] sm:$0xf]
      %v178 = vld [vmem:[%s153 + $0x38] sm:$0xf]
      %v179 = vld [vmem:[%s153 + $0x3c] sm:$0xf]
      %v180 = vld [vmem:[%s158] sm:$0x3]
      %v181 = vld [vmem:[%s158 + $0x2] sm:$0x3]
      %v182 = vld [vmem:[%s158 + $0x4] sm:$0x3]
      %v183 = vld [vmem:[%s158 + $0x6] sm:$0x3]
      %v184 = vld [vmem:[%s158 + $0x8] sm:$0x3]
      %v185 = vld [vmem:[%s158 + $0xa] sm:$0x3]
      %v186 = vld [vmem:[%s158 + $0xc] sm:$0x3]
      %v187 = vld [vmem:[%s158 + $0xe] sm:$0x3]
      %v188 = vld [vmem:[%s158 + $0x10] sm:$0x3]
      %v189 = vmul.f32 %v164, %v180
      %v190 = vmul.f32 %v165, %v180
      %v191 = vmul.f32 %v166, %v180
      %v192 = vmul.f32 %v167, %v180
      %v193 = vmul.f32 %v168, %v180
      %v194 = vmul.f32 %v169, %v180
      %v195 = vmul.f32 %v170, %v180
      %v196 = vmul.f32 %v171, %v180
      %v197 = vmul.f32 %v172, %v180
      %v198 = vmul.f32 %v173, %v180
      %v199 = vmul.f32 %v174, %v180
      %v200 = vmul.f32 %v175, %v180
      %v201 = vmul.f32 %v176, %v180
      %v202 = vmul.f32 %v177, %v180
      %v203 = vmul.f32 %v178, %v180
      %v204 = vmul.f32 %v179, %v180
      %v205 = vadd.f32 %v189, 0.0
      %v206 = vadd.f32 %v190, 0.0
      %v207 = vadd.f32 %v191, 0.0
      %v208 = vadd.f32 %v192, 0.0
      %v209 = vadd.f32 %v193, 0.0
      %v210 = vadd.f32 %v194, 0.0
      %v211 = vadd.f32 %v195, 0.0
      %v212 = vadd.f32 %v196, 0.0
      %v213 = vadd.f32 %v197, 0.0
      %v214 = vadd.f32 %v198, 0.0
      %v215 = vadd.f32 %v199, 0.0
      %v216 = vadd.f32 %v200, 0.0
      %v217 = vadd.f32 %v201, 0.0
      %v218 = vadd.f32 %v202, 0.0
      %v219 = vadd.f32 %v203, 0.0
      %v220 = vadd.f32 %v204, 0.0
      %222 = vrot.lane.b32.xlu0 %v181, 1
      %v223 = vpop.permute.xlu0 %222
      %v225 = vmul.f32 %v164, %v223
      %v226 = vmul.f32 %v165, %v223
      %v227 = vmul.f32 %v166, %v223
      %v228 = vmul.f32 %v167, %v223
      %v229 = vmul.f32 %v168, %v223
      %v230 = vmul.f32 %v169, %v223
      %v231 = vmul.f32 %v170, %v223
      %v232 = vmul.f32 %v171, %v223
      %v233 = vmul.f32 %v172, %v223
      %v234 = vmul.f32 %v173, %v223
      %v235 = vmul.f32 %v174, %v223
      %v236 = vmul.f32 %v175, %v223
      %v237 = vmul.f32 %v176, %v223
      %v238 = vmul.f32 %v177, %v223
      %v239 = vmul.f32 %v178, %v223
      %v240 = vmul.f32 %v179, %v223
      %257 = vrot.lane.b32.xlu0 %v225, 127
      %v258 = vpop.permute.xlu0 %257
      %259 = vrot.lane.b32.xlu0 %v226, 127
      %v260 = vpop.permute.xlu0 %259
      %261 = vrot.lane.b32.xlu0 %v227, 127
      %v262 = vpop.permute.xlu0 %261
      %263 = vrot.lane.b32.xlu0 %v228, 127
      %v264 = vpop.permute.xlu0 %263
      %265 = vrot.lane.b32.xlu0 %v229, 127
      %v266 = vpop.permute.xlu0 %265
      %267 = vrot.lane.b32.xlu0 %v230, 127
      %v268 = vpop.permute.xlu0 %267
      %269 = vrot.lane.b32.xlu0 %v231, 127
      %v270 = vpop.permute.xlu0 %269
      %271 = vrot.lane.b32.xlu0 %v232, 127
      %v272 = vpop.permute.xlu0 %271
      %273 = vrot.lane.b32.xlu0 %v233, 127
      %v274 = vpop.permute.xlu0 %273
      %275 = vrot.lane.b32.xlu0 %v234, 127
      %v276 = vpop.permute.xlu0 %275
      %277 = vrot.lane.b32.xlu0 %v235, 127
      %v278 = vpop.permute.xlu0 %277
      %279 = vrot.lane.b32.xlu0 %v236, 127
      %v280 = vpop.permute.xlu0 %279
      %281 = vrot.lane.b32.xlu0 %v237, 127
      %v282 = vpop.permute.xlu0 %281
      %283 = vrot.lane.b32.xlu0 %v238, 127
      %v284 = vpop.permute.xlu0 %283
      %285 = vrot.lane.b32.xlu0 %v239, 127
      %v286 = vpop.permute.xlu0 %285
      %287 = vrot.lane.b32.xlu0 %v240, 127
      %v288 = vpop.permute.xlu0 %287
      %v305 = vadd.f32 %v205, %v258
      %v306 = vadd.f32 %v206, %v260
      %v307 = vadd.f32 %v207, %v262
      %v308 = vadd.f32 %v208, %v264
      %v309 = vadd.f32 %v209, %v266
      %v310 = vadd.f32 %v210, %v268
      %v311 = vadd.f32 %v211, %v270
      %v312 = vadd.f32 %v212, %v272
      %v313 = vadd.f32 %v213, %v274
      %v314 = vadd.f32 %v214, %v276
      %v315 = vadd.f32 %v215, %v278
      %v316 = vadd.f32 %v216, %v280
      %v317 = vadd.f32 %v217, %v282
      %v318 = vadd.f32 %v218, %v284
      %v319 = vadd.f32 %v219, %v286
      %v320 = vadd.f32 %v220, %v288
      %322 = vrot.lane.b32.xlu0 %v182, 2
      %v323 = vpop.permute.xlu0 %322
      %v325 = vmul.f32 %v164, %v323
      %v326 = vmul.f32 %v165, %v323
      %v327 = vmul.f32 %v166, %v323
      %v328 = vmul.f32 %v167, %v323
      %v329 = vmul.f32 %v168, %v323
      %v330 = vmul.f32 %v169, %v323
      %v331 = vmul.f32 %v170, %v323
      %v332 = vmul.f32 %v171, %v323
      %v333 = vmul.f32 %v172, %v323
      %v334 = vmul.f32 %v173, %v323
      %v335 = vmul.f32 %v174, %v323
      %v336 = vmul.f32 %v175, %v323
      %v337 = vmul.f32 %v176, %v323
      %v338 = vmul.f32 %v177, %v323
      %v339 = vmul.f32 %v178, %v323
      %v340 = vmul.f32 %v179, %v323
      %357 = vrot.lane.b32.xlu0 %v325, 126
      %v358 = vpop.permute.xlu0 %357
      %359 = vrot.lane.b32.xlu0 %v326, 126
      %v360 = vpop.permute.xlu0 %359
      %361 = vrot.lane.b32.xlu0 %v327, 126
      %v362 = vpop.permute.xlu0 %361
      %363 = vrot.lane.b32.xlu0 %v328, 126
      %v364 = vpop.permute.xlu0 %363
      %365 = vrot.lane.b32.xlu0 %v329, 126
      %v366 = vpop.permute.xlu0 %365
      %367 = vrot.lane.b32.xlu0 %v330, 126
      %v368 = vpop.permute.xlu0 %367
      %369 = vrot.lane.b32.xlu0 %v331, 126
      %v370 = vpop.permute.xlu0 %369
      %371 = vrot.lane.b32.xlu0 %v332, 126
      %v372 = vpop.permute.xlu0 %371
      %373 = vrot.lane.b32.xlu0 %v333, 126
      %v374 = vpop.permute.xlu0 %373
      %375 = vrot.lane.b32.xlu0 %v334, 126
      %v376 = vpop.permute.xlu0 %375
      %377 = vrot.lane.b32.xlu0 %v335, 126
      %v378 = vpop.permute.xlu0 %377
      %379 = vrot.lane.b32.xlu0 %v336, 126
      %v380 = vpop.permute.xlu0 %379
      %381 = vrot.lane.b32.xlu0 %v337, 126
      %v382 = vpop.permute.xlu0 %381
      %383 = vrot.lane.b32.xlu0 %v338, 126
      %v384 = vpop.permute.xlu0 %383
      %385 = vrot.lane.b32.xlu0 %v339, 126
      %v386 = vpop.permute.xlu0 %385
      %387 = vrot.lane.b32.xlu0 %v340, 126
      %v388 = vpop.permute.xlu0 %387
      %v405 = vadd.f32 %v305, %v358
      %v406 = vadd.f32 %v306, %v360
      %v407 = vadd.f32 %v307, %v362
      %v408 = vadd.f32 %v308, %v364
      %v409 = vadd.f32 %v309, %v366
      %v410 = vadd.f32 %v310, %v368
      %v411 = vadd.f32 %v311, %v370
      %v412 = vadd.f32 %v312, %v372
      %v413 = vadd.f32 %v313, %v374
      %v414 = vadd.f32 %v314, %v376
      %v415 = vadd.f32 %v315, %v378
      %v416 = vadd.f32 %v316, %v380
      %v417 = vadd.f32 %v317, %v382
      %v418 = vadd.f32 %v318, %v384
      %v419 = vadd.f32 %v319, %v386
      %v420 = vadd.f32 %v320, %v388
      %v422 = vrot.slane %v183, 7
      %v424 = vmul.f32 %v164, %v422
      %v425 = vmul.f32 %v165, %v422
      %v426 = vmul.f32 %v166, %v422
      %v427 = vmul.f32 %v167, %v422
      %v428 = vmul.f32 %v168, %v422
      %v429 = vmul.f32 %v169, %v422
      %v430 = vmul.f32 %v170, %v422
      %v431 = vmul.f32 %v171, %v422
      %v432 = vmul.f32 %v172, %v422
      %v433 = vmul.f32 %v173, %v422
      %v434 = vmul.f32 %v174, %v422
      %v435 = vmul.f32 %v175, %v422
      %v436 = vmul.f32 %v176, %v422
      %v437 = vmul.f32 %v177, %v422
      %v438 = vmul.f32 %v178, %v422
      %v439 = vmul.f32 %v179, %v422
      %v456 = vrot.slane %v424, 1
      %v457 = vrot.slane %v425, 1
      %v458 = vrot.slane %v426, 1
      %v459 = vrot.slane %v427, 1
      %v460 = vrot.slane %v428, 1
      %v461 = vrot.slane %v429, 1
      %v462 = vrot.slane %v430, 1
      %v463 = vrot.slane %v431, 1
      %v464 = vrot.slane %v432, 1
      %v465 = vrot.slane %v433, 1
      %v466 = vrot.slane %v434, 1
      %v467 = vrot.slane %v435, 1
      %v468 = vrot.slane %v436, 1
      %v469 = vrot.slane %v437, 1
      %v470 = vrot.slane %v438, 1
      %v471 = vrot.slane %v439, 1
      %v488 = vadd.f32 %v405, %v456
      %v489 = vadd.f32 %v406, %v457
      %v490 = vadd.f32 %v407, %v458
      %v491 = vadd.f32 %v408, %v459
      %v492 = vadd.f32 %v409, %v460
      %v493 = vadd.f32 %v410, %v461
      %v494 = vadd.f32 %v411, %v462
      %v495 = vadd.f32 %v412, %v463
      %v496 = vadd.f32 %v413, %v464
      %v497 = vadd.f32 %v414, %v465
      %v498 = vadd.f32 %v415, %v466
      %v499 = vadd.f32 %v416, %v467
      %v500 = vadd.f32 %v417, %v468
      %v501 = vadd.f32 %v418, %v469
      %v502 = vadd.f32 %v419, %v470
      %v503 = vadd.f32 %v420, %v471
      %v505 = vrot.slane %v184, 7
      %506 = vrot.lane.b32.xlu0 %v505, 1
      %v507 = vpop.permute.xlu0 %506
      %v509 = vmul.f32 %v164, %v507
      %v510 = vmul.f32 %v165, %v507
      %v511 = vmul.f32 %v166, %v507
      %v512 = vmul.f32 %v167, %v507
      %v513 = vmul.f32 %v168, %v507
      %v514 = vmul.f32 %v169, %v507
      %v515 = vmul.f32 %v170, %v507
      %v516 = vmul.f32 %v171, %v507
      %v517 = vmul.f32 %v172, %v507
      %v518 = vmul.f32 %v173, %v507
      %v519 = vmul.f32 %v174, %v507
      %v520 = vmul.f32 %v175, %v507
      %v521 = vmul.f32 %v176, %v507
      %v522 = vmul.f32 %v177, %v507
      %v523 = vmul.f32 %v178, %v507
      %v524 = vmul.f32 %v179, %v507
      %v541 = vrot.slane %v509, 1
      %v542 = vrot.slane %v510, 1
      %v543 = vrot.slane %v511, 1
      %v544 = vrot.slane %v512, 1
      %v545 = vrot.slane %v513, 1
      %v546 = vrot.slane %v514, 1
      %v547 = vrot.slane %v515, 1
      %v548 = vrot.slane %v516, 1
      %v549 = vrot.slane %v517, 1
      %v550 = vrot.slane %v518, 1
      %v551 = vrot.slane %v519, 1
      %v552 = vrot.slane %v520, 1
      %v553 = vrot.slane %v521, 1
      %v554 = vrot.slane %v522, 1
      %v555 = vrot.slane %v523, 1
      %v556 = vrot.slane %v524, 1
      %557 = vrot.lane.b32.xlu0 %v541, 127
      %v558 = vpop.permute.xlu0 %557
      %559 = vrot.lane.b32.xlu0 %v542, 127
      %v560 = vpop.permute.xlu0 %559
      %561 = vrot.lane.b32.xlu0 %v543, 127
      %v562 = vpop.permute.xlu0 %561
      %563 = vrot.lane.b32.xlu0 %v544, 127
      %v564 = vpop.permute.xlu0 %563
      %565 = vrot.lane.b32.xlu0 %v545, 127
      %v566 = vpop.permute.xlu0 %565
      %567 = vrot.lane.b32.xlu0 %v546, 127
      %v568 = vpop.permute.xlu0 %567
      %569 = vrot.lane.b32.xlu0 %v547, 127
      %v570 = vpop.permute.xlu0 %569
      %571 = vrot.lane.b32.xlu0 %v548, 127
      %v572 = vpop.permute.xlu0 %571
      %573 = vrot.lane.b32.xlu0 %v549, 127
      %v574 = vpop.permute.xlu0 %573
      %575 = vrot.lane.b32.xlu0 %v550, 127
      %v576 = vpop.permute.xlu0 %575
      %577 = vrot.lane.b32.xlu0 %v551, 127
      %v578 = vpop.permute.xlu0 %577
      %579 = vrot.lane.b32.xlu0 %v552, 127
      %v580 = vpop.permute.xlu0 %579
      %581 = vrot.lane.b32.xlu0 %v553, 127
      %v582 = vpop.permute.xlu0 %581
      %583 = vrot.lane.b32.xlu0 %v554, 127
      %v584 = vpop.permute.xlu0 %583
      %585 = vrot.lane.b32.xlu0 %v555, 127
      %v586 = vpop.permute.xlu0 %585
      %587 = vrot.lane.b32.xlu0 %v556, 127
      %v588 = vpop.permute.xlu0 %587
      %v605 = vadd.f32 %v488, %v558
      %v606 = vadd.f32 %v489, %v560
      %v607 = vadd.f32 %v490, %v562
      %v608 = vadd.f32 %v491, %v564
      %v609 = vadd.f32 %v492, %v566
      %v610 = vadd.f32 %v493, %v568
      %v611 = vadd.f32 %v494, %v570
      %v612 = vadd.f32 %v495, %v572
      %v613 = vadd.f32 %v496, %v574
      %v614 = vadd.f32 %v497, %v576
      %v615 = vadd.f32 %v498, %v578
      %v616 = vadd.f32 %v499, %v580
      %v617 = vadd.f32 %v500, %v582
      %v618 = vadd.f32 %v501, %v584
      %v619 = vadd.f32 %v502, %v586
      %v620 = vadd.f32 %v503, %v588
      %v622 = vrot.slane %v185, 7
      %623 = vrot.lane.b32.xlu0 %v622, 2
      %v624 = vpop.permute.xlu0 %623
      %v626 = vmul.f32 %v164, %v624
      %v627 = vmul.f32 %v165, %v624
      %v628 = vmul.f32 %v166, %v624
      %v629 = vmul.f32 %v167, %v624
      %v630 = vmul.f32 %v168, %v624
      %v631 = vmul.f32 %v169, %v624
      %v632 = vmul.f32 %v170, %v624
      %v633 = vmul.f32 %v171, %v624
      %v634 = vmul.f32 %v172, %v624
      %v635 = vmul.f32 %v173, %v624
      %v636 = vmul.f32 %v174, %v624
      %v637 = vmul.f32 %v175, %v624
      %v638 = vmul.f32 %v176, %v624
      %v639 = vmul.f32 %v177, %v624
      %v640 = vmul.f32 %v178, %v624
      %v641 = vmul.f32 %v179, %v624
      %v658 = vrot.slane %v626, 1
      %v659 = vrot.slane %v627, 1
      %v660 = vrot.slane %v628, 1
      %v661 = vrot.slane %v629, 1
      %v662 = vrot.slane %v630, 1
      %v663 = vrot.slane %v631, 1
      %v664 = vrot.slane %v632, 1
      %v665 = vrot.slane %v633, 1
      %v666 = vrot.slane %v634, 1
      %v667 = vrot.slane %v635, 1
      %v668 = vrot.slane %v636, 1
      %v669 = vrot.slane %v637, 1
      %v670 = vrot.slane %v638, 1
      %v671 = vrot.slane %v639, 1
      %v672 = vrot.slane %v640, 1
      %v673 = vrot.slane %v641, 1
      %674 = vrot.lane.b32.xlu0 %v658, 126
      %v675 = vpop.permute.xlu0 %674
      %676 = vrot.lane.b32.xlu0 %v659, 126
      %v677 = vpop.permute.xlu0 %676
      %678 = vrot.lane.b32.xlu0 %v660, 126
      %v679 = vpop.permute.xlu0 %678
      %680 = vrot.lane.b32.xlu0 %v661, 126
      %v681 = vpop.permute.xlu0 %680
      %682 = vrot.lane.b32.xlu0 %v662, 126
      %v683 = vpop.permute.xlu0 %682
      %684 = vrot.lane.b32.xlu0 %v663, 126
      %v685 = vpop.permute.xlu0 %684
      %686 = vrot.lane.b32.xlu0 %v664, 126
      %v687 = vpop.permute.xlu0 %686
      %688 = vrot.lane.b32.xlu0 %v665, 126
      %v689 = vpop.permute.xlu0 %688
      %690 = vrot.lane.b32.xlu0 %v666, 126
      %v691 = vpop.permute.xlu0 %690
      %692 = vrot.lane.b32.xlu0 %v667, 126
      %v693 = vpop.permute.xlu0 %692
      %694 = vrot.lane.b32.xlu0 %v668, 126
      %v695 = vpop.permute.xlu0 %694
      %696 = vrot.lane.b32.xlu0 %v669, 126
      %v697 = vpop.permute.xlu0 %696
      %698 = vrot.lane.b32.xlu0 %v670, 126
      %v699 = vpop.permute.xlu0 %698
      %700 = vrot.lane.b32.xlu0 %v671, 126
      %v701 = vpop.permute.xlu0 %700
      %702 = vrot.lane.b32.xlu0 %v672, 126
      %v703 = vpop.permute.xlu0 %702
      %704 = vrot.lane.b32.xlu0 %v673, 126
      %v705 = vpop.permute.xlu0 %704
      %v722 = vadd.f32 %v605, %v675
      %v723 = vadd.f32 %v606, %v677
      %v724 = vadd.f32 %v607, %v679
      %v725 = vadd.f32 %v608, %v681
      %v726 = vadd.f32 %v609, %v683
      %v727 = vadd.f32 %v610, %v685
      %v728 = vadd.f32 %v611, %v687
      %v729 = vadd.f32 %v612, %v689
      %v730 = vadd.f32 %v613, %v691
      %v731 = vadd.f32 %v614, %v693
      %v732 = vadd.f32 %v615, %v695
      %v733 = vadd.f32 %v616, %v697
      %v734 = vadd.f32 %v617, %v699
      %v735 = vadd.f32 %v618, %v701
      %v736 = vadd.f32 %v619, %v703
      %v737 = vadd.f32 %v620, %v705
      %v739 = vrot.slane %v186, 6
      %v741 = vmul.f32 %v164, %v739
      %v742 = vmul.f32 %v165, %v739
      %v743 = vmul.f32 %v166, %v739
      %v744 = vmul.f32 %v167, %v739
      %v745 = vmul.f32 %v168, %v739
      %v746 = vmul.f32 %v169, %v739
      %v747 = vmul.f32 %v170, %v739
      %v748 = vmul.f32 %v171, %v739
      %v749 = vmul.f32 %v172, %v739
      %v750 = vmul.f32 %v173, %v739
      %v751 = vmul.f32 %v174, %v739
      %v752 = vmul.f32 %v175, %v739
      %v753 = vmul.f32 %v176, %v739
      %v754 = vmul.f32 %v177, %v739
      %v755 = vmul.f32 %v178, %v739
      %v756 = vmul.f32 %v179, %v739
      %v773 = vrot.slane %v741, 2
      %v774 = vrot.slane %v742, 2
      %v775 = vrot.slane %v743, 2
      %v776 = vrot.slane %v744, 2
      %v777 = vrot.slane %v745, 2
      %v778 = vrot.slane %v746, 2
      %v779 = vrot.slane %v747, 2
      %v780 = vrot.slane %v748, 2
      %v781 = vrot.slane %v749, 2
      %v782 = vrot.slane %v750, 2
      %v783 = vrot.slane %v751, 2
      %v784 = vrot.slane %v752, 2
      %v785 = vrot.slane %v753, 2
      %v786 = vrot.slane %v754, 2
      %v787 = vrot.slane %v755, 2
      %v788 = vrot.slane %v756, 2
      %v805 = vadd.f32 %v722, %v773
      %v806 = vadd.f32 %v723, %v774
      %v807 = vadd.f32 %v724, %v775
      %v808 = vadd.f32 %v725, %v776
      %v809 = vadd.f32 %v726, %v777
      %v810 = vadd.f32 %v727, %v778
      %v811 = vadd.f32 %v728, %v779
      %v812 = vadd.f32 %v729, %v780
      %v813 = vadd.f32 %v730, %v781
      %v814 = vadd.f32 %v731, %v782
      %v815 = vadd.f32 %v732, %v783
      %v816 = vadd.f32 %v733, %v784
      %v817 = vadd.f32 %v734, %v785
      %v818 = vadd.f32 %v735, %v786
      %v819 = vadd.f32 %v736, %v787
      %v820 = vadd.f32 %v737, %v788
      %v822 = vrot.slane %v187, 6
      %823 = vrot.lane.b32.xlu0 %v822, 1
      %v824 = vpop.permute.xlu0 %823
      %v826 = vmul.f32 %v164, %v824
      %v827 = vmul.f32 %v165, %v824
      %v828 = vmul.f32 %v166, %v824
      %v829 = vmul.f32 %v167, %v824
      %v830 = vmul.f32 %v168, %v824
      %v831 = vmul.f32 %v169, %v824
      %v832 = vmul.f32 %v170, %v824
      %v833 = vmul.f32 %v171, %v824
      %v834 = vmul.f32 %v172, %v824
      %v835 = vmul.f32 %v173, %v824
      %v836 = vmul.f32 %v174, %v824
      %v837 = vmul.f32 %v175, %v824
      %v838 = vmul.f32 %v176, %v824
      %v839 = vmul.f32 %v177, %v824
      %v840 = vmul.f32 %v178, %v824
      %v841 = vmul.f32 %v179, %v824
      %v858 = vrot.slane %v826, 2
      %v859 = vrot.slane %v827, 2
      %v860 = vrot.slane %v828, 2
      %v861 = vrot.slane %v829, 2
      %v862 = vrot.slane %v830, 2
      %v863 = vrot.slane %v831, 2
      %v864 = vrot.slane %v832, 2
      %v865 = vrot.slane %v833, 2
      %v866 = vrot.slane %v834, 2
      %v867 = vrot.slane %v835, 2
      %v868 = vrot.slane %v836, 2
      %v869 = vrot.slane %v837, 2
      %v870 = vrot.slane %v838, 2
      %v871 = vrot.slane %v839, 2
      %v872 = vrot.slane %v840, 2
      %v873 = vrot.slane %v841, 2
      %874 = vrot.lane.b32.xlu0 %v858, 127
      %v875 = vpop.permute.xlu0 %874
      %876 = vrot.lane.b32.xlu0 %v859, 127
      %v877 = vpop.permute.xlu0 %876
      %878 = vrot.lane.b32.xlu0 %v860, 127
      %v879 = vpop.permute.xlu0 %878
      %880 = vrot.lane.b32.xlu0 %v861, 127
      %v881 = vpop.permute.xlu0 %880
      %882 = vrot.lane.b32.xlu0 %v862, 127
      %v883 = vpop.permute.xlu0 %882
      %884 = vrot.lane.b32.xlu0 %v863, 127
      %v885 = vpop.permute.xlu0 %884
      %886 = vrot.lane.b32.xlu0 %v864, 127
      %v887 = vpop.permute.xlu0 %886
      %888 = vrot.lane.b32.xlu0 %v865, 127
      %v889 = vpop.permute.xlu0 %888
      %890 = vrot.lane.b32.xlu0 %v866, 127
      %v891 = vpop.permute.xlu0 %890
      %892 = vrot.lane.b32.xlu0 %v867, 127
      %v893 = vpop.permute.xlu0 %892
      %894 = vrot.lane.b32.xlu0 %v868, 127
      %v895 = vpop.permute.xlu0 %894
      %896 = vrot.lane.b32.xlu0 %v869, 127
      %v897 = vpop.permute.xlu0 %896
      %898 = vrot.lane.b32.xlu0 %v870, 127
      %v899 = vpop.permute.xlu0 %898
      %900 = vrot.lane.b32.xlu0 %v871, 127
      %v901 = vpop.permute.xlu0 %900
      %902 = vrot.lane.b32.xlu0 %v872, 127
      %v903 = vpop.permute.xlu0 %902
      %904 = vrot.lane.b32.xlu0 %v873, 127
      %v905 = vpop.permute.xlu0 %904
      %v922 = vadd.f32 %v805, %v875
      %v923 = vadd.f32 %v806, %v877
      %v924 = vadd.f32 %v807, %v879
      %v925 = vadd.f32 %v808, %v881
      %v926 = vadd.f32 %v809, %v883
      %v927 = vadd.f32 %v810, %v885
      %v928 = vadd.f32 %v811, %v887
      %v929 = vadd.f32 %v812, %v889
      %v930 = vadd.f32 %v813, %v891
      %v931 = vadd.f32 %v814, %v893
      %v932 = vadd.f32 %v815, %v895
      %v933 = vadd.f32 %v816, %v897
      %v934 = vadd.f32 %v817, %v899
      %v935 = vadd.f32 %v818, %v901
      %v936 = vadd.f32 %v819, %v903
      %v937 = vadd.f32 %v820, %v905
      %v939 = vrot.slane %v188, 6
      %940 = vrot.lane.b32.xlu0 %v939, 2
      %v941 = vpop.permute.xlu0 %940
      %v943 = vmul.f32 %v164, %v941
      %v944 = vmul.f32 %v165, %v941
      %v945 = vmul.f32 %v166, %v941
      %v946 = vmul.f32 %v167, %v941
      %v947 = vmul.f32 %v168, %v941
      %v948 = vmul.f32 %v169, %v941
      %v949 = vmul.f32 %v170, %v941
      %v950 = vmul.f32 %v171, %v941
      %v951 = vmul.f32 %v172, %v941
      %v952 = vmul.f32 %v173, %v941
      %v953 = vmul.f32 %v174, %v941
      %v954 = vmul.f32 %v175, %v941
      %v955 = vmul.f32 %v176, %v941
      %v956 = vmul.f32 %v177, %v941
      %v957 = vmul.f32 %v178, %v941
      %v958 = vmul.f32 %v179, %v941
      %v975 = vrot.slane %v943, 2
      %v976 = vrot.slane %v944, 2
      %v977 = vrot.slane %v945, 2
      %v978 = vrot.slane %v946, 2
      %v979 = vrot.slane %v947, 2
      %v980 = vrot.slane %v948, 2
      %v981 = vrot.slane %v949, 2
      %v982 = vrot.slane %v950, 2
      %v983 = vrot.slane %v951, 2
      %v984 = vrot.slane %v952, 2
      %v985 = vrot.slane %v953, 2
      %v986 = vrot.slane %v954, 2
      %v987 = vrot.slane %v955, 2
      %v988 = vrot.slane %v956, 2
      %v989 = vrot.slane %v957, 2
      %v990 = vrot.slane %v958, 2
      %991 = vrot.lane.b32.xlu0 %v975, 126
      %v992 = vpop.permute.xlu0 %991
      %993 = vrot.lane.b32.xlu0 %v976, 126
      %v994 = vpop.permute.xlu0 %993
      %995 = vrot.lane.b32.xlu0 %v977, 126
      %v996 = vpop.permute.xlu0 %995
      %997 = vrot.lane.b32.xlu0 %v978, 126
      %v998 = vpop.permute.xlu0 %997
      %999 = vrot.lane.b32.xlu0 %v979, 126
      %v1000 = vpop.permute.xlu0 %999
      %1001 = vrot.lane.b32.xlu0 %v980, 126
      %v1002 = vpop.permute.xlu0 %1001
      %1003 = vrot.lane.b32.xlu0 %v981, 126
      %v1004 = vpop.permute.xlu0 %1003
      %1005 = vrot.lane.b32.xlu0 %v982, 126
      %v1006 = vpop.permute.xlu0 %1005
      %1007 = vrot.lane.b32.xlu0 %v983, 126
      %v1008 = vpop.permute.xlu0 %1007
      %1009 = vrot.lane.b32.xlu0 %v984, 126
      %v1010 = vpop.permute.xlu0 %1009
      %1011 = vrot.lane.b32.xlu0 %v985, 126
      %v1012 = vpop.permute.xlu0 %1011
      %1013 = vrot.lane.b32.xlu0 %v986, 126
      %v1014 = vpop.permute.xlu0 %1013
      %1015 = vrot.lane.b32.xlu0 %v987, 126
      %v1016 = vpop.permute.xlu0 %1015
      %1017 = vrot.lane.b32.xlu0 %v988, 126
      %v1018 = vpop.permute.xlu0 %1017
      %1019 = vrot.lane.b32.xlu0 %v989, 126
      %v1020 = vpop.permute.xlu0 %1019
      %1021 = vrot.lane.b32.xlu0 %v990, 126
      %v1022 = vpop.permute.xlu0 %1021
      %v1039 = vadd.f32 %v922, %v992
      %v1040 = vadd.f32 %v923, %v994
      %v1041 = vadd.f32 %v924, %v996
      %v1042 = vadd.f32 %v925, %v998
      %v1043 = vadd.f32 %v926, %v1000
      %v1044 = vadd.f32 %v927, %v1002
      %v1045 = vadd.f32 %v928, %v1004
      %v1046 = vadd.f32 %v929, %v1006
      %v1047 = vadd.f32 %v930, %v1008
      %v1048 = vadd.f32 %v931, %v1010
      %v1049 = vadd.f32 %v932, %v1012
      %v1050 = vadd.f32 %v933, %v1014
      %v1051 = vadd.f32 %v934, %v1016
      %v1052 = vadd.f32 %v935, %v1018
      %v1053 = vadd.f32 %v936, %v1020
      %v1054 = vadd.f32 %v937, %v1022
      %vm1055 = vcmask 9216
      %1056 = vst.msk [vmem:[%s163] sm:$0x3] %vm1055, %v1039
      %1057 = vst.msk [vmem:[%s163 + $0x2] sm:$0x3] %vm1055, %v1040
      %1058 = vst.msk [vmem:[%s163 + $0x4] sm:$0x3] %vm1055, %v1041
      %1059 = vst.msk [vmem:[%s163 + $0x6] sm:$0x3] %vm1055, %v1042
      %1060 = vst.msk [vmem:[%s163 + $0x8] sm:$0x3] %vm1055, %v1043
      %1061 = vst.msk [vmem:[%s163 + $0xa] sm:$0x3] %vm1055, %v1044
      %1062 = vst.msk [vmem:[%s163 + $0xc] sm:$0x3] %vm1055, %v1045
      %1063 = vst.msk [vmem:[%s163 + $0xe] sm:$0x3] %vm1055, %v1046
      %1064 = vst.msk [vmem:[%s163 + $0x10] sm:$0x3] %vm1055, %v1047
      %1065 = vst.msk [vmem:[%s163 + $0x12] sm:$0x3] %vm1055, %v1048
      %1066 = vst.msk [vmem:[%s163 + $0x14] sm:$0x3] %vm1055, %v1049
      %1067 = vst.msk [vmem:[%s163 + $0x16] sm:$0x3] %vm1055, %v1050
      %1068 = vst.msk [vmem:[%s163 + $0x18] sm:$0x3] %vm1055, %v1051
      %1069 = vst.msk [vmem:[%s163 + $0x1a] sm:$0x3] %vm1055, %v1052
      %1070 = vst.msk [vmem:[%s163 + $0x1c] sm:$0x3] %vm1055, %v1053
      %1071 = vst.msk [vmem:[%s163 + $0x1e] sm:$0x3] %vm1055, %v1054
      %p1072 = scmp.lt.s32.totalorder %s13, 7
      %s1073 = scalar_select %p1072, %s13, 7
      %s1074 = smul.addr %s1073, 16
      %s1075 = smul.addr %s1074, 2
      %s1076 = scalar_lea.vmem %s2, %s1075
      // Predicated region
      $region29: #{invnet_forward.19} parent=27 // pred_check
        %p1077 = pneg %p83
      $region30: #{invnet_forward.19} parent=27 // pred_check_branch
        %1079 = sbr.rel (%p1077) target = $region32
      $region31: #{invnet_forward.19} parent=27 // pred_region
        _
      $region32: #{invnet_forward.19} parent=27 // pred_fallthru
        _
    $region28: #{invnet_forward.19} parent=5 // pred_fallthru
      _
    %p1080 = scmp.le.s32.totalorder 2, %s8
    // Predicated region
    $region33: #{invnet_forward.19} parent=5 // pred_check
      %p1081 = pneg %p1080
    $region34: #{invnet_forward.19} parent=5 // pred_check_branch
      %1083 = sbr.rel (%p1081) target = $region36
    $region35: #{invnet_forward.19} parent=5 // pred_region
      %s1084 = ssub.s32 %s8, 2
      // Predicated region
      $region37: #{invnet_forward.19} parent=35 // pred_check
        %p1085 = pneg %p89
      $region38: #{invnet_forward.19} parent=35 // pred_check_branch
        %1087 = sbr.rel (%p1085) target = $region40
      $region39: #{invnet_forward.19} parent=35 // pred_region
        %p1088 = scmp.lt.s32.totalorder %s14, 7
        %s1089 = scalar_select %p1088, %s14, 7
        %s1090 = smul.addr %s1089, 16
        %s1091 = smul.addr %s1090, 2
        %s1092 = scalar_lea.vmem %s2, %s1091
      $region40: #{invnet_forward.19} parent=35 // pred_fallthru
        _
    $region36: #{invnet_forward.19} parent=5 // pred_fallthru
      _
  $region6: #{invnet_forward.19} parent=0 // loop_footer
    %s12 = sadd.s32 1, %s8
  $region7: #{invnet_forward.19} parent=0 // loop_footer_branch
    %7 = sbr.rel target = $region3
  $region8: #{invnet_forward.19} parent=0 // loop_exit
    _

</llo_original>
